<compile_context>
chip_gen: v5e
topology: v5e:2x2
jax: 0.10.0
libtpu: 0.0.40
codegen_flags: <defaults>
</compile_context>

<pallas_src>
import functools

import jax
import jax.numpy as jnp
import numpy as np
from jax import lax
from jax.experimental import pallas as pl
from jax.experimental.pallas import tpu as pltpu

EPS = 1e-6
LANE = 128


def _round_up(n, m):
    return (n + m - 1) // m * m


def _vmem_limit_bytes():
    # Device-aware scoped-VMEM limit: v7x only has 64 MiB physical per TC,
    # v5e/v6e have 128 MiB (16/32 MiB default scoped limits).
    try:
        cap = pltpu.get_tpu_info().vmem_capacity_bytes
        return int(min(96 * 2**20, (cap * 3) // 4))
    except Exception:  # fall back to a safe value on every generation
        return 32 * 2**20


def _choose_tile_rows(H, W, cpi, cpo, budget_bytes=8 * 2**20):
    # Largest row tile whose double-buffered working set (bf16 halo input tile
    # + f32 conv-output tile) fits a conservative per-step VMEM budget that is
    # safe on all generations.
    valid = [tr for tr in range(1, H + 1) if H % tr == 0 and (tr * W) % 8 == 0]
    assert valid, "need a row tile with H % TR == 0 and (TR*W) % 8 == 0"
    for tr in sorted(valid, reverse=True):
        x_tile = (tr + 2) * (W + 2) * cpi * 2
        y_tile = tr * W * cpo * 4
        if 2 * (x_tile + y_tile) <= budget_bytes:
            return tr
    return valid[0]


# ------------------------------ in-kernel helpers ------------------------------

def _mish(v):
    # mish(x) = x * tanh(softplus(x)) == x * (1 - 2 / ((1 + e^x)^2 + 1))
    # -> a single exp plus one approximate EUP reciprocal per element.
    e = jnp.exp(jnp.minimum(v, 20.0))       # for v > 20, mish(v) == v in f32
    s = 1.0 + e
    return v * (1.0 - 2.0 * pl.reciprocal(s * s + 1.0, approx=True))


# --------------------- kernel A: conv taps + partial GN stats ------------------

def _make_conv_stats_kernel(TR, W, K, n_tile):
    """3x3 conv (per-tap MXU matmuls) + per-group partial stats for one row tile."""

    def kernel(x_ref, w_ref, b_ref, gmat_ref, gmat_t_ref, y_ref, stats_ref):
        # x_ref:      (TR + K - 1, W + K - 1, CPI)  bf16 halo-padded row tile
        # w_ref:      (K, K, CPI, CPO)              bf16
        # b_ref:      (1, CPO)                      f32
        # gmat_ref:   (CPO, G)  channel->group one-hot, zero rows for padding
        # gmat_t_ref: (G, CPO)
        # y_ref:      (TR*W, CPO)                   f32 conv output (pre-GN)
        # stats_ref:  (2, G)                        f32 running (sum, M2) per group
        t = pl.program_id(1)
        cpi = x_ref.shape[-1]
        cpo = w_ref.shape[-1]

        # conv: K*K back-to-back bf16 matmuls into one f32 accumulator.
        acc = jnp.zeros((TR * W, cpo), jnp.float32)
        for ky in range(K):
            for kx in range(K):
                patch = x_ref[ky:ky + TR, kx:kx + W, :].reshape(TR * W, cpi)
                acc = acc + jnp.dot(patch, w_ref[ky, kx],
                                    preferred_element_type=jnp.float32)
        acc = acc + b_ref[...]
        y_ref[...] = acc

        # Per-tile group statistics from the f32 accumulator.
        sum_c = jnp.sum(acc, axis=0, keepdims=True)                      # (1, CPO)
        sum_g = jnp.dot(sum_c, gmat_ref[...],
                        preferred_element_type=jnp.float32)              # (1, G)
        m_t = sum_g * (1.0 / n_tile)                                     # tile mean
        m_c = jnp.dot(m_t, gmat_t_ref[...],
                      preferred_element_type=jnp.float32)                # (1, CPO)
        dev = acc - m_c
        m2_c = jnp.sum(dev * dev, axis=0, keepdims=True)
        m2_t = jnp.dot(m2_c, gmat_ref[...],
                       preferred_element_type=jnp.float32)               # (1, G)

        # Chan parallel-variance combination across row tiles (numerically
        # robust vs E[x^2]-E[x]^2).
        @pl.when(t == 0)
        def _():
            stats_ref[...] = jnp.zeros_like(stats_ref)

        s_prev = stats_ref[0:1, :]
        m2_prev = stats_ref[1:2, :]
        n_prev = t.astype(jnp.float32) * n_tile
        n_new = n_prev + n_tile
        mean_prev = s_prev / jnp.maximum(n_prev, 1.0)
        delta = jnp.where(t == 0, 0.0, m_t - mean_prev)
        stats_ref[0:1, :] = s_prev + sum_g
        stats_ref[1:2, :] = m2_prev + m2_t + delta * delta * (n_prev * n_tile / n_new)

    return kernel


# --------------- kernel B: GroupNorm + Mish + FiLM / residual add --------------

def _make_norm_kernel(count, use_film, res_mode):
    def kernel(*refs):
        i = 0
        y_ref = refs[i]; i += 1           # (TR*W, CPO) f32 conv output
        stats_ref = refs[i]; i += 1       # (2, G) f32 (sum, M2) per group
        gamma_ref = refs[i]; i += 1       # (1, CPO)
        beta_ref = refs[i]; i += 1        # (1, CPO)
        gmat_t_ref = refs[i]; i += 1      # (G, CPO)
        if use_film:
            scale1p_ref = refs[i]; i += 1   # (1, CPO)  = 1 + scale
            shift_ref = refs[i]; i += 1     # (1, CPO)
        if res_mode == "conv":
            xres_ref = refs[i]; i += 1      # (TR*W, CPI) bf16
            wr_ref = refs[i]; i += 1        # (CPI, CPO)  bf16
            br_ref = refs[i]; i += 1        # (1, CPO)    f32
        elif res_mode == "identity":
            xres_ref = refs[i]; i += 1      # (TR*W, CPO) f32
        out_ref = refs[i]

        inv_n = 1.0 / count
        mean_g = stats_ref[0:1, :] * inv_n
        var_g = stats_ref[1:2, :] * inv_n
        inv_g = lax.rsqrt(var_g + EPS)
        mean_c = jnp.dot(mean_g, gmat_t_ref[...], preferred_element_type=jnp.float32)
        inv_c = jnp.dot(inv_g, gmat_t_ref[...], preferred_element_type=jnp.float32)

        h = (y_ref[...] - mean_c) * (inv_c * gamma_ref[...]) + beta_ref[...]
        h = _mish(h)
        if use_film:
            h = h * scale1p_ref[...] + shift_ref[...]
        if res_mode == "conv":
            h = h + (jnp.dot(xres_ref[...], wr_ref[...],
                             preferred_element_type=jnp.float32) + br_ref[...])
        elif res_mode == "identity":
            h = h + xres_ref[...]
        out_ref[...] = h.astype(out_ref.dtype)

    return kernel


# ------------------------------ per-stage wrapper -------------------------------

def _conv_gn_stage(x_img, w4, bias2, gamma2, beta2, gmat, gmat_t, TR, cpg,
                   film=None, residual=None, out_dtype=jnp.float32):
    """conv (KxK) -> GroupNorm -> Mish -> optional FiLM / residual add."""
    B, H, W, CPI = x_img.shape
    K = w4.shape[0]
    CPO = w4.shape[-1]
    G = gmat.shape[-1]
    pad = K // 2
    NT = H // TR
    TRH = TR + 2 * pad
    WP = W + 2 * pad
    HWT = TR * W

    # Zero pad spatially and cut row tiles with a halo (only 2*pad duplicated
    # rows per tile — vs 9x read amplification with im2col).
    xb = jnp.pad(x_img.astype(jnp.bfloat16),
                 ((0, 0), (pad, pad), (pad, pad), (0, 0)))
    x_tiles = jnp.stack([xb[:, t * TR:t * TR + TRH] for t in range(NT)], axis=1)
    x_tiles = x_tiles.reshape(B * NT, TRH, WP, CPI)

    vmem_limit = _vmem_limit_bytes()
    n_tile = float(HWT * cpg)

    y, stats = pl.pallas_call(
        _make_conv_stats_kernel(TR, W, K, n_tile),
        grid=(B, NT),
        in_specs=[
            pl.BlockSpec((None, TRH, WP, CPI), lambda b, t: (b * NT + t, 0, 0, 0)),
            pl.BlockSpec((K, K, CPI, CPO), lambda b, t: (0, 0, 0, 0)),
            pl.BlockSpec((1, CPO), lambda b, t: (0, 0)),
            pl.BlockSpec((CPO, G), lambda b, t: (0, 0)),
            pl.BlockSpec((G, CPO), lambda b, t: (0, 0)),
        ],
        out_specs=[
            pl.BlockSpec((None, HWT, CPO), lambda b, t: (b, t, 0)),
            pl.BlockSpec((None, 2, G), lambda b, t: (b, 0, 0)),
        ],
        out_shape=[
            jax.ShapeDtypeStruct((B, H * W, CPO), jnp.float32),
            jax.ShapeDtypeStruct((B, 2, G), jnp.float32),
        ],
        compiler_params=pltpu.CompilerParams(
            # row-tile axis carries the GN-stat accumulator -> "arbitrary";
            # batch axis shards across megacore TCs.
            dimension_semantics=("parallel", "arbitrary"),
            vmem_limit_bytes=vmem_limit,
        ),
    )(x_tiles, w4, bias2, gmat, gmat_t)

    use_film = film is not None
    res_mode = residual[0] if residual is not None else None

    in_specs = [
        pl.BlockSpec((None, HWT, CPO), lambda b, t: (b, t, 0)),
        pl.BlockSpec((None, 2, G), lambda b, t: (b, 0, 0)),
        pl.BlockSpec((1, CPO), lambda b, t: (0, 0)),
        pl.BlockSpec((1, CPO), lambda b, t: (0, 0)),
        pl.BlockSpec((G, CPO), lambda b, t: (0, 0)),
    ]
    args = [y, stats, gamma2, beta2, gmat_t]
    if use_film:
        scale1p, shift = film           # each (B, 1, CPO)
        in_specs += [pl.BlockSpec((None, 1, CPO), lambda b, t: (b, 0, 0)),
                     pl.BlockSpec((None, 1, CPO), lambda b, t: (b, 0, 0))]
        args += [scale1p, shift]
    if res_mode == "conv":
        _, xres, wr, br = residual
        cpi_res = xres.shape[-1]
        in_specs += [pl.BlockSpec((None, HWT, cpi_res), lambda b, t: (b, t, 0)),
                     pl.BlockSpec((cpi_res, CPO), lambda b, t: (0, 0)),
                     pl.BlockSpec((1, CPO), lambda b, t: (0, 0))]
        args += [xres, wr, br]
    elif res_mode == "identity":
        _, xres = residual
        in_specs += [pl.BlockSpec((None, HWT, CPO), lambda b, t: (b, t, 0))]
        args += [xres]

    count = float(H * W * cpg)
    h = pl.pallas_call(
        _make_norm_kernel(count, use_film, res_mode),
        grid=(B, NT),
        in_specs=in_specs,
        out_specs=pl.BlockSpec((None, HWT, CPO), lambda b, t: (b, t, 0)),
        out_shape=jax.ShapeDtypeStruct((B, H * W, CPO), out_dtype),
        compiler_params=pltpu.CompilerParams(
            dimension_semantics=("parallel", "parallel"),
            vmem_limit_bytes=vmem_limit,
        ),
    )(*args)
    return h


# ------------------------------- parameter setup --------------------------------

def init_params(key, in_dim, out_dim, emb_dim, kernel_size=3, adaptive_scale=True):
    ks = jax.random.split(key, 5)

    def uconv(k, cout, cin, ksz):
        fan_in = cin * ksz * ksz
        bound = 1.0 / (fan_in ** 0.5)
        w = jax.random.uniform(k, (cout, cin, ksz, ksz), jnp.float32, -bound, bound)
        b = jax.random.uniform(jax.random.fold_in(k, 1), (cout,), jnp.float32,
                               -bound, bound)
        return w, b

    conv1_w, conv1_b = uconv(ks[0], out_dim, in_dim, kernel_size)
    conv2_w, conv2_b = uconv(ks[1], out_dim, out_dim, kernel_size)
    lin_out = out_dim * (2 if adaptive_scale else 1)
    lb = 1.0 / (emb_dim ** 0.5)
    lin_w = jax.random.uniform(ks[2], (emb_dim, lin_out), jnp.float32, -lb, lb)
    lin_b = jax.random.uniform(ks[3], (lin_out,), jnp.float32, -lb, lb)
    params = dict(conv1_w=conv1_w, conv1_b=conv1_b,
                  conv2_w=conv2_w, conv2_b=conv2_b,
                  gn1_gamma=jnp.ones((out_dim,), jnp.float32),
                  gn1_beta=jnp.zeros((out_dim,), jnp.float32),
                  gn2_gamma=jnp.ones((out_dim,), jnp.float32),
                  gn2_beta=jnp.zeros((out_dim,), jnp.float32),
                  lin_w=lin_w, lin_b=lin_b)
    if in_dim != out_dim:
        rw, rb = uconv(ks[4], out_dim, in_dim, 1)
        params["res_w"] = rw
        params["res_b"] = rb
    return params


def _pad_last(a, target):
    p = target - a.shape[-1]
    if p == 0:
        return a
    return jnp.pad(a, [(0, 0)] * (a.ndim - 1) + [(0, p)])


def _prep_conv_w(w, cpi, cpo):
    # torch (Cout, Cin, K, K) -> (K, K, CPI, CPO) bf16, zero padded channels.
    cout, cin, K, _ = w.shape
    wt = jnp.transpose(w, (2, 3, 1, 0))
    wt = jnp.pad(wt, ((0, 0), (0, 0), (0, cpi - cin), (0, cpo - cout)))
    return wt.astype(jnp.bfloat16)


# -------------------------------- forward wrapper --------------------------------

def residual_block_forward(params, x_nchw, emb, num_groups=4,
                           adaptive_scale=True, tile_rows=None):
    B, Cin, H, W = x_nchw.shape
    Cout, _, K, _ = params["conv1_w"].shape
    assert K % 2 == 1 and Cout % num_groups == 0
    cpg = Cout // num_groups
    CPI = _round_up(Cin, LANE)
    CPO = _round_up(Cout, LANE)

    TR = tile_rows if tile_rows is not None else _choose_tile_rows(H, W, CPI, CPO)
    assert H % TR == 0 and (TR * W) % 8 == 0, "need H % TR == 0 and (TR*W) % 8 == 0"

    x_nhwc = jnp.transpose(x_nchw, (0, 2, 3, 1)).astype(jnp.float32)
    x_p = _pad_last(x_nhwc, CPI)                                   # (B, H, W, CPI)

    # Tiny emb MLP (Mish -> Linear) in plain XLA: a dedicated pallas_call costs
    # more than its compute (perf-review item).
    e = emb.astype(jnp.float32)
    e = e * jnp.tanh(jax.nn.softplus(e))
    se = jnp.dot(e, params["lin_w"], precision=lax.Precision.HIGHEST) + params["lin_b"]
    if adaptive_scale:
        scale, shift = se[:, :Cout], se[:, Cout:]
    else:
        scale = jnp.zeros((B, Cout), jnp.float32)
        shift = se
    scale1p = _pad_last(1.0 + scale, CPO).reshape(B, 1, CPO)
    shift_p = _pad_last(shift, CPO).reshape(B, 1, CPO)

    # channel -> group one-hot (padded channels map to no group)
    ch = jnp.arange(CPO)
    gmat = ((ch[:, None] // cpg) == jnp.arange(num_groups)[None, :]) \
        & (ch[:, None] < Cout)
    gmat = gmat.astype(jnp.float32)                                # (CPO, G)
    gmat_t = jnp.transpose(gmat)                                   # (G, CPO)

    # ---- stage 1: conv1 -> GroupNorm -> Mish -> FiLM ----
    h1 = _conv_gn_stage(
        x_p,
        _prep_conv_w(params["conv1_w"], CPI, CPO),
        _pad_last(params["conv1_b"][None, :], CPO),
        _pad_last(params["gn1_gamma"][None, :], CPO),
        _pad_last(params["gn1_beta"][None, :], CPO),
        gmat, gmat_t, TR, cpg,
        film=(scale1p, shift_p), residual=None,
        out_dtype=jnp.bfloat16)                                    # (B, HW, CPO) bf16

    # ---- residual path ----
    if "res_w" in params:
        wr = jnp.transpose(params["res_w"][:, :, 0, 0])            # (Cin, Cout)
        wr = jnp.pad(wr, ((0, CPI - Cin), (0, CPO - Cout))).astype(jnp.bfloat16)
        br = _pad_last(params["res_b"][None, :], CPO)
        residual = ("conv", x_p.reshape(B, H * W, CPI).astype(jnp.bfloat16), wr, br)
    else:
        # in_dim == out_dim -> nn.Identity: skip the 1x1 matmul entirely.
        residual = ("identity", x_p.reshape(B, H * W, CPO))

    # ---- stage 2: conv2 -> GroupNorm -> Mish -> + residual ----
    h2 = _conv_gn_stage(
        h1.reshape(B, H, W, CPO),
        _prep_conv_w(params["conv2_w"], CPO, CPO),
        _pad_last(params["conv2_b"][None, :], CPO),
        _pad_last(params["gn2_gamma"][None, :], CPO),
        _pad_last(params["gn2_beta"][None, :], CPO),
        gmat, gmat_t, TR, cpg,
        film=None, residual=residual,
        out_dtype=jnp.float32)                                     # (B, HW, CPO) f32

    out = h2.reshape(B, H, W, CPO)[..., :Cout]
    return jnp.transpose(out, (0, 3, 1, 2))                        # NCHW


# ------------------------------- pure-JAX reference ------------------------------

def reference_forward(params, x, emb, num_groups=4, adaptive_scale=True):
    def conv(xx, w, b, pad):
        y = lax.conv_general_dilated(xx, w, (1, 1), [(pad, pad), (pad, pad)],
                                     dimension_numbers=("NCHW", "OIHW", "NCHW"),
                                     precision=lax.Precision.HIGHEST)
        return y + b[None, :, None, None]

    def gn(xx, gamma, beta):
        B, C, H, W = xx.shape
        xg = xx.reshape(B, num_groups, C // num_groups, H, W)
        mean = xg.mean(axis=(2, 3, 4), keepdims=True)
        var = xg.var(axis=(2, 3, 4), keepdims=True)
        xn = ((xg - mean) / jnp.sqrt(var + EPS)).reshape(B, C, H, W)
        return xn * gamma[None, :, None, None] + beta[None, :, None, None]

    def mish(v):
        return v * jnp.tanh(jax.nn.softplus(v))

    Cout = params["conv1_w"].shape[0]
    e = jnp.dot(mish(emb), params["lin_w"],
                precision=lax.Precision.HIGHEST) + params["lin_b"]
    if adaptive_scale:
        scale, shift = e[:, :Cout], e[:, Cout:]
    else:
        scale = jnp.zeros((e.shape[0], Cout), jnp.float32)
        shift = e
    pad = params["conv1_w"].shape[-1] // 2
    h = mish(gn(conv(x, params["conv1_w"], params["conv1_b"], pad),
                params["gn1_gamma"], params["gn1_beta"]))
    h = h * (1.0 + scale[:, :, None, None]) + shift[:, :, None, None]
    h = mish(gn(conv(h, params["conv2_w"], params["conv2_b"], pad),
                params["gn2_gamma"], params["gn2_beta"]))
    res = conv(x, params["res_w"], params["res_b"], 0) if "res_w" in params else x
    return h + res


# -------------------------------------- main --------------------------------------

if __name__ == "__main__":
    key = jax.random.PRNGKey(0)

    # config 1: in_dim != out_dim (1x1 residual conv path), 2 row tiles.
    B, in_dim, out_dim, emb_dim, H, W = 2, 4, 8, 32, 16, 16
    kx, ke, kp, kx2, kp2 = jax.random.split(key, 5)
    x = jax.random.normal(kx, (B, in_dim, H, W), jnp.float32)
    emb = jax.random.normal(ke, (B, emb_dim), jnp.float32)
    params = init_params(kp, in_dim, out_dim, emb_dim, kernel_size=3,
                         adaptive_scale=True)

    fwd = jax.jit(functools.partial(residual_block_forward, num_groups=4,
                                    adaptive_scale=True, tile_rows=8))
    out = jax.block_until_ready(fwd(params, x, emb))
    assert out.shape == (B, out_dim, H, W)
    ref = jax.block_until_ready(reference_forward(params, x, emb))
    np.testing.assert_allclose(np.asarray(out), np.asarray(ref),
                               rtol=3e-2, atol=3e-2)

    # config 2: in_dim == out_dim (identity residual, 1x1 matmul skipped),
    # 4 row tiles to exercise the cross-tile GroupNorm stats combination.
    x2 = jax.random.normal(kx2, (B, out_dim, H, W), jnp.float32)
    params2 = init_params(kp2, out_dim, out_dim, emb_dim, kernel_size=3,
                          adaptive_scale=True)
    fwd2 = jax.jit(functools.partial(residual_block_forward, num_groups=4,
                                     adaptive_scale=True, tile_rows=4))
    out2 = jax.block_until_ready(fwd2(params2, x2, emb))
    ref2 = jax.block_until_ready(reference_forward(params2, x2, emb))
    np.testing.assert_allclose(np.asarray(out2), np.asarray(ref2),
                               rtol=3e-2, atol=3e-2)

    print("KERNEL_OK")
</pallas_src>

<mosaic_0001>
module attributes {stable_mosaic.version = 11 : i64} {
  func.func @kernel(%arg0: i32, %arg1: i32, %arg2: memref<1x10x18x128xbf16, #tpu.memory_space<vmem>>, %arg3: memref<3x3x128x128xbf16, #tpu.memory_space<vmem>>, %arg4: memref<1x128xf32, #tpu.memory_space<vmem>>, %arg5: memref<128x4xf32, #tpu.memory_space<vmem>>, %arg6: memref<4x128xf32, #tpu.memory_space<vmem>>, %arg7: memref<1x128x128xf32, #tpu.memory_space<vmem>>, %arg8: memref<1x2x4xf32, #tpu.memory_space<vmem>>) attributes {dimension_semantics = [#tpu.dimension_semantics<parallel>, #tpu.dimension_semantics<arbitrary>], iteration_bounds = array<i64: 2, 2>, scalar_prefetch = 0 : i64, scratch_operands = 0 : i64, tpu.core_type = #tpu.core_type<tc>, window_params = [{transform_indices = @transform_0, window_bounds = array<i64: 1, 10, 18, 128>}, {pipeline_mode = #tpu.pipeline_mode<synchronous>, transform_indices = @transform_1, window_bounds = array<i64: 3, 3, 128, 128>}, {pipeline_mode = #tpu.pipeline_mode<synchronous>, transform_indices = @transform_2, window_bounds = array<i64: 1, 128>}, {pipeline_mode = #tpu.pipeline_mode<synchronous>, transform_indices = @transform_3, window_bounds = array<i64: 128, 4>}, {pipeline_mode = #tpu.pipeline_mode<synchronous>, transform_indices = @transform_4, window_bounds = array<i64: 4, 128>}, {transform_indices = @transform_5, window_bounds = array<i64: 1, 128, 128>}, {transform_indices = @transform_6, window_bounds = array<i64: 1, 2, 4>}]} {
    %cst = arith.constant 0.000000e+00 : f32
    %0 = vector.broadcast %cst : f32 to vector<128x128xf32>
    %c0 = arith.constant 0 : index
    %c0_0 = arith.constant 0 : index
    %c0_1 = arith.constant 0 : index
    %c0_2 = arith.constant 0 : index
    %1 = vector.load %arg2[%c0, %c0_0, %c0_1, %c0_2] : memref<1x10x18x128xbf16, #tpu.memory_space<vmem>>, vector<1x8x16x128xbf16>
    %2 = vector.shape_cast %1 : vector<1x8x16x128xbf16> to vector<8x16x128xbf16>
    %3 = vector.shape_cast %2 : vector<8x16x128xbf16> to vector<128x128xbf16>
    %c0_3 = arith.constant 0 : index
    %c0_4 = arith.constant 0 : index
    %c0_5 = arith.constant 0 : index
    %c0_6 = arith.constant 0 : index
    %4 = vector.load %arg3[%c0_3, %c0_4, %c0_5, %c0_6] : memref<3x3x128x128xbf16, #tpu.memory_space<vmem>>, vector<1x1x128x128xbf16>
    %5 = vector.shape_cast %4 : vector<1x1x128x128xbf16> to vector<128x128xbf16>
    %cst_7 = arith.constant dense<0.000000e+00> : vector<128x128xf32>
    %6 = tpu.matmul %3, %5, %cst_7 {dimension_numbers = #tpu.dot_dimension_numbers<[1], [0], [0], [1], [0, 0, 1, 1], [], []>} : vector<128x128xbf16>, vector<128x128xbf16>, vector<128x128xf32> -> vector<128x128xf32>
    %7 = arith.addf %0, %6 : vector<128x128xf32>
    %c0_8 = arith.constant 0 : index
    %c0_9 = arith.constant 0 : index
    %c1 = arith.constant 1 : index
    %c0_10 = arith.constant 0 : index
    %8 = vector.load %arg2[%c0_8, %c0_9, %c1, %c0_10] : memref<1x10x18x128xbf16, #tpu.memory_space<vmem>>, vector<1x8x16x128xbf16>
    %9 = vector.shape_cast %8 : vector<1x8x16x128xbf16> to vector<8x16x128xbf16>
    %10 = vector.shape_cast %9 : vector<8x16x128xbf16> to vector<128x128xbf16>
    %c0_11 = arith.constant 0 : index
    %c1_12 = arith.constant 1 : index
    %c0_13 = arith.constant 0 : index
    %c0_14 = arith.constant 0 : index
    %11 = vector.load %arg3[%c0_11, %c1_12, %c0_13, %c0_14] : memref<3x3x128x128xbf16, #tpu.memory_space<vmem>>, vector<1x1x128x128xbf16>
    %12 = vector.shape_cast %11 : vector<1x1x128x128xbf16> to vector<128x128xbf16>
    %cst_15 = arith.constant dense<0.000000e+00> : vector<128x128xf32>
    %13 = tpu.matmul %10, %12, %cst_15 {dimension_numbers = #tpu.dot_dimension_numbers<[1], [0], [0], [1], [0, 0, 1, 1], [], []>} : vector<128x128xbf16>, vector<128x128xbf16>, vector<128x128xf32> -> vector<128x128xf32>
    %14 = arith.addf %7, %13 : vector<128x128xf32>
    %c0_16 = arith.constant 0 : index
    %c0_17 = arith.constant 0 : index
    %c2 = arith.constant 2 : index
    %c0_18 = arith.constant 0 : index
    %15 = vector.load %arg2[%c0_16, %c0_17, %c2, %c0_18] : memref<1x10x18x128xbf16, #tpu.memory_space<vmem>>, vector<1x8x16x128xbf16>
    %16 = vector.shape_cast %15 : vector<1x8x16x128xbf16> to vector<8x16x128xbf16>
    %17 = vector.shape_cast %16 : vector<8x16x128xbf16> to vector<128x128xbf16>
    %c0_19 = arith.constant 0 : index
    %c2_20 = arith.constant 2 : index
    %c0_21 = arith.constant 0 : index
    %c0_22 = arith.constant 0 : index
    %18 = vector.load %arg3[%c0_19, %c2_20, %c0_21, %c0_22] : memref<3x3x128x128xbf16, #tpu.memory_space<vmem>>, vector<1x1x128x128xbf16>
    %19 = vector.shape_cast %18 : vector<1x1x128x128xbf16> to vector<128x128xbf16>
    %cst_23 = arith.constant dense<0.000000e+00> : vector<128x128xf32>
    %20 = tpu.matmul %17, %19, %cst_23 {dimension_numbers = #tpu.dot_dimension_numbers<[1], [0], [0], [1], [0, 0, 1, 1], [], []>} : vector<128x128xbf16>, vector<128x128xbf16>, vector<128x128xf32> -> vector<128x128xf32>
    %21 = arith.addf %14, %20 : vector<128x128xf32>
    %c0_24 = arith.constant 0 : index
    %c1_25 = arith.constant 1 : index
    %c0_26 = arith.constant 0 : index
    %c0_27 = arith.constant 0 : index
    %22 = vector.load %arg2[%c0_24, %c1_25, %c0_26, %c0_27] : memref<1x10x18x128xbf16, #tpu.memory_space<vmem>>, vector<1x8x16x128xbf16>
    %23 = vector.shape_cast %22 : vector<1x8x16x128xbf16> to vector<8x16x128xbf16>
    %24 = vector.shape_cast %23 : vector<8x16x128xbf16> to vector<128x128xbf16>
    %c1_28 = arith.constant 1 : index
    %c0_29 = arith.constant 0 : index
    %c0_30 = arith.constant 0 : index
    %c0_31 = arith.constant 0 : index
    %25 = vector.load %arg3[%c1_28, %c0_29, %c0_30, %c0_31] : memref<3x3x128x128xbf16, #tpu.memory_space<vmem>>, vector<1x1x128x128xbf16>
    %26 = vector.shape_cast %25 : vector<1x1x128x128xbf16> to vector<128x128xbf16>
    %cst_32 = arith.constant dense<0.000000e+00> : vector<128x128xf32>
    %27 = tpu.matmul %24, %26, %cst_32 {dimension_numbers = #tpu.dot_dimension_numbers<[1], [0], [0], [1], [0, 0, 1, 1], [], []>} : vector<128x128xbf16>, vector<128x128xbf16>, vector<128x128xf32> -> vector<128x128xf32>
    %28 = arith.addf %21, %27 : vector<128x128xf32>
    %c0_33 = arith.constant 0 : index
    %c1_34 = arith.constant 1 : index
    %c1_35 = arith.constant 1 : index
    %c0_36 = arith.constant 0 : index
    %29 = vector.load %arg2[%c0_33, %c1_34, %c1_35, %c0_36] : memref<1x10x18x128xbf16, #tpu.memory_space<vmem>>, vector<1x8x16x128xbf16>
    %30 = vector.shape_cast %29 : vector<1x8x16x128xbf16> to vector<8x16x128xbf16>
    %31 = vector.shape_cast %30 : vector<8x16x128xbf16> to vector<128x128xbf16>
    %c1_37 = arith.constant 1 : index
    %c1_38 = arith.constant 1 : index
    %c0_39 = arith.constant 0 : index
    %c0_40 = arith.constant 0 : index
    %32 = vector.load %arg3[%c1_37, %c1_38, %c0_39, %c0_40] : memref<3x3x128x128xbf16, #tpu.memory_space<vmem>>, vector<1x1x128x128xbf16>
    %33 = vector.shape_cast %32 : vector<1x1x128x128xbf16> to vector<128x128xbf16>
    %cst_41 = arith.constant dense<0.000000e+00> : vector<128x128xf32>
    %34 = tpu.matmul %31, %33, %cst_41 {dimension_numbers = #tpu.dot_dimension_numbers<[1], [0], [0], [1], [0, 0, 1, 1], [], []>} : vector<128x128xbf16>, vector<128x128xbf16>, vector<128x128xf32> -> vector<128x128xf32>
    %35 = arith.addf %28, %34 : vector<128x128xf32>
    %c0_42 = arith.constant 0 : index
    %c1_43 = arith.constant 1 : index
    %c2_44 = arith.constant 2 : index
    %c0_45 = arith.constant 0 : index
    %36 = vector.load %arg2[%c0_42, %c1_43, %c2_44, %c0_45] : memref<1x10x18x128xbf16, #tpu.memory_space<vmem>>, vector<1x8x16x128xbf16>
    %37 = vector.shape_cast %36 : vector<1x8x16x128xbf16> to vector<8x16x128xbf16>
    %38 = vector.shape_cast %37 : vector<8x16x128xbf16> to vector<128x128xbf16>
    %c1_46 = arith.constant 1 : index
    %c2_47 = arith.constant 2 : index
    %c0_48 = arith.constant 0 : index
    %c0_49 = arith.constant 0 : index
    %39 = vector.load %arg3[%c1_46, %c2_47, %c0_48, %c0_49] : memref<3x3x128x128xbf16, #tpu.memory_space<vmem>>, vector<1x1x128x128xbf16>
    %40 = vector.shape_cast %39 : vector<1x1x128x128xbf16> to vector<128x128xbf16>
    %cst_50 = arith.constant dense<0.000000e+00> : vector<128x128xf32>
    %41 = tpu.matmul %38, %40, %cst_50 {dimension_numbers = #tpu.dot_dimension_numbers<[1], [0], [0], [1], [0, 0, 1, 1], [], []>} : vector<128x128xbf16>, vector<128x128xbf16>, vector<128x128xf32> -> vector<128x128xf32>
    %42 = arith.addf %35, %41 : vector<128x128xf32>
    %c0_51 = arith.constant 0 : index
    %c2_52 = arith.constant 2 : index
    %c0_53 = arith.constant 0 : index
    %c0_54 = arith.constant 0 : index
    %43 = vector.load %arg2[%c0_51, %c2_52, %c0_53, %c0_54] : memref<1x10x18x128xbf16, #tpu.memory_space<vmem>>, vector<1x8x16x128xbf16>
    %44 = vector.shape_cast %43 : vector<1x8x16x128xbf16> to vector<8x16x128xbf16>
    %45 = vector.shape_cast %44 : vector<8x16x128xbf16> to vector<128x128xbf16>
    %c2_55 = arith.constant 2 : index
    %c0_56 = arith.constant 0 : index
    %c0_57 = arith.constant 0 : index
    %c0_58 = arith.constant 0 : index
    %46 = vector.load %arg3[%c2_55, %c0_56, %c0_57, %c0_58] : memref<3x3x128x128xbf16, #tpu.memory_space<vmem>>, vector<1x1x128x128xbf16>
    %47 = vector.shape_cast %46 : vector<1x1x128x128xbf16> to vector<128x128xbf16>
    %cst_59 = arith.constant dense<0.000000e+00> : vector<128x128xf32>
    %48 = tpu.matmul %45, %47, %cst_59 {dimension_numbers = #tpu.dot_dimension_numbers<[1], [0], [0], [1], [0, 0, 1, 1], [], []>} : vector<128x128xbf16>, vector<128x128xbf16>, vector<128x128xf32> -> vector<128x128xf32>
    %49 = arith.addf %42, %48 : vector<128x128xf32>
    %c0_60 = arith.constant 0 : index
    %c2_61 = arith.constant 2 : index
    %c1_62 = arith.constant 1 : index
    %c0_63 = arith.constant 0 : index
    %50 = vector.load %arg2[%c0_60, %c2_61, %c1_62, %c0_63] : memref<1x10x18x128xbf16, #tpu.memory_space<vmem>>, vector<1x8x16x128xbf16>
    %51 = vector.shape_cast %50 : vector<1x8x16x128xbf16> to vector<8x16x128xbf16>
    %52 = vector.shape_cast %51 : vector<8x16x128xbf16> to vector<128x128xbf16>
    %c2_64 = arith.constant 2 : index
    %c1_65 = arith.constant 1 : index
    %c0_66 = arith.constant 0 : index
    %c0_67 = arith.constant 0 : index
    %53 = vector.load %arg3[%c2_64, %c1_65, %c0_66, %c0_67] : memref<3x3x128x128xbf16, #tpu.memory_space<vmem>>, vector<1x1x128x128xbf16>
    %54 = vector.shape_cast %53 : vector<1x1x128x128xbf16> to vector<128x128xbf16>
    %cst_68 = arith.constant dense<0.000000e+00> : vector<128x128xf32>
    %55 = tpu.matmul %52, %54, %cst_68 {dimension_numbers = #tpu.dot_dimension_numbers<[1], [0], [0], [1], [0, 0, 1, 1], [], []>} : vector<128x128xbf16>, vector<128x128xbf16>, vector<128x128xf32> -> vector<128x128xf32>
    %56 = arith.addf %49, %55 : vector<128x128xf32>
    %c0_69 = arith.constant 0 : index
    %c2_70 = arith.constant 2 : index
    %c2_71 = arith.constant 2 : index
    %c0_72 = arith.constant 0 : index
    %57 = vector.load %arg2[%c0_69, %c2_70, %c2_71, %c0_72] : memref<1x10x18x128xbf16, #tpu.memory_space<vmem>>, vector<1x8x16x128xbf16>
    %58 = vector.shape_cast %57 : vector<1x8x16x128xbf16> to vector<8x16x128xbf16>
    %59 = vector.shape_cast %58 : vector<8x16x128xbf16> to vector<128x128xbf16>
    %c2_73 = arith.constant 2 : index
    %c2_74 = arith.constant 2 : index
    %c0_75 = arith.constant 0 : index
    %c0_76 = arith.constant 0 : index
    %60 = vector.load %arg3[%c2_73, %c2_74, %c0_75, %c0_76] : memref<3x3x128x128xbf16, #tpu.memory_space<vmem>>, vector<1x1x128x128xbf16>
    %61 = vector.shape_cast %60 : vector<1x1x128x128xbf16> to vector<128x128xbf16>
    %cst_77 = arith.constant dense<0.000000e+00> : vector<128x128xf32>
    %62 = tpu.matmul %59, %61, %cst_77 {dimension_numbers = #tpu.dot_dimension_numbers<[1], [0], [0], [1], [0, 0, 1, 1], [], []>} : vector<128x128xbf16>, vector<128x128xbf16>, vector<128x128xf32> -> vector<128x128xf32>
    %63 = arith.addf %56, %62 : vector<128x128xf32>
    %c0_78 = arith.constant 0 : index
    %c0_79 = arith.constant 0 : index
    %64 = vector.load %arg4[%c0_78, %c0_79] : memref<1x128xf32, #tpu.memory_space<vmem>>, vector<1x128xf32>
    %65 = vector.broadcast %64 : vector<1x128xf32> to vector<128x128xf32>
    %66 = arith.addf %63, %65 : vector<128x128xf32>
    %c0_80 = arith.constant 0 : index
    %c0_81 = arith.constant 0 : index
    %c0_82 = arith.constant 0 : index
    %67 = vector.load %arg7[%c0_80, %c0_81, %c0_82] : memref<1x128x128xf32, #tpu.memory_space<vmem>>, vector<1x128x128xf32>
    %68 = vector.shape_cast %67 : vector<1x128x128xf32> to vector<128x128xf32>
    %69 = vector.shape_cast %66 : vector<128x128xf32> to vector<1x128x128xf32>
    tpu.vector_store %arg7[%c0_80, %c0_81, %c0_82], %69 {strides = array<i32>} : memref<1x128x128xf32, #tpu.memory_space<vmem>>, vector<1x128x128xf32>,
    %cst_83 = arith.constant dense<0.000000e+00> : vector<128xf32>
    %70 = vector.multi_reduction <add>, %66, %cst_83 [0] : vector<128x128xf32> to vector<128xf32>
    %71 = vector.shape_cast %70 : vector<128xf32> to vector<1x128xf32>
    %c0_84 = arith.constant 0 : index
    %c0_85 = arith.constant 0 : index
    %72 = vector.load %arg5[%c0_84, %c0_85] : memref<128x4xf32, #tpu.memory_space<vmem>>, vector<128x4xf32>
    %cst_86 = arith.constant dense<0.000000e+00> : vector<1x4xf32>
    %73 = tpu.matmul %71, %72, %cst_86 {dimension_numbers = #tpu.dot_dimension_numbers<[1], [0], [0], [1], [0, 0, 1, 1], [], []>} : vector<1x128xf32>, vector<128x4xf32>, vector<1x4xf32> -> vector<1x4xf32>
    %cst_87 = arith.constant 3.906250e-03 : f32
    %74 = vector.broadcast %cst_87 : f32 to vector<1x4xf32>
    %75 = arith.mulf %73, %74 : vector<1x4xf32>
    %c0_88 = arith.constant 0 : index
    %c0_89 = arith.constant 0 : index
    %76 = vector.load %arg6[%c0_88, %c0_89] : memref<4x128xf32, #tpu.memory_space<vmem>>, vector<4x128xf32>
    %cst_90 = arith.constant dense<0.000000e+00> : vector<1x128xf32>
    %77 = tpu.matmul %75, %76, %cst_90 {dimension_numbers = #tpu.dot_dimension_numbers<[1], [0], [0], [1], [0, 0, 1, 1], [], []>} : vector<1x4xf32>, vector<4x128xf32>, vector<1x128xf32> -> vector<1x128xf32>
    %78 = vector.broadcast %77 : vector<1x128xf32> to vector<128x128xf32>
    %79 = arith.subf %66, %78 : vector<128x128xf32>
    %80 = arith.mulf %79, %79 : vector<128x128xf32>
    %cst_91 = arith.constant dense<0.000000e+00> : vector<128xf32>
    %81 = vector.multi_reduction <add>, %80, %cst_91 [0] : vector<128x128xf32> to vector<128xf32>
    %82 = vector.shape_cast %81 : vector<128xf32> to vector<1x128xf32>
    %c0_92 = arith.constant 0 : index
    %c0_93 = arith.constant 0 : index
    %83 = vector.load %arg5[%c0_92, %c0_93] : memref<128x4xf32, #tpu.memory_space<vmem>>, vector<128x4xf32>
    %cst_94 = arith.constant dense<0.000000e+00> : vector<1x4xf32>
    %84 = tpu.matmul %82, %83, %cst_94 {dimension_numbers = #tpu.dot_dimension_numbers<[1], [0], [0], [1], [0, 0, 1, 1], [], []>} : vector<1x128xf32>, vector<128x4xf32>, vector<1x4xf32> -> vector<1x4xf32>
    %c0_i32 = arith.constant 0 : i32
    %85 = arith.cmpi eq, %arg1, %c0_i32 : i32
    %86 = arith.extui %85 : i1 to i32
    %c0_i32_95 = arith.constant 0 : i32
    %87 = arith.cmpi ne, %86, %c0_i32_95 : i32
    scf.if %87 {
      %cst_114 = arith.constant 0.000000e+00 : f32
      %116 = vector.broadcast %cst_114 : f32 to vector<2x4xf32>
      %c0_115 = arith.constant 0 : index
      %c0_116 = arith.constant 0 : index
      %c0_117 = arith.constant 0 : index
      %117 = vector.load %arg8[%c0_115, %c0_116, %c0_117] : memref<1x2x4xf32, #tpu.memory_space<vmem>>, vector<1x2x4xf32>
      %118 = vector.shape_cast %117 : vector<1x2x4xf32> to vector<2x4xf32>
      %119 = vector.shape_cast %116 : vector<2x4xf32> to vector<1x2x4xf32>
      tpu.vector_store %arg8[%c0_115, %c0_116, %c0_117], %119 {strides = array<i32>} : memref<1x2x4xf32, #tpu.memory_space<vmem>>, vector<1x2x4xf32>,
    } else {
    }
    %c0_96 = arith.constant 0 : index
    %c0_97 = arith.constant 0 : index
    %c0_98 = arith.constant 0 : index
    %88 = vector.load %arg8[%c0_96, %c0_97, %c0_98] : memref<1x2x4xf32, #tpu.memory_space<vmem>>, vector<1x1x4xf32>
    %89 = vector.shape_cast %88 : vector<1x1x4xf32> to vector<1x4xf32>
    %c0_99 = arith.constant 0 : index
    %c1_100 = arith.constant 1 : index
    %c0_101 = arith.constant 0 : index
    %90 = vector.load %arg8[%c0_99, %c1_100, %c0_101] : memref<1x2x4xf32, #tpu.memory_space<vmem>>, vector<1x1x4xf32>
    %91 = vector.shape_cast %90 : vector<1x1x4xf32> to vector<1x4xf32>
    %92 = arith.sitofp %arg1 : i32 to f32
    %cst_102 = arith.constant 2.560000e+02 : f32
    %93 = arith.mulf %92, %cst_102 : f32
    %cst_103 = arith.constant 2.560000e+02 : f32
    %94 = arith.addf %93, %cst_103 : f32
    %cst_104 = arith.constant 1.000000e+00 : f32
    %95 = arith.maximumf %93, %cst_104 : f32
    %96 = vector.broadcast %95 : f32 to vector<1x4xf32>
    %97 = arith.divf %89, %96 : vector<1x4xf32>
    %c0_i32_105 = arith.constant 0 : i32
    %98 = arith.cmpi eq, %arg1, %c0_i32_105 : i32
    %99 = arith.subf %75, %97 : vector<1x4xf32>
    %cst_106 = arith.constant 0.000000e+00 : f32
    %100 = vector.broadcast %cst_106 : f32 to vector<1x4xf32>
    %101 = arith.select %98, %100, %99 : vector<1x4xf32>
    %102 = arith.addf %89, %73 : vector<1x4xf32>
    %c0_107 = arith.constant 0 : index
    %c0_108 = arith.constant 0 : index
    %c0_109 = arith.constant 0 : index
    %103 = vector.load %arg8[%c0_107, %c0_108, %c0_109] : memref<1x2x4xf32, #tpu.memory_space<vmem>>, vector<1x1x4xf32>
    %104 = vector.shape_cast %103 : vector<1x1x4xf32> to vector<1x4xf32>
    %105 = vector.shape_cast %102 : vector<1x4xf32> to vector<1x1x4xf32>
    tpu.vector_store %arg8[%c0_107, %c0_108, %c0_109], %105 {strides = array<i32>} : memref<1x2x4xf32, #tpu.memory_space<vmem>>, vector<1x1x4xf32>,
    %106 = arith.addf %91, %84 : vector<1x4xf32>
    %107 = arith.mulf %101, %101 : vector<1x4xf32>
    %cst_110 = arith.constant 2.560000e+02 : f32
    %108 = arith.mulf %93, %cst_110 : f32
    %109 = arith.divf %108, %94 : f32
    %110 = vector.broadcast %109 : f32 to vector<1x4xf32>
    %111 = arith.mulf %107, %110 : vector<1x4xf32>
    %112 = arith.addf %106, %111 : vector<1x4xf32>
    %c0_111 = arith.constant 0 : index
    %c1_112 = arith.constant 1 : index
    %c0_113 = arith.constant 0 : index
    %113 = vector.load %arg8[%c0_111, %c1_112, %c0_113] : memref<1x2x4xf32, #tpu.memory_space<vmem>>, vector<1x1x4xf32>
    %114 = vector.shape_cast %113 : vector<1x1x4xf32> to vector<1x4xf32>
    %115 = vector.shape_cast %112 : vector<1x4xf32> to vector<1x1x4xf32>
    tpu.vector_store %arg8[%c0_111, %c1_112, %c0_113], %115 {strides = array<i32>} : memref<1x2x4xf32, #tpu.memory_space<vmem>>, vector<1x1x4xf32>,
    return
  }
  func.func @transform_0(%arg0: i32, %arg1: i32) -> (i32, i32, i32, i32) {
    %c2_i32 = arith.constant 2 : i32
    %0 = arith.muli %arg0, %c2_i32 : i32
    %1 = arith.addi %0, %arg1 : i32
    %c0_i32 = arith.constant 0 : i32
    %c0_i32_0 = arith.constant 0 : i32
    %c0_i32_1 = arith.constant 0 : i32
    %c0_i32_2 = arith.constant 0 : i32
    return %1, %c0_i32, %c0_i32_0, %c0_i32_1 : i32, i32, i32, i32
  }
  func.func @transform_1(%arg0: i32, %arg1: i32) -> (i32, i32, i32, i32) {
    %c0_i32 = arith.constant 0 : i32
    %c0_i32_0 = arith.constant 0 : i32
    %c0_i32_1 = arith.constant 0 : i32
    %c0_i32_2 = arith.constant 0 : i32
    %c0_i32_3 = arith.constant 0 : i32
    return %c0_i32, %c0_i32_0, %c0_i32_1, %c0_i32_2 : i32, i32, i32, i32
  }
  func.func @transform_2(%arg0: i32, %arg1: i32) -> (i32, i32) {
    %c0_i32 = arith.constant 0 : i32
    %c0_i32_0 = arith.constant 0 : i32
    %c0_i32_1 = arith.constant 0 : i32
    return %c0_i32, %c0_i32_0 : i32, i32
  }
  func.func @transform_3(%arg0: i32, %arg1: i32) -> (i32, i32) {
    %c0_i32 = arith.constant 0 : i32
    %c0_i32_0 = arith.constant 0 : i32
    %c0_i32_1 = arith.constant 0 : i32
    return %c0_i32, %c0_i32_0 : i32, i32
  }
  func.func @transform_4(%arg0: i32, %arg1: i32) -> (i32, i32) {
    %c0_i32 = arith.constant 0 : i32
    %c0_i32_0 = arith.constant 0 : i32
    %c0_i32_1 = arith.constant 0 : i32
    return %c0_i32, %c0_i32_0 : i32, i32
  }
  func.func @transform_5(%arg0: i32, %arg1: i32) -> (i32, i32, i32) {
    %c0_i32 = arith.constant 0 : i32
    %c0_i32_0 = arith.constant 0 : i32
    return %arg0, %arg1, %c0_i32 : i32, i32, i32
  }
  func.func @transform_6(%arg0: i32, %arg1: i32) -> (i32, i32, i32) {
    %c0_i32 = arith.constant 0 : i32
    %c0_i32_0 = arith.constant 0 : i32
    %c0_i32_1 = arith.constant 0 : i32
    return %arg0, %c0_i32, %c0_i32_0 : i32, i32, i32
  }
}

module attributes {stable_mosaic.version = 11 : i64} {
  func.func @kernel(%arg0: i32, %arg1: i32, %arg2: memref<1x128x128xf32, #tpu.memory_space<vmem>>, %arg3: memref<1x2x4xf32, #tpu.memory_space<vmem>>, %arg4: memref<1x128xf32, #tpu.memory_space<vmem>>, %arg5: memref<1x128xf32, #tpu.memory_space<vmem>>, %arg6: memref<4x128xf32, #tpu.memory_space<vmem>>, %arg7: memref<1x1x128xf32, #tpu.memory_space<vmem>>, %arg8: memref<1x1x128xf32, #tpu.memory_space<vmem>>, %arg9: memref<1x128x128xbf16, #tpu.memory_space<vmem>>) attributes {dimension_semantics = [#tpu.dimension_semantics<parallel>, #tpu.dimension_semantics<parallel>], iteration_bounds = array<i64: 2, 2>, scalar_prefetch = 0 : i64, scratch_operands = 0 : i64, tpu.core_type = #tpu.core_type<tc>, window_params = [{transform_indices = @transform_0, window_bounds = array<i64: 1, 128, 128>}, {transform_indices = @transform_1, window_bounds = array<i64: 1, 2, 4>}, {pipeline_mode = #tpu.pipeline_mode<synchronous>, transform_indices = @transform_2, window_bounds = array<i64: 1, 128>}, {pipeline_mode = #tpu.pipeline_mode<synchronous>, transform_indices = @transform_3, window_bounds = array<i64: 1, 128>}, {pipeline_mode = #tpu.pipeline_mode<synchronous>, transform_indices = @transform_4, window_bounds = array<i64: 4, 128>}, {transform_indices = @transform_5, window_bounds = array<i64: 1, 1, 128>}, {transform_indices = @transform_6, window_bounds = array<i64: 1, 1, 128>}, {transform_indices = @transform_7, window_bounds = array<i64: 1, 128, 128>}]} {
    %c0 = arith.constant 0 : index
    %c0_0 = arith.constant 0 : index
    %c0_1 = arith.constant 0 : index
    %0 = vector.load %arg3[%c0, %c0_0, %c0_1] : memref<1x2x4xf32, #tpu.memory_space<vmem>>, vector<1x1x4xf32>
    %1 = vector.shape_cast %0 : vector<1x1x4xf32> to vector<1x4xf32>
    %cst = arith.constant 0.001953125 : f32
    %2 = vector.broadcast %cst : f32 to vector<1x4xf32>
    %3 = arith.mulf %1, %2 : vector<1x4xf32>
    %c0_2 = arith.constant 0 : index
    %c1 = arith.constant 1 : index
    %c0_3 = arith.constant 0 : index
    %4 = vector.load %arg3[%c0_2, %c1, %c0_3] : memref<1x2x4xf32, #tpu.memory_space<vmem>>, vector<1x1x4xf32>
    %5 = vector.shape_cast %4 : vector<1x1x4xf32> to vector<1x4xf32>
    %cst_4 = arith.constant 0.001953125 : f32
    %6 = vector.broadcast %cst_4 : f32 to vector<1x4xf32>
    %7 = arith.mulf %5, %6 : vector<1x4xf32>
    %cst_5 = arith.constant 9.99999997E-7 : f32
    %8 = vector.broadcast %cst_5 : f32 to vector<1x4xf32>
    %9 = arith.addf %7, %8 : vector<1x4xf32>
    %10 = math.rsqrt %9 : vector<1x4xf32>
    %c0_6 = arith.constant 0 : index
    %c0_7 = arith.constant 0 : index
    %11 = vector.load %arg6[%c0_6, %c0_7] : memref<4x128xf32, #tpu.memory_space<vmem>>, vector<4x128xf32>
    %cst_8 = arith.constant dense<0.000000e+00> : vector<1x128xf32>
    %12 = tpu.matmul %3, %11, %cst_8 {dimension_numbers = #tpu.dot_dimension_numbers<[1], [0], [0], [1], [0, 0, 1, 1], [], []>} : vector<1x4xf32>, vector<4x128xf32>, vector<1x128xf32> -> vector<1x128xf32>
    %c0_9 = arith.constant 0 : index
    %c0_10 = arith.constant 0 : index
    %13 = vector.load %arg6[%c0_9, %c0_10] : memref<4x128xf32, #tpu.memory_space<vmem>>, vector<4x128xf32>
    %cst_11 = arith.constant dense<0.000000e+00> : vector<1x128xf32>
    %14 = tpu.matmul %10, %13, %cst_11 {dimension_numbers = #tpu.dot_dimension_numbers<[1], [0], [0], [1], [0, 0, 1, 1], [], []>} : vector<1x4xf32>, vector<4x128xf32>, vector<1x128xf32> -> vector<1x128xf32>
    %c0_12 = arith.constant 0 : index
    %c0_13 = arith.constant 0 : index
    %c0_14 = arith.constant 0 : index
    %15 = vector.load %arg2[%c0_12, %c0_13, %c0_14] : memref<1x128x128xf32, #tpu.memory_space<vmem>>, vector<1x128x128xf32>
    %16 = vector.shape_cast %15 : vector<1x128x128xf32> to vector<128x128xf32>
    %17 = vector.broadcast %12 : vector<1x128xf32> to vector<128x128xf32>
    %18 = arith.subf %16, %17 : vector<128x128xf32>
    %c0_15 = arith.constant 0 : index
    %c0_16 = arith.constant 0 : index
    %19 = vector.load %arg4[%c0_15, %c0_16] : memref<1x128xf32, #tpu.memory_space<vmem>>, vector<1x128xf32>
    %20 = arith.mulf %14, %19 : vector<1x128xf32>
    %21 = vector.broadcast %20 : vector<1x128xf32> to vector<128x128xf32>
    %22 = arith.mulf %18, %21 : vector<128x128xf32>
    %c0_17 = arith.constant 0 : index
    %c0_18 = arith.constant 0 : index
    %23 = vector.load %arg5[%c0_17, %c0_18] : memref<1x128xf32, #tpu.memory_space<vmem>>, vector<1x128xf32>
    %24 = vector.broadcast %23 : vector<1x128xf32> to vector<128x128xf32>
    %25 = arith.addf %22, %24 : vector<128x128xf32>
    %cst_19 = arith.constant 2.000000e+01 : f32
    %26 = vector.broadcast %cst_19 : f32 to vector<128x128xf32>
    %27 = arith.minimumf %25, %26 : vector<128x128xf32>
    %28 = math.exp %27 : vector<128x128xf32>
    %cst_20 = arith.constant 1.000000e+00 : f32
    %29 = vector.broadcast %cst_20 : f32 to vector<128x128xf32>
    %30 = arith.addf %29, %28 : vector<128x128xf32>
    %31 = arith.mulf %30, %30 : vector<128x128xf32>
    %cst_21 = arith.constant 1.000000e+00 : f32
    %32 = vector.broadcast %cst_21 : f32 to vector<128x128xf32>
    %33 = arith.addf %31, %32 : vector<128x128xf32>
    %34 = tpu.reciprocal %33 {approx = true} : vector<128x128xf32> -> vector<128x128xf32>
    %cst_22 = arith.constant 2.000000e+00 : f32
    %35 = vector.broadcast %cst_22 : f32 to vector<128x128xf32>
    %36 = arith.mulf %35, %34 : vector<128x128xf32>
    %cst_23 = arith.constant 1.000000e+00 : f32
    %37 = vector.broadcast %cst_23 : f32 to vector<128x128xf32>
    %38 = arith.subf %37, %36 : vector<128x128xf32>
    %39 = arith.mulf %25, %38 : vector<128x128xf32>
    %c0_24 = arith.constant 0 : index
    %c0_25 = arith.constant 0 : index
    %c0_26 = arith.constant 0 : index
    %40 = vector.load %arg7[%c0_24, %c0_25, %c0_26] : memref<1x1x128xf32, #tpu.memory_space<vmem>>, vector<1x1x128xf32>
    %41 = vector.shape_cast %40 : vector<1x1x128xf32> to vector<1x128xf32>
    %42 = vector.broadcast %41 : vector<1x128xf32> to vector<128x128xf32>
    %43 = arith.mulf %39, %42 : vector<128x128xf32>
    %c0_27 = arith.constant 0 : index
    %c0_28 = arith.constant 0 : index
    %c0_29 = arith.constant 0 : index
    %44 = vector.load %arg8[%c0_27, %c0_28, %c0_29] : memref<1x1x128xf32, #tpu.memory_space<vmem>>, vector<1x1x128xf32>
    %45 = vector.shape_cast %44 : vector<1x1x128xf32> to vector<1x128xf32>
    %46 = vector.broadcast %45 : vector<1x128xf32> to vector<128x128xf32>
    %47 = arith.addf %43, %46 : vector<128x128xf32>
    %48 = arith.truncf %47 : vector<128x128xf32> to vector<128x128xbf16>
    %c0_30 = arith.constant 0 : index
    %c0_31 = arith.constant 0 : index
    %c0_32 = arith.constant 0 : index
    %49 = vector.load %arg9[%c0_30, %c0_31, %c0_32] : memref<1x128x128xbf16, #tpu.memory_space<vmem>>, vector<1x128x128xbf16>
    %50 = vector.shape_cast %49 : vector<1x128x128xbf16> to vector<128x128xbf16>
    %51 = vector.shape_cast %48 : vector<128x128xbf16> to vector<1x128x128xbf16>
    tpu.vector_store %arg9[%c0_30, %c0_31, %c0_32], %51 {strides = array<i32>} : memref<1x128x128xbf16, #tpu.memory_space<vmem>>, vector<1x128x128xbf16>,
    return
  }
  func.func @transform_0(%arg0: i32, %arg1: i32) -> (i32, i32, i32) {
    %c0_i32 = arith.constant 0 : i32
    %c0_i32_0 = arith.constant 0 : i32
    return %arg0, %arg1, %c0_i32 : i32, i32, i32
  }
  func.func @transform_1(%arg0: i32, %arg1: i32) -> (i32, i32, i32) {
    %c0_i32 = arith.constant 0 : i32
    %c0_i32_0 = arith.constant 0 : i32
    %c0_i32_1 = arith.constant 0 : i32
    return %arg0, %c0_i32, %c0_i32_0 : i32, i32, i32
  }
  func.func @transform_2(%arg0: i32, %arg1: i32) -> (i32, i32) {
    %c0_i32 = arith.constant 0 : i32
    %c0_i32_0 = arith.constant 0 : i32
    %c0_i32_1 = arith.constant 0 : i32
    return %c0_i32, %c0_i32_0 : i32, i32
  }
  func.func @transform_3(%arg0: i32, %arg1: i32) -> (i32, i32) {
    %c0_i32 = arith.constant 0 : i32
    %c0_i32_0 = arith.constant 0 : i32
    %c0_i32_1 = arith.constant 0 : i32
    return %c0_i32, %c0_i32_0 : i32, i32
  }
  func.func @transform_4(%arg0: i32, %arg1: i32) -> (i32, i32) {
    %c0_i32 = arith.constant 0 : i32
    %c0_i32_0 = arith.constant 0 : i32
    %c0_i32_1 = arith.constant 0 : i32
    return %c0_i32, %c0_i32_0 : i32, i32
  }
  func.func @transform_5(%arg0: i32, %arg1: i32) -> (i32, i32, i32) {
    %c0_i32 = arith.constant 0 : i32
    %c0_i32_0 = arith.constant 0 : i32
    %c0_i32_1 = arith.constant 0 : i32
    return %arg0, %c0_i32, %c0_i32_0 : i32, i32, i32
  }
  func.func @transform_6(%arg0: i32, %arg1: i32) -> (i32, i32, i32) {
    %c0_i32 = arith.constant 0 : i32
    %c0_i32_0 = arith.constant 0 : i32
    %c0_i32_1 = arith.constant 0 : i32
    return %arg0, %c0_i32, %c0_i32_0 : i32, i32, i32
  }
  func.func @transform_7(%arg0: i32, %arg1: i32) -> (i32, i32, i32) {
    %c0_i32 = arith.constant 0 : i32
    %c0_i32_0 = arith.constant 0 : i32
    return %arg0, %arg1, %c0_i32 : i32, i32, i32
  }
}

module attributes {stable_mosaic.version = 11 : i64} {
  func.func @kernel(%arg0: i32, %arg1: i32, %arg2: memref<1x128x128xf32, #tpu.memory_space<vmem>>, %arg3: memref<1x2x4xf32, #tpu.memory_space<vmem>>, %arg4: memref<1x128xf32, #tpu.memory_space<vmem>>, %arg5: memref<1x128xf32, #tpu.memory_space<vmem>>, %arg6: memref<4x128xf32, #tpu.memory_space<vmem>>, %arg7: memref<1x128x128xbf16, #tpu.memory_space<vmem>>, %arg8: memref<128x128xbf16, #tpu.memory_space<vmem>>, %arg9: memref<1x128xf32, #tpu.memory_space<vmem>>, %arg10: memref<1x128x128xf32, #tpu.memory_space<vmem>>) attributes {dimension_semantics = [#tpu.dimension_semantics<parallel>, #tpu.dimension_semantics<parallel>], iteration_bounds = array<i64: 2, 2>, scalar_prefetch = 0 : i64, scratch_operands = 0 : i64, tpu.core_type = #tpu.core_type<tc>, window_params = [{transform_indices = @transform_0, window_bounds = array<i64: 1, 128, 128>}, {transform_indices = @transform_1, window_bounds = array<i64: 1, 2, 4>}, {pipeline_mode = #tpu.pipeline_mode<synchronous>, transform_indices = @transform_2, window_bounds = array<i64: 1, 128>}, {pipeline_mode = #tpu.pipeline_mode<synchronous>, transform_indices = @transform_3, window_bounds = array<i64: 1, 128>}, {pipeline_mode = #tpu.pipeline_mode<synchronous>, transform_indices = @transform_4, window_bounds = array<i64: 4, 128>}, {transform_indices = @transform_5, window_bounds = array<i64: 1, 128, 128>}, {pipeline_mode = #tpu.pipeline_mode<synchronous>, transform_indices = @transform_6, window_bounds = array<i64: 128, 128>}, {pipeline_mode = #tpu.pipeline_mode<synchronous>, transform_indices = @transform_7, window_bounds = array<i64: 1, 128>}, {transform_indices = @transform_8, window_bounds = array<i64: 1, 128, 128>}]} {
    %c0 = arith.constant 0 : index
    %c0_0 = arith.constant 0 : index
    %c0_1 = arith.constant 0 : index
    %0 = vector.load %arg3[%c0, %c0_0, %c0_1] : memref<1x2x4xf32, #tpu.memory_space<vmem>>, vector<1x1x4xf32>
    %1 = vector.shape_cast %0 : vector<1x1x4xf32> to vector<1x4xf32>
    %cst = arith.constant 0.001953125 : f32
    %2 = vector.broadcast %cst : f32 to vector<1x4xf32>
    %3 = arith.mulf %1, %2 : vector<1x4xf32>
    %c0_2 = arith.constant 0 : index
    %c1 = arith.constant 1 : index
    %c0_3 = arith.constant 0 : index
    %4 = vector.load %arg3[%c0_2, %c1, %c0_3] : memref<1x2x4xf32, #tpu.memory_space<vmem>>, vector<1x1x4xf32>
    %5 = vector.shape_cast %4 : vector<1x1x4xf32> to vector<1x4xf32>
    %cst_4 = arith.constant 0.001953125 : f32
    %6 = vector.broadcast %cst_4 : f32 to vector<1x4xf32>
    %7 = arith.mulf %5, %6 : vector<1x4xf32>
    %cst_5 = arith.constant 9.99999997E-7 : f32
    %8 = vector.broadcast %cst_5 : f32 to vector<1x4xf32>
    %9 = arith.addf %7, %8 : vector<1x4xf32>
    %10 = math.rsqrt %9 : vector<1x4xf32>
    %c0_6 = arith.constant 0 : index
    %c0_7 = arith.constant 0 : index
    %11 = vector.load %arg6[%c0_6, %c0_7] : memref<4x128xf32, #tpu.memory_space<vmem>>, vector<4x128xf32>
    %cst_8 = arith.constant dense<0.000000e+00> : vector<1x128xf32>
    %12 = tpu.matmul %3, %11, %cst_8 {dimension_numbers = #tpu.dot_dimension_numbers<[1], [0], [0], [1], [0, 0, 1, 1], [], []>} : vector<1x4xf32>, vector<4x128xf32>, vector<1x128xf32> -> vector<1x128xf32>
    %c0_9 = arith.constant 0 : index
    %c0_10 = arith.constant 0 : index
    %13 = vector.load %arg6[%c0_9, %c0_10] : memref<4x128xf32, #tpu.memory_space<vmem>>, vector<4x128xf32>
    %cst_11 = arith.constant dense<0.000000e+00> : vector<1x128xf32>
    %14 = tpu.matmul %10, %13, %cst_11 {dimension_numbers = #tpu.dot_dimension_numbers<[1], [0], [0], [1], [0, 0, 1, 1], [], []>} : vector<1x4xf32>, vector<4x128xf32>, vector<1x128xf32> -> vector<1x128xf32>
    %c0_12 = arith.constant 0 : index
    %c0_13 = arith.constant 0 : index
    %c0_14 = arith.constant 0 : index
    %15 = vector.load %arg2[%c0_12, %c0_13, %c0_14] : memref<1x128x128xf32, #tpu.memory_space<vmem>>, vector<1x128x128xf32>
    %16 = vector.shape_cast %15 : vector<1x128x128xf32> to vector<128x128xf32>
    %17 = vector.broadcast %12 : vector<1x128xf32> to vector<128x128xf32>
    %18 = arith.subf %16, %17 : vector<128x128xf32>
    %c0_15 = arith.constant 0 : index
    %c0_16 = arith.constant 0 : index
    %19 = vector.load %arg4[%c0_15, %c0_16] : memref<1x128xf32, #tpu.memory_space<vmem>>, vector<1x128xf32>
    %20 = arith.mulf %14, %19 : vector<1x128xf32>
    %21 = vector.broadcast %20 : vector<1x128xf32> to vector<128x128xf32>
    %22 = arith.mulf %18, %21 : vector<128x128xf32>
    %c0_17 = arith.constant 0 : index
    %c0_18 = arith.constant 0 : index
    %23 = vector.load %arg5[%c0_17, %c0_18] : memref<1x128xf32, #tpu.memory_space<vmem>>, vector<1x128xf32>
    %24 = vector.broadcast %23 : vector<1x128xf32> to vector<128x128xf32>
    %25 = arith.addf %22, %24 : vector<128x128xf32>
    %cst_19 = arith.constant 2.000000e+01 : f32
    %26 = vector.broadcast %cst_19 : f32 to vector<128x128xf32>
    %27 = arith.minimumf %25, %26 : vector<128x128xf32>
    %28 = math.exp %27 : vector<128x128xf32>
    %cst_20 = arith.constant 1.000000e+00 : f32
    %29 = vector.broadcast %cst_20 : f32 to vector<128x128xf32>
    %30 = arith.addf %29, %28 : vector<128x128xf32>
    %31 = arith.mulf %30, %30 : vector<128x128xf32>
    %cst_21 = arith.constant 1.000000e+00 : f32
    %32 = vector.broadcast %cst_21 : f32 to vector<128x128xf32>
    %33 = arith.addf %31, %32 : vector<128x128xf32>
    %34 = tpu.reciprocal %33 {approx = true} : vector<128x128xf32> -> vector<128x128xf32>
    %cst_22 = arith.constant 2.000000e+00 : f32
    %35 = vector.broadcast %cst_22 : f32 to vector<128x128xf32>
    %36 = arith.mulf %35, %34 : vector<128x128xf32>
    %cst_23 = arith.constant 1.000000e+00 : f32
    %37 = vector.broadcast %cst_23 : f32 to vector<128x128xf32>
    %38 = arith.subf %37, %36 : vector<128x128xf32>
    %39 = arith.mulf %25, %38 : vector<128x128xf32>
    %c0_24 = arith.constant 0 : index
    %c0_25 = arith.constant 0 : index
    %c0_26 = arith.constant 0 : index
    %40 = vector.load %arg7[%c0_24, %c0_25, %c0_26] : memref<1x128x128xbf16, #tpu.memory_space<vmem>>, vector<1x128x128xbf16>
    %41 = vector.shape_cast %40 : vector<1x128x128xbf16> to vector<128x128xbf16>
    %c0_27 = arith.constant 0 : index
    %c0_28 = arith.constant 0 : index
    %42 = vector.load %arg8[%c0_27, %c0_28] : memref<128x128xbf16, #tpu.memory_space<vmem>>, vector<128x128xbf16>
    %cst_29 = arith.constant dense<0.000000e+00> : vector<128x128xf32>
    %43 = tpu.matmul %41, %42, %cst_29 {dimension_numbers = #tpu.dot_dimension_numbers<[1], [0], [0], [1], [0, 0, 1, 1], [], []>} : vector<128x128xbf16>, vector<128x128xbf16>, vector<128x128xf32> -> vector<128x128xf32>
    %c0_30 = arith.constant 0 : index
    %c0_31 = arith.constant 0 : index
    %44 = vector.load %arg9[%c0_30, %c0_31] : memref<1x128xf32, #tpu.memory_space<vmem>>, vector<1x128xf32>
    %45 = vector.broadcast %44 : vector<1x128xf32> to vector<128x128xf32>
    %46 = arith.addf %43, %45 : vector<128x128xf32>
    %47 = arith.addf %39, %46 : vector<128x128xf32>
    %c0_32 = arith.constant 0 : index
    %c0_33 = arith.constant 0 : index
    %c0_34 = arith.constant 0 : index
    %48 = vector.load %arg10[%c0_32, %c0_33, %c0_34] : memref<1x128x128xf32, #tpu.memory_space<vmem>>, vector<1x128x128xf32>
    %49 = vector.shape_cast %48 : vector<1x128x128xf32> to vector<128x128xf32>
    %50 = vector.shape_cast %47 : vector<128x128xf32> to vector<1x128x128xf32>
    tpu.vector_store %arg10[%c0_32, %c0_33, %c0_34], %50 {strides = array<i32>} : memref<1x128x128xf32, #tpu.memory_space<vmem>>, vector<1x128x128xf32>,
    return
  }
  func.func @transform_0(%arg0: i32, %arg1: i32) -> (i32, i32, i32) {
    %c0_i32 = arith.constant 0 : i32
    %c0_i32_0 = arith.constant 0 : i32
    return %arg0, %arg1, %c0_i32 : i32, i32, i32
  }
  func.func @transform_1(%arg0: i32, %arg1: i32) -> (i32, i32, i32) {
    %c0_i32 = arith.constant 0 : i32
    %c0_i32_0 = arith.constant 0 : i32
    %c0_i32_1 = arith.constant 0 : i32
    return %arg0, %c0_i32, %c0_i32_0 : i32, i32, i32
  }
  func.func @transform_2(%arg0: i32, %arg1: i32) -> (i32, i32) {
    %c0_i32 = arith.constant 0 : i32
    %c0_i32_0 = arith.constant 0 : i32
    %c0_i32_1 = arith.constant 0 : i32
    return %c0_i32, %c0_i32_0 : i32, i32
  }
  func.func @transform_3(%arg0: i32, %arg1: i32) -> (i32, i32) {
    %c0_i32 = arith.constant 0 : i32
    %c0_i32_0 = arith.constant 0 : i32
    %c0_i32_1 = arith.constant 0 : i32
    return %c0_i32, %c0_i32_0 : i32, i32
  }
  func.func @transform_4(%arg0: i32, %arg1: i32) -> (i32, i32) {
    %c0_i32 = arith.constant 0 : i32
    %c0_i32_0 = arith.constant 0 : i32
    %c0_i32_1 = arith.constant 0 : i32
    return %c0_i32, %c0_i32_0 : i32, i32
  }
  func.func @transform_5(%arg0: i32, %arg1: i32) -> (i32, i32, i32) {
    %c0_i32 = arith.constant 0 : i32
    %c0_i32_0 = arith.constant 0 : i32
    return %arg0, %arg1, %c0_i32 : i32, i32, i32
  }
  func.func @transform_6(%arg0: i32, %arg1: i32) -> (i32, i32) {
    %c0_i32 = arith.constant 0 : i32
    %c0_i32_0 = arith.constant 0 : i32
    %c0_i32_1 = arith.constant 0 : i32
    return %c0_i32, %c0_i32_0 : i32, i32
  }
  func.func @transform_7(%arg0: i32, %arg1: i32) -> (i32, i32) {
    %c0_i32 = arith.constant 0 : i32
    %c0_i32_0 = arith.constant 0 : i32
    %c0_i32_1 = arith.constant 0 : i32
    return %c0_i32, %c0_i32_0 : i32, i32
  }
  func.func @transform_8(%arg0: i32, %arg1: i32) -> (i32, i32, i32) {
    %c0_i32 = arith.constant 0 : i32
    %c0_i32_0 = arith.constant 0 : i32
    return %arg0, %arg1, %c0_i32 : i32, i32, i32
  }
}

</mosaic_0001>

<llo_original>
// kernel: residual_block_forward.5
$region0: #{residual_block_forward.5}
  #allocation0 [shape = 'u32[]', space=smem, size = 0x4, offset = 0x4, fixed_abs, tag = 'smem constant byte address 0x4 - core index']
  #allocation1 [shape = 'u32[72,128]{1,0:T(1,128)}', space=vmem, size = 0x9000, scoped, tag = 'internal scratch']
  %s0 = inlined_call_operand.vmem [shape: f32[2,256,128], index: 0, kind: input, shape index: {}]
  %s1 = inlined_call_operand.vmem [shape: f32[2,2,4], index: 1, kind: input, shape index: {}]
  %s2 = inlined_call_operand.vmem [shape: f32[1,128], index: 2, kind: input, shape index: {}]
  %s3 = inlined_call_operand.vmem [shape: f32[1,128], index: 3, kind: input, shape index: {}]
  %s4 = inlined_call_operand.vmem [shape: f32[4,128], index: 4, kind: input, shape index: {}]
  %s5 = inlined_call_operand.vmem [shape: f32[2,1,128], index: 5, kind: input, shape index: {}]
  %s6 = inlined_call_operand.vmem [shape: f32[2,1,128], index: 6, kind: input, shape index: {}]
  %s7 = inlined_call_operand.vmem [shape: bf16[2,256,128], index: 7, kind: output, shape index: {}]
  %s8 = sld [smem:[#allocation0]]
  $region61: #{residual_block_forward.5} parent=0
    _
  %s10 = ssub.s32 1, %s8
  %s11 = scalar_select 0, %s10, %s8
  loop: start=0, step=1, limit=6
  $region2: #{residual_block_forward.5} parent=0 // loop_pre_header
    _
  $region3: #{residual_block_forward.5} parent=0 // loop_header
    %s13 = sphi 0, %s17
    %p14 = scmp.ge.s32.totalorder %s13, 6
    %s20 = sphi 0, %s32
    %s21 = sphi 0, %s28
    %s22 = sphi 0, %s20
    %s23 = sphi 0, %s21
    %s24 = sphi 0, %s22
    %s25 = sphi 0, %s23
    %s37 = sphi 0, %s39
    %s40 = sphi 0, %s37
    %s41 = sphi 0, %s40
    %s57 = sphi 0, %s41
    %s63 = sphi 0, %s65
    %s66 = sphi 0, %s63
    %s67 = sphi 0, %s66
    %s83 = sphi 0, %s67
    %s87 = sphi 0, %s87
    %s89 = sphi 0, %s87
    %s90 = sphi 0, %s89
    %s104 = sphi 0, %s90
    %s108 = sphi 0, %s108
    %s110 = sphi 0, %s108
    %s111 = sphi 0, %s110
    %s125 = sphi 0, %s111
    %s129 = sphi 0, %s129
    %s131 = sphi 0, %s129
    %s132 = sphi 0, %s131
    %s146 = sphi 0, %s132
    %s152 = sphi 0, %s154
    %s155 = sphi 0, %s152
    %s156 = sphi 0, %s155
    %s172 = sphi 0, %s156
    %s178 = sphi 0, %s180
    %s181 = sphi 0, %s178
    %s182 = sphi 0, %s181
    %s198 = sphi 0, %s182
    %s206 = sphi 0, %s208
    %s209 = sphi 0, %s206
    %s210 = sphi 0, %s209
    %s226 = sphi 0, %s210
  $region4: #{residual_block_forward.5} parent=0 // loop_header_branch
    %16 = sbr.rel (%p14) target = $region8
  $region5: #{residual_block_forward.5} parent=0 // loop_body
    %s18 = ssub.s32 %s13, 1
    %s19 = ssub.s32 %s13, 2
    %s26 = sadd.s32 1, %s21
    %p27 = scmp.ge.s32.totalorder %s26, 2
    %s28 = scalar_select %p27, 0, %s26
    %s29 = sadd.s32 1, %s20
    %s30 = scalar_select %p27, %s29, %s20
    %p31 = scmp.ge.s32.totalorder %s30, 2
    %s32 = scalar_select %p31, 0, %s30
    %s33 = ssub.s32 %s20, %s32
    %s34 = ssub.s32 %s21, %s28
    %s35 = sor.u32 %s33, %s34
    %p36 = scmp.eq.s32.totalorder %s35, 0
    %s38 = sadd.s32 %s37, 1
    %s39 = scalar_select %p36, %s37, %s38
    %p42 = pneg %p36
    %p43 = scmp.eq.s32.totalorder %s13, 3
    %p44 = por %p42, %p43
    %p45 = scmp.ne.s32.totalorder %s37, %s40
    %p46 = scmp.eq.s32.totalorder %s13, 0
    %p47 = por %p45, %p46
    %p48 = scmp.ne.s32.totalorder %s37, %s40
    %p49 = scmp.eq.s32.totalorder %s18, 3
    %p50 = por %p48, %p49
    %p51 = scmp.ne.s32.totalorder %s40, %s41
    %p52 = scmp.eq.s32.totalorder %s18, 0
    %p53 = por %p51, %p52
    %p54 = scmp.ne.s32.totalorder %s40, %s41
    %p55 = scmp.eq.s32.totalorder %s19, 3
    %p56 = por %p54, %p55
    %p58 = scmp.ne.s32.totalorder %s41, %s57
    %p59 = scmp.eq.s32.totalorder %s19, 0
    %p60 = por %p58, %p59
    %s61 = ssub.s32 %s20, %s32
    %p62 = scmp.eq.s32.totalorder %s61, 0
    %s64 = sadd.s32 %s63, 1
    %s65 = scalar_select %p62, %s63, %s64
    %p68 = pneg %p62
    %p69 = scmp.eq.s32.totalorder %s13, 3
    %p70 = por %p68, %p69
    %p71 = scmp.ne.s32.totalorder %s63, %s66
    %p72 = scmp.eq.s32.totalorder %s13, 0
    %p73 = por %p71, %p72
    %p74 = scmp.ne.s32.totalorder %s63, %s66
    %p75 = scmp.eq.s32.totalorder %s18, 3
    %p76 = por %p74, %p75
    %p77 = scmp.ne.s32.totalorder %s66, %s67
    %p78 = scmp.eq.s32.totalorder %s18, 0
    %p79 = por %p77, %p78
    %p80 = scmp.ne.s32.totalorder %s66, %s67
    %p81 = scmp.eq.s32.totalorder %s19, 3
    %p82 = por %p80, %p81
    %p84 = scmp.ne.s32.totalorder %s67, %s83
    %p85 = scmp.eq.s32.totalorder %s19, 0
    %p86 = por %p84, %p85
    %s88 = sadd.s32 %s87, 1
    %p91 = scmp.eq.s32.totalorder %s13, 3
    %p92 = scmp.ne.s32.totalorder %s87, %s89
    %p93 = scmp.eq.s32.totalorder %s13, 0
    %p94 = por %p92, %p93
    %p95 = scmp.ne.s32.totalorder %s87, %s89
    %p96 = scmp.eq.s32.totalorder %s18, 3
    %p97 = por %p95, %p96
    %p98 = scmp.ne.s32.totalorder %s89, %s90
    %p99 = scmp.eq.s32.totalorder %s18, 0
    %p100 = por %p98, %p99
    %p101 = scmp.ne.s32.totalorder %s89, %s90
    %p102 = scmp.eq.s32.totalorder %s19, 3
    %p103 = por %p101, %p102
    %p105 = scmp.ne.s32.totalorder %s90, %s104
    %p106 = scmp.eq.s32.totalorder %s19, 0
    %p107 = por %p105, %p106
    %s109 = sadd.s32 %s108, 1
    %p112 = scmp.eq.s32.totalorder %s13, 3
    %p113 = scmp.ne.s32.totalorder %s108, %s110
    %p114 = scmp.eq.s32.totalorder %s13, 0
    %p115 = por %p113, %p114
    %p116 = scmp.ne.s32.totalorder %s108, %s110
    %p117 = scmp.eq.s32.totalorder %s18, 3
    %p118 = por %p116, %p117
    %p119 = scmp.ne.s32.totalorder %s110, %s111
    %p120 = scmp.eq.s32.totalorder %s18, 0
    %p121 = por %p119, %p120
    %p122 = scmp.ne.s32.totalorder %s110, %s111
    %p123 = scmp.eq.s32.totalorder %s19, 3
    %p124 = por %p122, %p123
    %p126 = scmp.ne.s32.totalorder %s111, %s125
    %p127 = scmp.eq.s32.totalorder %s19, 0
    %p128 = por %p126, %p127
    %s130 = sadd.s32 %s129, 1
    %p133 = scmp.eq.s32.totalorder %s13, 3
    %p134 = scmp.ne.s32.totalorder %s129, %s131
    %p135 = scmp.eq.s32.totalorder %s13, 0
    %p136 = por %p134, %p135
    %p137 = scmp.ne.s32.totalorder %s129, %s131
    %p138 = scmp.eq.s32.totalorder %s18, 3
    %p139 = por %p137, %p138
    %p140 = scmp.ne.s32.totalorder %s131, %s132
    %p141 = scmp.eq.s32.totalorder %s18, 0
    %p142 = por %p140, %p141
    %p143 = scmp.ne.s32.totalorder %s131, %s132
    %p144 = scmp.eq.s32.totalorder %s19, 3
    %p145 = por %p143, %p144
    %p147 = scmp.ne.s32.totalorder %s132, %s146
    %p148 = scmp.eq.s32.totalorder %s19, 0
    %p149 = por %p147, %p148
    %s150 = ssub.s32 %s20, %s32
    %p151 = scmp.eq.s32.totalorder %s150, 0
    %s153 = sadd.s32 %s152, 1
    %s154 = scalar_select %p151, %s152, %s153
    %p157 = pneg %p151
    %p158 = scmp.eq.s32.totalorder %s13, 3
    %p159 = por %p157, %p158
    %p160 = scmp.ne.s32.totalorder %s152, %s155
    %p161 = scmp.eq.s32.totalorder %s13, 0
    %p162 = por %p160, %p161
    %p163 = scmp.ne.s32.totalorder %s152, %s155
    %p164 = scmp.eq.s32.totalorder %s18, 3
    %p165 = por %p163, %p164
    %p166 = scmp.ne.s32.totalorder %s155, %s156
    %p167 = scmp.eq.s32.totalorder %s18, 0
    %p168 = por %p166, %p167
    %p169 = scmp.ne.s32.totalorder %s155, %s156
    %p170 = scmp.eq.s32.totalorder %s19, 3
    %p171 = por %p169, %p170
    %p173 = scmp.ne.s32.totalorder %s156, %s172
    %p174 = scmp.eq.s32.totalorder %s19, 0
    %p175 = por %p173, %p174
    %s176 = ssub.s32 %s20, %s32
    %p177 = scmp.eq.s32.totalorder %s176, 0
    %s179 = sadd.s32 %s178, 1
    %s180 = scalar_select %p177, %s178, %s179
    %p183 = pneg %p177
    %p184 = scmp.eq.s32.totalorder %s13, 3
    %p185 = por %p183, %p184
    %p186 = scmp.ne.s32.totalorder %s178, %s181
    %p187 = scmp.eq.s32.totalorder %s13, 0
    %p188 = por %p186, %p187
    %p189 = scmp.ne.s32.totalorder %s178, %s181
    %p190 = scmp.eq.s32.totalorder %s18, 3
    %p191 = por %p189, %p190
    %p192 = scmp.ne.s32.totalorder %s181, %s182
    %p193 = scmp.eq.s32.totalorder %s18, 0
    %p194 = por %p192, %p193
    %p195 = scmp.ne.s32.totalorder %s181, %s182
    %p196 = scmp.eq.s32.totalorder %s19, 3
    %p197 = por %p195, %p196
    %p199 = scmp.ne.s32.totalorder %s182, %s198
    %p200 = scmp.eq.s32.totalorder %s19, 0
    %p201 = por %p199, %p200
    %s202 = ssub.s32 %s20, %s32
    %s203 = ssub.s32 %s21, %s28
    %s204 = sor.u32 %s202, %s203
    %p205 = scmp.eq.s32.totalorder %s204, 0
    %s207 = sadd.s32 %s206, 1
    %s208 = scalar_select %p205, %s206, %s207
    %p211 = pneg %p205
    %p212 = scmp.eq.s32.totalorder %s13, 3
    %p213 = por %p211, %p212
    %p214 = scmp.ne.s32.totalorder %s206, %s209
    %p215 = scmp.eq.s32.totalorder %s13, 0
    %p216 = por %p214, %p215
    %p217 = scmp.ne.s32.totalorder %s206, %s209
    %p218 = scmp.eq.s32.totalorder %s18, 3
    %p219 = por %p217, %p218
    %p220 = scmp.ne.s32.totalorder %s209, %s210
    %p221 = scmp.eq.s32.totalorder %s18, 0
    %p222 = por %p220, %p221
    %p223 = scmp.ne.s32.totalorder %s209, %s210
    %p224 = scmp.eq.s32.totalorder %s19, 3
    %p225 = por %p223, %p224
    %p227 = scmp.ne.s32.totalorder %s210, %s226
    %p228 = scmp.eq.s32.totalorder %s19, 0
    %p229 = por %p227, %p228
    %p230 = scmp.le.s32.totalorder 1, %s13
    %p231 = scmp.lt.s32.totalorder %s13, 5
    %p232 = pnand %p230, %p231
    %p233 = pneg %p232
    // Predicated region
    $region9: #{residual_block_forward.5} parent=5 // pred_check
      _
    $region10: #{residual_block_forward.5} parent=5 // pred_check_branch
      %235 = sbr.rel (%p232) target = $region12
    $region11: #{residual_block_forward.5} parent=5 // pred_region
      %s236 = ssub.s32 %s13, 1
      // Predicated region
      $region13: #{residual_block_forward.5} parent=11 // pred_check
        %p237 = pneg %p100
      $region14: #{residual_block_forward.5} parent=11 // pred_check_branch
        %239 = sbr.rel (%p237) target = $region16
      $region15: #{residual_block_forward.5} parent=11 // pred_region
        _
      $region16: #{residual_block_forward.5} parent=11 // pred_fallthru
        _
      // Predicated region
      $region17: #{residual_block_forward.5} parent=11 // pred_check
        %p240 = pneg %p121
      $region18: #{residual_block_forward.5} parent=11 // pred_check_branch
        %242 = sbr.rel (%p240) target = $region20
      $region19: #{residual_block_forward.5} parent=11 // pred_region
        _
      $region20: #{residual_block_forward.5} parent=11 // pred_fallthru
        _
      // Predicated region
      $region21: #{residual_block_forward.5} parent=11 // pred_check
        %p243 = pneg %p142
      $region22: #{residual_block_forward.5} parent=11 // pred_check_branch
        %245 = sbr.rel (%p243) target = $region24
      $region23: #{residual_block_forward.5} parent=11 // pred_region
        _
      $region24: #{residual_block_forward.5} parent=11 // pred_fallthru
        _
    $region12: #{residual_block_forward.5} parent=5 // pred_fallthru
      _
    %p246 = scmp.lt.s32.totalorder %s13, 4
    // Predicated region
    $region25: #{residual_block_forward.5} parent=5 // pred_check
      %p247 = pneg %p246
    $region26: #{residual_block_forward.5} parent=5 // pred_check_branch
      %249 = sbr.rel (%p247) target = $region28
    $region27: #{residual_block_forward.5} parent=5 // pred_region
      // Predicated region
      $region29: #{residual_block_forward.5} parent=27 // pred_check
        %p250 = pneg %p47
      $region30: #{residual_block_forward.5} parent=27 // pred_check_branch
        %252 = sbr.rel (%p250) target = $region32
      $region31: #{residual_block_forward.5} parent=27 // pred_region
        %s253 = smul.u32 16, %s21
        %p254 = scmp.lt.s32.totalorder %s20, 1
        %s255 = scalar_select %p254, %s20, 1
        %p256 = scmp.lt.s32.totalorder %s253, 31
        %s257 = scalar_select %p256, %s253, 31
        %s258 = smul.addr %s255, 32
        %s259 = sadd.s32 %s257, %s258
        %s260 = smul.addr %s259, 8
        %s261 = scalar_lea.vmem %s0, %s260
        %s262 = smul.u32 16, %s21
      $region32: #{residual_block_forward.5} parent=27 // pred_fallthru
        _
      // Predicated region
      $region33: #{residual_block_forward.5} parent=27 // pred_check
        %p263 = pneg %p73
      $region34: #{residual_block_forward.5} parent=27 // pred_check_branch
        %265 = sbr.rel (%p263) target = $region36
      $region35: #{residual_block_forward.5} parent=27 // pred_region
        %p266 = scmp.lt.s32.totalorder %s20, 1
        %s267 = scalar_select %p266, %s20, 1
        %s268 = smul.addr %s267, 2
        %s269 = scalar_lea.vmem %s1, %s268
      $region36: #{residual_block_forward.5} parent=27 // pred_fallthru
        _
      // Predicated region
      $region37: #{residual_block_forward.5} parent=27 // pred_check
        %p270 = pneg %p162
      $region38: #{residual_block_forward.5} parent=27 // pred_check_branch
        %272 = sbr.rel (%p270) target = $region40
      $region39: #{residual_block_forward.5} parent=27 // pred_region
        %p273 = scmp.lt.s32.totalorder %s20, 1
        %s274 = scalar_select %p273, %s20, 1
        %s275 = scalar_lea.vmem %s5, %s274
      $region40: #{residual_block_forward.5} parent=27 // pred_fallthru
        _
      // Predicated region
      $region41: #{residual_block_forward.5} parent=27 // pred_check
        %p276 = pneg %p188
      $region42: #{residual_block_forward.5} parent=27 // pred_check_branch
        %278 = sbr.rel (%p276) target = $region44
      $region43: #{residual_block_forward.5} parent=27 // pred_region
        %p279 = scmp.lt.s32.totalorder %s20, 1
        %s280 = scalar_select %p279, %s20, 1
        %s281 = scalar_lea.vmem %s6, %s280
      $region44: #{residual_block_forward.5} parent=27 // pred_fallthru
        _
    $region28: #{residual_block_forward.5} parent=5 // pred_fallthru
      _
    %p282 = scmp.le.s32.totalorder 1, %s13
    %p283 = scmp.lt.s32.totalorder %s13, 5
    %p284 = pnand %p282, %p283
    %p285 = pneg %p284
    // Predicated region
    $region45: #{residual_block_forward.5} parent=5 // pred_check
      _
    $region46: #{residual_block_forward.5} parent=5 // pred_check_branch
      %287 = sbr.rel (%p284) target = $region48
    $region47: #{residual_block_forward.5} parent=5 // pred_region
      %s288 = ssub.s32 %s13, 1
      %s289 = smul.u32 16, %s23
      %p290 = scmp.lt.s32.totalorder %s22, 1
      %s291 = scalar_select %p290, %s22, 1
      %p292 = scmp.lt.s32.totalorder %s289, 31
      %s293 = scalar_select %p292, %s289, 31
      %s294 = smul.addr %s291, 32
      %s295 = sadd.s32 %s293, %s294
      %s296 = smul.addr %s295, 8
      %s297 = scalar_lea.vmem %s0, %s296
      %p298 = pneg %p53
      %p299 = pneg %p50
      %p300 = scmp.lt.s32.totalorder %s22, 1
      %s301 = scalar_select %p300, %s22, 1
      %s302 = smul.addr %s301, 2
      %s303 = scalar_lea.vmem %s1, %s302
      %p304 = pneg %p79
      %p305 = pneg %p76
      %p306 = pneg %p100
      %p307 = pneg %p97
      %p308 = pneg %p121
      %p309 = pneg %p118
      %p310 = pneg %p142
      %p311 = pneg %p139
      %p312 = scmp.lt.s32.totalorder %s22, 1
      %s313 = scalar_select %p312, %s22, 1
      %s314 = scalar_lea.vmem %s5, %s313
      %p315 = pneg %p168
      %p316 = pneg %p165
      %p317 = scmp.lt.s32.totalorder %s22, 1
      %s318 = scalar_select %p317, %s22, 1
      %s319 = scalar_lea.vmem %s6, %s318
      %p320 = pneg %p194
      %p321 = pneg %p191
      %p322 = pneg %p222
      %p323 = pneg %p219
      %s324 = smul.u32 16, %s23
      %p325 = scmp.lt.s32.totalorder %s22, 1
      %s326 = scalar_select %p325, %s22, 1
      %p327 = scmp.lt.s32.totalorder %s324, 31
      %s328 = scalar_select %p327, %s324, 31
      %s329 = smul.addr %s326, 32
      %s330 = sadd.s32 %s328, %s329
      %s331 = smul.addr %s330, 4
      %s332 = scalar_lea.vmem %s7, %s331
      %s333 = smul.u32 16, %s23
      %p334 = scmp.lt.s32.totalorder %s22, 1
      %s335 = scalar_select %p334, %s22, 1
      %p336 = scmp.lt.s32.totalorder %s333, 31
      %s337 = scalar_select %p336, %s333, 31
      %s338 = smul.addr %s335, 32
      %s339 = sadd.s32 %s337, %s338
      %s340 = smul.addr %s339, 8
      %s341 = scalar_lea.vmem %s0, %s340
      %s342 = smul.u32 16, %s23
      %p343 = scmp.lt.s32.totalorder %s22, 1
      %s344 = scalar_select %p343, %s22, 1
      %s345 = smul.addr %s344, 2
      %s346 = scalar_lea.vmem %s1, %s345
      %p347 = scmp.lt.s32.totalorder %s22, 1
      %s348 = scalar_select %p347, %s22, 1
      %s349 = scalar_lea.vmem %s5, %s348
      %p350 = scmp.lt.s32.totalorder %s22, 1
      %s351 = scalar_select %p350, %s22, 1
      %s352 = scalar_lea.vmem %s6, %s351
      %s353 = smul.u32 16, %s23
      %p354 = scmp.lt.s32.totalorder %s22, 1
      %s355 = scalar_select %p354, %s22, 1
      %p356 = scmp.lt.s32.totalorder %s353, 31
      %s357 = scalar_select %p356, %s353, 31
      %s358 = smul.addr %s355, 32
      %s359 = sadd.s32 %s357, %s358
      %s360 = smul.addr %s359, 4
      %s361 = scalar_lea.vmem %s7, %s360
      %s362 = smul.u32 16, %s23
      %v363 = vld [vmem:[%s346] sm:$0x1]
      %v364 = vmul.f32 %v363, 0.001953125
      %v365 = vld [vmem:[%s346 + $0x1] sm:$0x1]
      %v366 = vmul.f32 %v365, 0.001953125
      %v367 = vadd.f32 %v366, 1e-06
      %v368 = vrsqrt.pop %v367
      %v369 = vmul.f32 %v368, %v367
      %v370 = vmul.f32 %v369, %v368
      %v371 = vmul.f32 0.5, %v370
      %v372 = vsub.f32 1.5, %v371
      %v373 = vmul.f32 %v368, %v372
      %vm374 = vweird.f32 %v367
      %vm375 = vweird.f32 %v368
      %vm376 = vmor %vm374, %vm375
      %v377 = vsel %vm376, %v368, %v373
      %v378 = vld [vmem:[%s4] sm:$0xf]
      %vm379 = vcmask 31744
      %v381 = vsel %vm379, %v364, 0
      %vm383 = vcmask 1043456
      %v385 = vsel %vm383, %v378, 0
      %387 = vmatpush.msra.mxu0 0.0
      %388 = vmatpush.msra.mxu0 0.0
      %389 = vmatpush.msra.mxu0 0.0
      %390 = vmatpush.msra.mxu0 0.0
      %391 = vmatpush.msra.mxu0 0.0
      %392 = vmatpush.msra.mxu0 0.0
      %393 = vmatpush.msra.mxu0 0.0
      %394 = vmatpush.msra.mxu0 0.0
      %395 = vmatpush.msra.mxu0 0.0
      %396 = vmatpush.msra.mxu0 0.0
      %397 = vmatpush.msra.mxu0 0.0
      %398 = vmatpush.msra.mxu0 0.0
      %399 = vmatpush.msra.mxu0 0.0
      %400 = vmatpush.msra.mxu0 0.0
      %401 = vmatpush.msra.mxu0 0.0
      %402 = vmatpush.msra.mxu0 %v385
      %403 = vmatmul.f32.gmra.mxu0 %v381
      %v404 = vpop.f32.mrf.mxu0
      %v405 = vadd.f32 0.0, %v404
      %406 = vdwg.mxu0
      %v408 = vsel %vm379, %v377, 0
      %410 = vmatpush.msra.mxu0 0.0
      %411 = vmatpush.msra.mxu0 0.0
      %412 = vmatpush.msra.mxu0 0.0
      %413 = vmatpush.msra.mxu0 0.0
      %414 = vmatpush.msra.mxu0 0.0
      %415 = vmatpush.msra.mxu0 0.0
      %416 = vmatpush.msra.mxu0 0.0
      %417 = vmatpush.msra.mxu0 0.0
      %418 = vmatpush.msra.mxu0 0.0
      %419 = vmatpush.msra.mxu0 0.0
      %420 = vmatpush.msra.mxu0 0.0
      %421 = vmatpush.msra.mxu0 0.0
      %422 = vmatpush.msra.mxu0 0.0
      %423 = vmatpush.msra.mxu0 0.0
      %424 = vmatpush.msra.mxu0 0.0
      %425 = vmatpush.msra.mxu0 %v385
      %426 = vmatmul.f32.gmra.mxu0 %v408
      %v427 = vpop.f32.mrf.mxu0
      %v428 = vadd.f32 0.0, %v427
      %429 = vdwg.mxu0
      %v430 = vld [vmem:[%s341] sm:$0xff]
      %v431 = vld [vmem:[%s341 + $0x8] sm:$0xff]
      %v432 = vld [vmem:[%s341 + $0x10] sm:$0xff]
      %v433 = vld [vmem:[%s341 + $0x18] sm:$0xff]
      %v434 = vld [vmem:[%s341 + $0x20] sm:$0xff]
      %v435 = vld [vmem:[%s341 + $0x28] sm:$0xff]
      %v436 = vld [vmem:[%s341 + $0x30] sm:$0xff]
      %v437 = vld [vmem:[%s341 + $0x38] sm:$0xff]
      %v438 = vld [vmem:[%s341 + $0x40] sm:$0xff]
      %v439 = vld [vmem:[%s341 + $0x48] sm:$0xff]
      %v440 = vld [vmem:[%s341 + $0x50] sm:$0xff]
      %v441 = vld [vmem:[%s341 + $0x58] sm:$0xff]
      %v442 = vld [vmem:[%s341 + $0x60] sm:$0xff]
      %v443 = vld [vmem:[%s341 + $0x68] sm:$0xff]
      %v444 = vld [vmem:[%s341 + $0x70] sm:$0xff]
      %v445 = vld [vmem:[%s341 + $0x78] sm:$0xff]
      %v446 = vperm.slane %v405, 0
      %v447 = vsub.f32 %v430, %v446
      %v448 = vsub.f32 %v431, %v446
      %v449 = vsub.f32 %v432, %v446
      %v450 = vsub.f32 %v433, %v446
      %v451 = vsub.f32 %v434, %v446
      %v452 = vsub.f32 %v435, %v446
      %v453 = vsub.f32 %v436, %v446
      %v454 = vsub.f32 %v437, %v446
      %v455 = vsub.f32 %v438, %v446
      %v456 = vsub.f32 %v439, %v446
      %v457 = vsub.f32 %v440, %v446
      %v458 = vsub.f32 %v441, %v446
      %v459 = vsub.f32 %v442, %v446
      %v460 = vsub.f32 %v443, %v446
      %v461 = vsub.f32 %v444, %v446
      %v462 = vsub.f32 %v445, %v446
      %v463 = vld [vmem:[%s2] sm:$0x1]
      %v464 = vmul.f32 %v428, %v463
      %v465 = vperm.slane %v464, 0
      %v466 = vmul.f32 %v447, %v465
      %v467 = vmul.f32 %v448, %v465
      %v468 = vmul.f32 %v449, %v465
      %v469 = vmul.f32 %v450, %v465
      %v470 = vmul.f32 %v451, %v465
      %v471 = vmul.f32 %v452, %v465
      %v472 = vmul.f32 %v453, %v465
      %v473 = vmul.f32 %v454, %v465
      %v474 = vmul.f32 %v455, %v465
      %v475 = vmul.f32 %v456, %v465
      %v476 = vmul.f32 %v457, %v465
      %v477 = vmul.f32 %v458, %v465
      %v478 = vmul.f32 %v459, %v465
      %v479 = vmul.f32 %v460, %v465
      %v480 = vmul.f32 %v461, %v465
      %v481 = vmul.f32 %v462, %v465
      %v482 = vld [vmem:[%s3] sm:$0x1]
      %v484 = vperm.slane %v482, 0
      %v486 = vadd.f32 %v466, %v484
      %v487 = vadd.f32 %v467, %v484
      %v488 = vadd.f32 %v468, %v484
      %v489 = vadd.f32 %v469, %v484
      %v490 = vadd.f32 %v470, %v484
      %v491 = vadd.f32 %v471, %v484
      %v492 = vadd.f32 %v472, %v484
      %v493 = vadd.f32 %v473, %v484
      %v494 = vadd.f32 %v474, %v484
      %v495 = vadd.f32 %v475, %v484
      %v496 = vadd.f32 %v476, %v484
      %v497 = vadd.f32 %v477, %v484
      %v498 = vadd.f32 %v478, %v484
      %v499 = vadd.f32 %v479, %v484
      %v500 = vadd.f32 %v480, %v484
      %v501 = vadd.f32 %v481, %v484
      %v502 = vmin.f32 %v486, 20.0
      %v503 = vmin.f32 %v487, 20.0
      %v504 = vmin.f32 %v488, 20.0
      %v505 = vmin.f32 %v489, 20.0
      %v506 = vmin.f32 %v490, 20.0
      %v507 = vmin.f32 %v491, 20.0
      %v508 = vmin.f32 %v492, 20.0
      %v509 = vmin.f32 %v493, 20.0
      %v510 = vmin.f32 %v494, 20.0
      %v511 = vmin.f32 %v495, 20.0
      %v512 = vmin.f32 %v496, 20.0
      %v513 = vmin.f32 %v497, 20.0
      %v514 = vmin.f32 %v498, 20.0
      %v515 = vmin.f32 %v499, 20.0
      %v516 = vmin.f32 %v500, 20.0
      %v517 = vmin.f32 %v501, 20.0
      %v518 = vmul.f32 %v502, 1.442695
      %v519 = vpow.pop %v518
      %v520 = vmul.f32 %v503, 1.442695
      %v521 = vpow.pop %v520
      %v522 = vmul.f32 %v504, 1.442695
      %v523 = vpow.pop %v522
      %v524 = vmul.f32 %v505, 1.442695
      %v525 = vpow.pop %v524
      %v526 = vmul.f32 %v506, 1.442695
      %v527 = vpow.pop %v526
      %v528 = vmul.f32 %v507, 1.442695
      %v529 = vpow.pop %v528
      %v530 = vmul.f32 %v508, 1.442695
      %v531 = vpow.pop %v530
      %v532 = vmul.f32 %v509, 1.442695
      %v533 = vpow.pop %v532
      %v534 = vmul.f32 %v510, 1.442695
      %v535 = vpow.pop %v534
      %v536 = vmul.f32 %v511, 1.442695
      %v537 = vpow.pop %v536
      %v538 = vmul.f32 %v512, 1.442695
      %v539 = vpow.pop %v538
      %v540 = vmul.f32 %v513, 1.442695
      %v541 = vpow.pop %v540
      %v542 = vmul.f32 %v514, 1.442695
      %v543 = vpow.pop %v542
      %v544 = vmul.f32 %v515, 1.442695
      %v545 = vpow.pop %v544
      %v546 = vmul.f32 %v516, 1.442695
      %v547 = vpow.pop %v546
      %v548 = vmul.f32 %v517, 1.442695
      %v549 = vpow.pop %v548
      %v550 = vadd.f32 %v519, 1.0
      %v551 = vadd.f32 %v521, 1.0
      %v552 = vadd.f32 %v523, 1.0
      %v553 = vadd.f32 %v525, 1.0
      %v554 = vadd.f32 %v527, 1.0
      %v555 = vadd.f32 %v529, 1.0
      %v556 = vadd.f32 %v531, 1.0
      %v557 = vadd.f32 %v533, 1.0
      %v558 = vadd.f32 %v535, 1.0
      %v559 = vadd.f32 %v537, 1.0
      %v560 = vadd.f32 %v539, 1.0
      %v561 = vadd.f32 %v541, 1.0
      %v562 = vadd.f32 %v543, 1.0
      %v563 = vadd.f32 %v545, 1.0
      %v564 = vadd.f32 %v547, 1.0
      %v565 = vadd.f32 %v549, 1.0
      %v566 = vmul.f32 %v550, %v550
      %v567 = vmul.f32 %v551, %v551
      %v568 = vmul.f32 %v552, %v552
      %v569 = vmul.f32 %v553, %v553
      %v570 = vmul.f32 %v554, %v554
      %v571 = vmul.f32 %v555, %v555
      %v572 = vmul.f32 %v556, %v556
      %v573 = vmul.f32 %v557, %v557
      %v574 = vmul.f32 %v558, %v558
      %v575 = vmul.f32 %v559, %v559
      %v576 = vmul.f32 %v560, %v560
      %v577 = vmul.f32 %v561, %v561
      %v578 = vmul.f32 %v562, %v562
      %v579 = vmul.f32 %v563, %v563
      %v580 = vmul.f32 %v564, %v564
      %v581 = vmul.f32 %v565, %v565
      %v582 = vadd.f32 %v566, 1.0
      %v583 = vadd.f32 %v567, 1.0
      %v584 = vadd.f32 %v568, 1.0
      %v585 = vadd.f32 %v569, 1.0
      %v586 = vadd.f32 %v570, 1.0
      %v587 = vadd.f32 %v571, 1.0
      %v588 = vadd.f32 %v572, 1.0
      %v589 = vadd.f32 %v573, 1.0
      %v590 = vadd.f32 %v574, 1.0
      %v591 = vadd.f32 %v575, 1.0
      %v592 = vadd.f32 %v576, 1.0
      %v593 = vadd.f32 %v577, 1.0
      %v594 = vadd.f32 %v578, 1.0
      %v595 = vadd.f32 %v579, 1.0
      %v596 = vadd.f32 %v580, 1.0
      %v597 = vadd.f32 %v581, 1.0
      %v598 = vrcp.pop %v582
      %v599 = vrcp.pop %v583
      %v600 = vrcp.pop %v584
      %v601 = vrcp.pop %v585
      %v602 = vrcp.pop %v586
      %v603 = vrcp.pop %v587
      %v604 = vrcp.pop %v588
      %v605 = vrcp.pop %v589
      %v606 = vrcp.pop %v590
      %v607 = vrcp.pop %v591
      %v608 = vrcp.pop %v592
      %v609 = vrcp.pop %v593
      %v610 = vrcp.pop %v594
      %v611 = vrcp.pop %v595
      %v612 = vrcp.pop %v596
      %v613 = vrcp.pop %v597
      %v614 = vmul.f32 %v598, 2.0
      %v615 = vmul.f32 %v599, 2.0
      %v616 = vmul.f32 %v600, 2.0
      %v617 = vmul.f32 %v601, 2.0
      %v618 = vmul.f32 %v602, 2.0
      %v619 = vmul.f32 %v603, 2.0
      %v620 = vmul.f32 %v604, 2.0
      %v621 = vmul.f32 %v605, 2.0
      %v622 = vmul.f32 %v606, 2.0
      %v623 = vmul.f32 %v607, 2.0
      %v624 = vmul.f32 %v608, 2.0
      %v625 = vmul.f32 %v609, 2.0
      %v626 = vmul.f32 %v610, 2.0
      %v627 = vmul.f32 %v611, 2.0
      %v628 = vmul.f32 %v612, 2.0
      %v629 = vmul.f32 %v613, 2.0
      %v630 = vsub.f32 1.0, %v614
      %v631 = vsub.f32 1.0, %v615
      %v632 = vsub.f32 1.0, %v616
      %v633 = vsub.f32 1.0, %v617
      %v634 = vsub.f32 1.0, %v618
      %v635 = vsub.f32 1.0, %v619
      %v636 = vsub.f32 1.0, %v620
      %v637 = vsub.f32 1.0, %v621
      %v638 = vsub.f32 1.0, %v622
      %v639 = vsub.f32 1.0, %v623
      %v640 = vsub.f32 1.0, %v624
      %v641 = vsub.f32 1.0, %v625
      %v642 = vsub.f32 1.0, %v626
      %v643 = vsub.f32 1.0, %v627
      %v644 = vsub.f32 1.0, %v628
      %v645 = vsub.f32 1.0, %v629
      %v646 = vmul.f32 %v486, %v630
      %v647 = vmul.f32 %v487, %v631
      %v648 = vmul.f32 %v488, %v632
      %v649 = vmul.f32 %v489, %v633
      %v650 = vmul.f32 %v490, %v634
      %v651 = vmul.f32 %v491, %v635
      %v652 = vmul.f32 %v492, %v636
      %v653 = vmul.f32 %v493, %v637
      %v654 = vmul.f32 %v494, %v638
      %v655 = vmul.f32 %v495, %v639
      %v656 = vmul.f32 %v496, %v640
      %v657 = vmul.f32 %v497, %v641
      %v658 = vmul.f32 %v498, %v642
      %v659 = vmul.f32 %v499, %v643
      %v660 = vmul.f32 %v500, %v644
      %v661 = vmul.f32 %v501, %v645
      %v662 = vld [vmem:[%s349] sm:$0x1]
      %v664 = vperm.slane %v662, 0
      %v666 = vmul.f32 %v646, %v664
      %v667 = vmul.f32 %v647, %v664
      %v668 = vmul.f32 %v648, %v664
      %v669 = vmul.f32 %v649, %v664
      %v670 = vmul.f32 %v650, %v664
      %v671 = vmul.f32 %v651, %v664
      %v672 = vmul.f32 %v652, %v664
      %v673 = vmul.f32 %v653, %v664
      %v674 = vmul.f32 %v654, %v664
      %v675 = vmul.f32 %v655, %v664
      %v676 = vmul.f32 %v656, %v664
      %v677 = vmul.f32 %v657, %v664
      %v678 = vmul.f32 %v658, %v664
      %v679 = vmul.f32 %v659, %v664
      %v680 = vmul.f32 %v660, %v664
      %v681 = vmul.f32 %v661, %v664
      %v682 = vld [vmem:[%s352] sm:$0x1]
      %v684 = vperm.slane %v682, 0
      %v686 = vadd.f32 %v666, %v684
      %v687 = vadd.f32 %v667, %v684
      %v688 = vadd.f32 %v668, %v684
      %v689 = vadd.f32 %v669, %v684
      %v690 = vadd.f32 %v670, %v684
      %v691 = vadd.f32 %v671, %v684
      %v692 = vadd.f32 %v672, %v684
      %v693 = vadd.f32 %v673, %v684
      %v694 = vadd.f32 %v674, %v684
      %v695 = vadd.f32 %v675, %v684
      %v696 = vadd.f32 %v676, %v684
      %v697 = vadd.f32 %v677, %v684
      %v698 = vadd.f32 %v678, %v684
      %v699 = vadd.f32 %v679, %v684
      %v700 = vadd.f32 %v680, %v684
      %v701 = vadd.f32 %v681, %v684
      %v702 = vpack.c.bf16 %v686, %v686
      %v703 = vpack.c.bf16 %v687, %v687
      %v704 = vpack.c.bf16 %v688, %v688
      %v705 = vpack.c.bf16 %v689, %v689
      %v706 = vpack.c.bf16 %v690, %v690
      %v707 = vpack.c.bf16 %v691, %v691
      %v708 = vpack.c.bf16 %v692, %v692
      %v709 = vpack.c.bf16 %v693, %v693
      %v710 = vpack.c.bf16 %v694, %v694
      %v711 = vpack.c.bf16 %v695, %v695
      %v712 = vpack.c.bf16 %v696, %v696
      %v713 = vpack.c.bf16 %v697, %v697
      %v714 = vpack.c.bf16 %v698, %v698
      %v715 = vpack.c.bf16 %v699, %v699
      %v716 = vpack.c.bf16 %v700, %v700
      %v717 = vpack.c.bf16 %v701, %v701
      %718 = vst [vmem:[%s361] sm:$0xf] %v702
      %719 = vst [vmem:[%s361 + $0x4] sm:$0xf] %v703
      %720 = vst [vmem:[%s361 + $0x8] sm:$0xf] %v704
      %721 = vst [vmem:[%s361 + $0xc] sm:$0xf] %v705
      %722 = vst [vmem:[%s361 + $0x10] sm:$0xf] %v706
      %723 = vst [vmem:[%s361 + $0x14] sm:$0xf] %v707
      %724 = vst [vmem:[%s361 + $0x18] sm:$0xf] %v708
      %725 = vst [vmem:[%s361 + $0x1c] sm:$0xf] %v709
      %726 = vst [vmem:[%s361 + $0x20] sm:$0xf] %v710
      %727 = vst [vmem:[%s361 + $0x24] sm:$0xf] %v711
      %728 = vst [vmem:[%s361 + $0x28] sm:$0xf] %v712
      %729 = vst [vmem:[%s361 + $0x2c] sm:$0xf] %v713
      %730 = vst [vmem:[%s361 + $0x30] sm:$0xf] %v714
      %731 = vst [vmem:[%s361 + $0x34] sm:$0xf] %v715
      %732 = vst [vmem:[%s361 + $0x38] sm:$0xf] %v716
      %733 = vst [vmem:[%s361 + $0x3c] sm:$0xf] %v717
      %s734 = smul.u32 16, %s23
      %p735 = scmp.lt.s32.totalorder %s22, 1
      %s736 = scalar_select %p735, %s22, 1
      %p737 = scmp.lt.s32.totalorder %s734, 31
      %s738 = scalar_select %p737, %s734, 31
      %s739 = smul.addr %s736, 32
      %s740 = sadd.s32 %s738, %s739
      %s741 = smul.addr %s740, 4
      %s742 = scalar_lea.vmem %s7, %s741
      // Predicated region
      $region49: #{residual_block_forward.5} parent=47 // pred_check
        %p743 = pneg %p219
      $region50: #{residual_block_forward.5} parent=47 // pred_check_branch
        %745 = sbr.rel (%p743) target = $region52
      $region51: #{residual_block_forward.5} parent=47 // pred_region
        %s746 = smul.u32 16, %s23
      $region52: #{residual_block_forward.5} parent=47 // pred_fallthru
        _
    $region48: #{residual_block_forward.5} parent=5 // pred_fallthru
      _
    %p747 = scmp.le.s32.totalorder 2, %s13
    // Predicated region
    $region53: #{residual_block_forward.5} parent=5 // pred_check
      %p748 = pneg %p747
    $region54: #{residual_block_forward.5} parent=5 // pred_check_branch
      %750 = sbr.rel (%p748) target = $region56
    $region55: #{residual_block_forward.5} parent=5 // pred_region
      %s751 = ssub.s32 %s13, 2
      // Predicated region
      $region57: #{residual_block_forward.5} parent=55 // pred_check
        %p752 = pneg %p225
      $region58: #{residual_block_forward.5} parent=55 // pred_check_branch
        %754 = sbr.rel (%p752) target = $region60
      $region59: #{residual_block_forward.5} parent=55 // pred_region
        %s755 = smul.u32 16, %s25
        %p756 = scmp.lt.s32.totalorder %s24, 1
        %s757 = scalar_select %p756, %s24, 1
        %p758 = scmp.lt.s32.totalorder %s755, 31
        %s759 = scalar_select %p758, %s755, 31
        %s760 = smul.addr %s757, 32
        %s761 = sadd.s32 %s759, %s760
        %s762 = smul.addr %s761, 4
        %s763 = scalar_lea.vmem %s7, %s762
      $region60: #{residual_block_forward.5} parent=55 // pred_fallthru
        _
    $region56: #{residual_block_forward.5} parent=5 // pred_fallthru
      _
  $region6: #{residual_block_forward.5} parent=0 // loop_footer
    %s17 = sadd.s32 1, %s13
  $region7: #{residual_block_forward.5} parent=0 // loop_footer_branch
    %12 = sbr.rel target = $region3
  $region8: #{residual_block_forward.5} parent=0 // loop_exit
    _

// kernel: residual_block_forward.4
$region0: #{residual_block_forward.4}
  #allocation0 [shape = 'u32[]', space=smem, size = 0x4, offset = 0x4, fixed_abs, tag = 'smem constant byte address 0x4 - core index']
  #allocation1 [shape = 'u32[72,128]{1,0:T(1,128)}', space=vmem, size = 0x9000, scoped, tag = 'internal scratch']
  %s0 = inlined_call_operand.vmem [shape: bf16[4,10,18,128], index: 0, kind: input, shape index: {}]
  %s1 = inlined_call_operand.vmem [shape: bf16[3,3,128,128], index: 1, kind: input, shape index: {}]
  %s2 = inlined_call_operand.vmem [shape: f32[1,128], index: 2, kind: input, shape index: {}]
  %s3 = inlined_call_operand.vmem [shape: f32[128,4], index: 3, kind: input, shape index: {}]
  %s4 = inlined_call_operand.vmem [shape: f32[4,128], index: 4, kind: input, shape index: {}]
  %s5 = inlined_call_operand.vmem [shape: f32[2,256,128], index: 5, kind: output, shape index: {0}]
  %s6 = inlined_call_operand.vmem [shape: f32[2,2,4], index: 6, kind: output, shape index: {1}]
  %7 = xla_tuple %s5, %s6
  %s8 = sld [smem:[#allocation0]]
  $region65: #{residual_block_forward.4} parent=0
    _
  %s10 = ssub.s32 1, %s8
  %s11 = scalar_select 0, %s10, %s8
  loop: start=0, step=1, limit=6
  $region2: #{residual_block_forward.4} parent=0 // loop_pre_header
    _
  $region3: #{residual_block_forward.4} parent=0 // loop_header
    %s13 = sphi 0, %s17
    %p14 = scmp.ge.s32.totalorder %s13, 6
    %s20 = sphi 0, %s32
    %s21 = sphi 0, %s28
    %s22 = sphi 0, %s20
    %s23 = sphi 0, %s21
    %s24 = sphi 0, %s22
    %s25 = sphi 0, %s23
    %s39 = sphi 0, %s41
    %s42 = sphi 0, %s39
    %s43 = sphi 0, %s42
    %s59 = sphi 0, %s43
    %s63 = sphi 0, %s63
    %s65 = sphi 0, %s63
    %s66 = sphi 0, %s65
    %s80 = sphi 0, %s66
    %s84 = sphi 0, %s84
    %s86 = sphi 0, %s84
    %s87 = sphi 0, %s86
    %s101 = sphi 0, %s87
    %s105 = sphi 0, %s105
    %s107 = sphi 0, %s105
    %s108 = sphi 0, %s107
    %s122 = sphi 0, %s108
    %s126 = sphi 0, %s126
    %s128 = sphi 0, %s126
    %s129 = sphi 0, %s128
    %s143 = sphi 0, %s129
    %s151 = sphi 0, %s153
    %s154 = sphi 0, %s151
    %s155 = sphi 0, %s154
    %s171 = sphi 0, %s155
    %s177 = sphi 0, %s179
    %s180 = sphi 0, %s177
    %s181 = sphi 0, %s180
    %s197 = sphi 0, %s181
  $region4: #{residual_block_forward.4} parent=0 // loop_header_branch
    %16 = sbr.rel (%p14) target = $region8
  $region5: #{residual_block_forward.4} parent=0 // loop_body
    %s18 = ssub.s32 %s13, 1
    %s19 = ssub.s32 %s13, 2
    %s26 = sadd.s32 1, %s21
    %p27 = scmp.ge.s32.totalorder %s26, 2
    %s28 = scalar_select %p27, 0, %s26
    %s29 = sadd.s32 1, %s20
    %s30 = scalar_select %p27, %s29, %s20
    %p31 = scmp.ge.s32.totalorder %s30, 2
    %s32 = scalar_select %p31, 0, %s30
    %s33 = smul.u32 %s20, 2
    %s34 = sadd.s32 %s33, %s21
    %s35 = smul.u32 %s32, 2
    %s36 = sadd.s32 %s35, %s28
    %s37 = ssub.s32 %s34, %s36
    %p38 = scmp.eq.s32.totalorder %s37, 0
    %s40 = sadd.s32 %s39, 1
    %s41 = scalar_select %p38, %s39, %s40
    %p44 = pneg %p38
    %p45 = scmp.eq.s32.totalorder %s13, 3
    %p46 = por %p44, %p45
    %p47 = scmp.ne.s32.totalorder %s39, %s42
    %p48 = scmp.eq.s32.totalorder %s13, 0
    %p49 = por %p47, %p48
    %p50 = scmp.ne.s32.totalorder %s39, %s42
    %p51 = scmp.eq.s32.totalorder %s18, 3
    %p52 = por %p50, %p51
    %p53 = scmp.ne.s32.totalorder %s42, %s43
    %p54 = scmp.eq.s32.totalorder %s18, 0
    %p55 = por %p53, %p54
    %p56 = scmp.ne.s32.totalorder %s42, %s43
    %p57 = scmp.eq.s32.totalorder %s19, 3
    %p58 = por %p56, %p57
    %p60 = scmp.ne.s32.totalorder %s43, %s59
    %p61 = scmp.eq.s32.totalorder %s19, 0
    %p62 = por %p60, %p61
    %s64 = sadd.s32 %s63, 1
    %p67 = scmp.eq.s32.totalorder %s13, 3
    %p68 = scmp.ne.s32.totalorder %s63, %s65
    %p69 = scmp.eq.s32.totalorder %s13, 0
    %p70 = por %p68, %p69
    %p71 = scmp.ne.s32.totalorder %s63, %s65
    %p72 = scmp.eq.s32.totalorder %s18, 3
    %p73 = por %p71, %p72
    %p74 = scmp.ne.s32.totalorder %s65, %s66
    %p75 = scmp.eq.s32.totalorder %s18, 0
    %p76 = por %p74, %p75
    %p77 = scmp.ne.s32.totalorder %s65, %s66
    %p78 = scmp.eq.s32.totalorder %s19, 3
    %p79 = por %p77, %p78
    %p81 = scmp.ne.s32.totalorder %s66, %s80
    %p82 = scmp.eq.s32.totalorder %s19, 0
    %p83 = por %p81, %p82
    %s85 = sadd.s32 %s84, 1
    %p88 = scmp.eq.s32.totalorder %s13, 3
    %p89 = scmp.ne.s32.totalorder %s84, %s86
    %p90 = scmp.eq.s32.totalorder %s13, 0
    %p91 = por %p89, %p90
    %p92 = scmp.ne.s32.totalorder %s84, %s86
    %p93 = scmp.eq.s32.totalorder %s18, 3
    %p94 = por %p92, %p93
    %p95 = scmp.ne.s32.totalorder %s86, %s87
    %p96 = scmp.eq.s32.totalorder %s18, 0
    %p97 = por %p95, %p96
    %p98 = scmp.ne.s32.totalorder %s86, %s87
    %p99 = scmp.eq.s32.totalorder %s19, 3
    %p100 = por %p98, %p99
    %p102 = scmp.ne.s32.totalorder %s87, %s101
    %p103 = scmp.eq.s32.totalorder %s19, 0
    %p104 = por %p102, %p103
    %s106 = sadd.s32 %s105, 1
    %p109 = scmp.eq.s32.totalorder %s13, 3
    %p110 = scmp.ne.s32.totalorder %s105, %s107
    %p111 = scmp.eq.s32.totalorder %s13, 0
    %p112 = por %p110, %p111
    %p113 = scmp.ne.s32.totalorder %s105, %s107
    %p114 = scmp.eq.s32.totalorder %s18, 3
    %p115 = por %p113, %p114
    %p116 = scmp.ne.s32.totalorder %s107, %s108
    %p117 = scmp.eq.s32.totalorder %s18, 0
    %p118 = por %p116, %p117
    %p119 = scmp.ne.s32.totalorder %s107, %s108
    %p120 = scmp.eq.s32.totalorder %s19, 3
    %p121 = por %p119, %p120
    %p123 = scmp.ne.s32.totalorder %s108, %s122
    %p124 = scmp.eq.s32.totalorder %s19, 0
    %p125 = por %p123, %p124
    %s127 = sadd.s32 %s126, 1
    %p130 = scmp.eq.s32.totalorder %s13, 3
    %p131 = scmp.ne.s32.totalorder %s126, %s128
    %p132 = scmp.eq.s32.totalorder %s13, 0
    %p133 = por %p131, %p132
    %p134 = scmp.ne.s32.totalorder %s126, %s128
    %p135 = scmp.eq.s32.totalorder %s18, 3
    %p136 = por %p134, %p135
    %p137 = scmp.ne.s32.totalorder %s128, %s129
    %p138 = scmp.eq.s32.totalorder %s18, 0
    %p139 = por %p137, %p138
    %p140 = scmp.ne.s32.totalorder %s128, %s129
    %p141 = scmp.eq.s32.totalorder %s19, 3
    %p142 = por %p140, %p141
    %p144 = scmp.ne.s32.totalorder %s129, %s143
    %p145 = scmp.eq.s32.totalorder %s19, 0
    %p146 = por %p144, %p145
    %s147 = ssub.s32 %s20, %s32
    %s148 = ssub.s32 %s21, %s28
    %s149 = sor.u32 %s147, %s148
    %p150 = scmp.eq.s32.totalorder %s149, 0
    %s152 = sadd.s32 %s151, 1
    %s153 = scalar_select %p150, %s151, %s152
    %p156 = pneg %p150
    %p157 = scmp.eq.s32.totalorder %s13, 3
    %p158 = por %p156, %p157
    %p159 = scmp.ne.s32.totalorder %s151, %s154
    %p160 = scmp.eq.s32.totalorder %s13, 0
    %p161 = por %p159, %p160
    %p162 = scmp.ne.s32.totalorder %s151, %s154
    %p163 = scmp.eq.s32.totalorder %s18, 3
    %p164 = por %p162, %p163
    %p165 = scmp.ne.s32.totalorder %s154, %s155
    %p166 = scmp.eq.s32.totalorder %s18, 0
    %p167 = por %p165, %p166
    %p168 = scmp.ne.s32.totalorder %s154, %s155
    %p169 = scmp.eq.s32.totalorder %s19, 3
    %p170 = por %p168, %p169
    %p172 = scmp.ne.s32.totalorder %s155, %s171
    %p173 = scmp.eq.s32.totalorder %s19, 0
    %p174 = por %p172, %p173
    %s175 = ssub.s32 %s20, %s32
    %p176 = scmp.eq.s32.totalorder %s175, 0
    %s178 = sadd.s32 %s177, 1
    %s179 = scalar_select %p176, %s177, %s178
    %p182 = pneg %p176
    %p183 = scmp.eq.s32.totalorder %s13, 3
    %p184 = por %p182, %p183
    %p185 = scmp.ne.s32.totalorder %s177, %s180
    %p186 = scmp.eq.s32.totalorder %s13, 0
    %p187 = por %p185, %p186
    %p188 = scmp.ne.s32.totalorder %s177, %s180
    %p189 = scmp.eq.s32.totalorder %s18, 3
    %p190 = por %p188, %p189
    %p191 = scmp.ne.s32.totalorder %s180, %s181
    %p192 = scmp.eq.s32.totalorder %s18, 0
    %p193 = por %p191, %p192
    %p194 = scmp.ne.s32.totalorder %s180, %s181
    %p195 = scmp.eq.s32.totalorder %s19, 3
    %p196 = por %p194, %p195
    %p198 = scmp.ne.s32.totalorder %s181, %s197
    %p199 = scmp.eq.s32.totalorder %s19, 0
    %p200 = por %p198, %p199
    %p201 = scmp.le.s32.totalorder 1, %s13
    %p202 = scmp.lt.s32.totalorder %s13, 5
    %p203 = pnand %p201, %p202
    %p204 = pneg %p203
    // Predicated region
    $region9: #{residual_block_forward.4} parent=5 // pred_check
      _
    $region10: #{residual_block_forward.4} parent=5 // pred_check_branch
      %206 = sbr.rel (%p203) target = $region12
    $region11: #{residual_block_forward.4} parent=5 // pred_region
      %s207 = ssub.s32 %s13, 1
      // Predicated region
      $region13: #{residual_block_forward.4} parent=11 // pred_check
        %p208 = pneg %p76
      $region14: #{residual_block_forward.4} parent=11 // pred_check_branch
        %210 = sbr.rel (%p208) target = $region16
      $region15: #{residual_block_forward.4} parent=11 // pred_region
        _
      $region16: #{residual_block_forward.4} parent=11 // pred_fallthru
        _
      // Predicated region
      $region17: #{residual_block_forward.4} parent=11 // pred_check
        %p211 = pneg %p97
      $region18: #{residual_block_forward.4} parent=11 // pred_check_branch
        %213 = sbr.rel (%p211) target = $region20
      $region19: #{residual_block_forward.4} parent=11 // pred_region
        _
      $region20: #{residual_block_forward.4} parent=11 // pred_fallthru
        _
      // Predicated region
      $region21: #{residual_block_forward.4} parent=11 // pred_check
        %p214 = pneg %p118
      $region22: #{residual_block_forward.4} parent=11 // pred_check_branch
        %216 = sbr.rel (%p214) target = $region24
      $region23: #{residual_block_forward.4} parent=11 // pred_region
        _
      $region24: #{residual_block_forward.4} parent=11 // pred_fallthru
        _
      // Predicated region
      $region25: #{residual_block_forward.4} parent=11 // pred_check
        %p217 = pneg %p139
      $region26: #{residual_block_forward.4} parent=11 // pred_check_branch
        %219 = sbr.rel (%p217) target = $region28
      $region27: #{residual_block_forward.4} parent=11 // pred_region
        _
      $region28: #{residual_block_forward.4} parent=11 // pred_fallthru
        _
    $region12: #{residual_block_forward.4} parent=5 // pred_fallthru
      _
    %p220 = scmp.lt.s32.totalorder %s13, 4
    // Predicated region
    $region29: #{residual_block_forward.4} parent=5 // pred_check
      %p221 = pneg %p220
    $region30: #{residual_block_forward.4} parent=5 // pred_check_branch
      %223 = sbr.rel (%p221) target = $region32
    $region31: #{residual_block_forward.4} parent=5 // pred_region
      // Predicated region
      $region33: #{residual_block_forward.4} parent=31 // pred_check
        %p224 = pneg %p49
      $region34: #{residual_block_forward.4} parent=31 // pred_check_branch
        %226 = sbr.rel (%p224) target = $region36
      $region35: #{residual_block_forward.4} parent=31 // pred_region
        %s227 = smul.u32 %s20, 2
        %s228 = sadd.s32 %s227, %s21
        %p229 = scmp.lt.s32.totalorder %s228, 3
        %s230 = scalar_select %p229, %s228, 3
        %s231 = smul.addr %s230, 30
        %s232 = smul.addr %s231, 4
        %s233 = scalar_lea.vmem %s0, %s232
        %s234 = smul.u32 %s20, 2
        %s235 = sadd.s32 %s234, %s21
      $region36: #{residual_block_forward.4} parent=31 // pred_fallthru
        _
    $region32: #{residual_block_forward.4} parent=5 // pred_fallthru
      _
    %p236 = scmp.le.s32.totalorder 1, %s13
    %p237 = scmp.lt.s32.totalorder %s13, 5
    %p238 = pnand %p236, %p237
    %p239 = pneg %p238
    // Predicated region
    $region37: #{residual_block_forward.4} parent=5 // pred_check
      _
    $region38: #{residual_block_forward.4} parent=5 // pred_check_branch
      %241 = sbr.rel (%p238) target = $region40
    $region39: #{residual_block_forward.4} parent=5 // pred_region
      %s242 = ssub.s32 %s13, 1
      %s243 = smul.u32 %s22, 2
      %s244 = sadd.s32 %s243, %s23
      %p245 = scmp.lt.s32.totalorder %s244, 3
      %s246 = scalar_select %p245, %s244, 3
      %s247 = smul.addr %s246, 30
      %s248 = smul.addr %s247, 4
      %s249 = scalar_lea.vmem %s0, %s248
      %p250 = pneg %p55
      %p251 = pneg %p52
      %p252 = pneg %p76
      %p253 = pneg %p73
      %p254 = pneg %p97
      %p255 = pneg %p94
      %p256 = pneg %p118
      %p257 = pneg %p115
      %p258 = pneg %p139
      %p259 = pneg %p136
      %p260 = pneg %p167
      %p261 = pneg %p164
      %s262 = smul.u32 16, %s23
      %p263 = scmp.lt.s32.totalorder %s22, 1
      %s264 = scalar_select %p263, %s22, 1
      %p265 = scmp.lt.s32.totalorder %s262, 31
      %s266 = scalar_select %p265, %s262, 31
      %s267 = smul.addr %s264, 32
      %s268 = sadd.s32 %s266, %s267
      %s269 = smul.addr %s268, 8
      %s270 = scalar_lea.vmem %s5, %s269
      %p271 = pneg %p193
      %p272 = pneg %p190
      %p273 = scmp.lt.s32.totalorder %s22, 1
      %s274 = scalar_select %p273, %s22, 1
      %s275 = smul.addr %s274, 2
      %s276 = scalar_lea.vmem %s6, %s275
      %s277 = smul.u32 %s22, 2
      %s278 = sadd.s32 %s277, %s23
      %p279 = scmp.lt.s32.totalorder %s278, 3
      %s280 = scalar_select %p279, %s278, 3
      %s281 = smul.addr %s280, 30
      %s282 = smul.addr %s281, 4
      %s283 = scalar_lea.vmem %s0, %s282
      %s284 = smul.u32 %s22, 2
      %s285 = sadd.s32 %s284, %s23
      %s286 = smul.u32 16, %s23
      %p287 = scmp.lt.s32.totalorder %s22, 1
      %s288 = scalar_select %p287, %s22, 1
      %p289 = scmp.lt.s32.totalorder %s286, 31
      %s290 = scalar_select %p289, %s286, 31
      %s291 = smul.addr %s288, 32
      %s292 = sadd.s32 %s290, %s291
      %s293 = smul.addr %s292, 8
      %s294 = scalar_lea.vmem %s5, %s293
      %s295 = smul.u32 16, %s23
      %p296 = scmp.lt.s32.totalorder %s22, 1
      %s297 = scalar_select %p296, %s22, 1
      %s298 = smul.addr %s297, 2
      %s299 = scalar_lea.vmem %s6, %s298
      %v300 = vld [vmem:[%s283] sm:$0xf]
      %v301 = vld [vmem:[%s283 + $0x4] sm:$0xf]
      %v302 = vld [vmem:[%s283 + $0xc] sm:$0xf]
      %v303 = vld [vmem:[%s283 + $0x10] sm:$0xf]
      %v304 = vld [vmem:[%s283 + $0x18] sm:$0xf]
      %v305 = vld [vmem:[%s283 + $0x1c] sm:$0xf]
      %v306 = vld [vmem:[%s283 + $0x24] sm:$0xf]
      %v307 = vld [vmem:[%s283 + $0x28] sm:$0xf]
      %v308 = vld [vmem:[%s283 + $0x30] sm:$0xf]
      %v309 = vld [vmem:[%s283 + $0x34] sm:$0xf]
      %v310 = vld [vmem:[%s283 + $0x3c] sm:$0xf]
      %v311 = vld [vmem:[%s283 + $0x40] sm:$0xf]
      %v312 = vld [vmem:[%s283 + $0x48] sm:$0xf]
      %v313 = vld [vmem:[%s283 + $0x4c] sm:$0xf]
      %v314 = vld [vmem:[%s283 + $0x54] sm:$0xf]
      %v315 = vld [vmem:[%s283 + $0x58] sm:$0xf]
      %v316 = vld [vmem:[%s1] sm:$0xf]
      %v317 = vld [vmem:[%s1 + $0x4] sm:$0xf]
      %v318 = vld [vmem:[%s1 + $0x8] sm:$0xf]
      %v319 = vld [vmem:[%s1 + $0xc] sm:$0xf]
      %v320 = vld [vmem:[%s1 + $0x10] sm:$0xf]
      %v321 = vld [vmem:[%s1 + $0x14] sm:$0xf]
      %v322 = vld [vmem:[%s1 + $0x18] sm:$0xf]
      %v323 = vld [vmem:[%s1 + $0x1c] sm:$0xf]
      %v324 = vld [vmem:[%s1 + $0x20] sm:$0xf]
      %v325 = vld [vmem:[%s1 + $0x24] sm:$0xf]
      %v326 = vld [vmem:[%s1 + $0x28] sm:$0xf]
      %v327 = vld [vmem:[%s1 + $0x2c] sm:$0xf]
      %v328 = vld [vmem:[%s1 + $0x30] sm:$0xf]
      %v329 = vld [vmem:[%s1 + $0x34] sm:$0xf]
      %v330 = vld [vmem:[%s1 + $0x38] sm:$0xf]
      %v331 = vld [vmem:[%s1 + $0x3c] sm:$0xf]
      %v332 = vld [vmem:[%s283 + $0x8] sm:$0x1]
      %v333 = vld [vmem:[%s283 + $0x14] sm:$0x1]
      %v334 = vld [vmem:[%s283 + $0x20] sm:$0x1]
      %v335 = vld [vmem:[%s283 + $0x2c] sm:$0x1]
      %v336 = vld [vmem:[%s283 + $0x38] sm:$0x1]
      %v337 = vld [vmem:[%s283 + $0x44] sm:$0x1]
      %v338 = vld [vmem:[%s283 + $0x50] sm:$0x1]
      %v339 = vld [vmem:[%s283 + $0x5c] sm:$0x1]
      %vm340 = vsmask.f32 3328
      %vm341 = vsmask.f32 7440
      %vm342 = vmor %vm340, %vm341
      %v344 = vshrl.u32 %v300, 16
      %v346 = vrot.slane %v344, 4
      %v347 = vshll.u32 %v300, 16
      %v349 = vrot.slane %v347, 5
      %v350 = vor.u32 %v346, %v349
      %v351 = vrot.slane %v350, 4
      %v353 = vshll.u32 %v301, 16
      %v355 = vrot.slane %v353, 5
      %v356 = vsel %vm342, %v351, %v355
      %v357 = vshrl.u32 %v301, 16
      %v359 = vrot.slane %v357, 4
      %v360 = vor.u32 %v359, %v355
      %v361 = vrot.slane %v360, 4
      %v363 = vshll.u32 %v332, 16
      %v365 = vrot.slane %v363, 5
      %v366 = vsel %vm342, %v361, %v365
      %v368 = vshrl.u32 %v302, 16
      %v370 = vrot.slane %v368, 4
      %v371 = vshll.u32 %v302, 16
      %v373 = vrot.slane %v371, 5
      %v374 = vor.u32 %v370, %v373
      %v375 = vrot.slane %v374, 4
      %v377 = vshll.u32 %v303, 16
      %v379 = vrot.slane %v377, 5
      %v380 = vsel %vm342, %v375, %v379
      %v381 = vshrl.u32 %v303, 16
      %v383 = vrot.slane %v381, 4
      %v384 = vor.u32 %v383, %v379
      %v385 = vrot.slane %v384, 4
      %v387 = vshll.u32 %v333, 16
      %v389 = vrot.slane %v387, 5
      %v390 = vsel %vm342, %v385, %v389
      %v392 = vshrl.u32 %v304, 16
      %v394 = vrot.slane %v392, 4
      %v395 = vshll.u32 %v304, 16
      %v397 = vrot.slane %v395, 5
      %v398 = vor.u32 %v394, %v397
      %v399 = vrot.slane %v398, 4
      %v401 = vshll.u32 %v305, 16
      %v403 = vrot.slane %v401, 5
      %v404 = vsel %vm342, %v399, %v403
      %v405 = vshrl.u32 %v305, 16
      %v407 = vrot.slane %v405, 4
      %v408 = vor.u32 %v407, %v403
      %v409 = vrot.slane %v408, 4
      %v411 = vshll.u32 %v334, 16
      %v413 = vrot.slane %v411, 5
      %v414 = vsel %vm342, %v409, %v413
      %v416 = vshrl.u32 %v306, 16
      %v418 = vrot.slane %v416, 4
      %v419 = vshll.u32 %v306, 16
      %v421 = vrot.slane %v419, 5
      %v422 = vor.u32 %v418, %v421
      %v423 = vrot.slane %v422, 4
      %v425 = vshll.u32 %v307, 16
      %v427 = vrot.slane %v425, 5
      %v428 = vsel %vm342, %v423, %v427
      %v429 = vshrl.u32 %v307, 16
      %v431 = vrot.slane %v429, 4
      %v432 = vor.u32 %v431, %v427
      %v433 = vrot.slane %v432, 4
      %v435 = vshll.u32 %v335, 16
      %v437 = vrot.slane %v435, 5
      %v438 = vsel %vm342, %v433, %v437
      %v440 = vshrl.u32 %v308, 16
      %v442 = vrot.slane %v440, 4
      %v443 = vshll.u32 %v308, 16
      %v445 = vrot.slane %v443, 5
      %v446 = vor.u32 %v442, %v445
      %v447 = vrot.slane %v446, 4
      %v449 = vshll.u32 %v309, 16
      %v451 = vrot.slane %v449, 5
      %v452 = vsel %vm342, %v447, %v451
      %v453 = vshrl.u32 %v309, 16
      %v455 = vrot.slane %v453, 4
      %v456 = vor.u32 %v455, %v451
      %v457 = vrot.slane %v456, 4
      %v459 = vshll.u32 %v336, 16
      %v461 = vrot.slane %v459, 5
      %v462 = vsel %vm342, %v457, %v461
      %v464 = vshrl.u32 %v310, 16
      %v466 = vrot.slane %v464, 4
      %v467 = vshll.u32 %v310, 16
      %v469 = vrot.slane %v467, 5
      %v470 = vor.u32 %v466, %v469
      %v471 = vrot.slane %v470, 4
      %v473 = vshll.u32 %v311, 16
      %v475 = vrot.slane %v473, 5
      %v476 = vsel %vm342, %v471, %v475
      %v477 = vshrl.u32 %v311, 16
      %v479 = vrot.slane %v477, 4
      %v480 = vor.u32 %v479, %v475
      %v481 = vrot.slane %v480, 4
      %v483 = vshll.u32 %v337, 16
      %v485 = vrot.slane %v483, 5
      %v486 = vsel %vm342, %v481, %v485
      %v488 = vshrl.u32 %v312, 16
      %v490 = vrot.slane %v488, 4
      %v491 = vshll.u32 %v312, 16
      %v493 = vrot.slane %v491, 5
      %v494 = vor.u32 %v490, %v493
      %v495 = vrot.slane %v494, 4
      %v497 = vshll.u32 %v313, 16
      %v499 = vrot.slane %v497, 5
      %v500 = vsel %vm342, %v495, %v499
      %v501 = vshrl.u32 %v313, 16
      %v503 = vrot.slane %v501, 4
      %v504 = vor.u32 %v503, %v499
      %v505 = vrot.slane %v504, 4
      %v507 = vshll.u32 %v338, 16
      %v509 = vrot.slane %v507, 5
      %v510 = vsel %vm342, %v505, %v509
      %v512 = vshrl.u32 %v314, 16
      %v514 = vrot.slane %v512, 4
      %v515 = vshll.u32 %v314, 16
      %v517 = vrot.slane %v515, 5
      %v518 = vor.u32 %v514, %v517
      %v519 = vrot.slane %v518, 4
      %v521 = vshll.u32 %v315, 16
      %v523 = vrot.slane %v521, 5
      %v524 = vsel %vm342, %v519, %v523
      %v525 = vshrl.u32 %v315, 16
      %v527 = vrot.slane %v525, 4
      %v528 = vor.u32 %v527, %v523
      %v529 = vrot.slane %v528, 4
      %v531 = vshll.u32 %v339, 16
      %v533 = vrot.slane %v531, 5
      %v534 = vsel %vm342, %v529, %v533
      %s535 = scalar_lea.vmem %s1, 64
      %v536 = vld [vmem:[%s535] sm:$0xf]
      %v537 = vld [vmem:[%s535 + $0x4] sm:$0xf]
      %v538 = vld [vmem:[%s535 + $0x8] sm:$0xf]
      %v539 = vld [vmem:[%s535 + $0xc] sm:$0xf]
      %v540 = vld [vmem:[%s535 + $0x10] sm:$0xf]
      %v541 = vld [vmem:[%s535 + $0x14] sm:$0xf]
      %v542 = vld [vmem:[%s535 + $0x18] sm:$0xf]
      %v543 = vld [vmem:[%s535 + $0x1c] sm:$0xf]
      %v544 = vld [vmem:[%s535 + $0x20] sm:$0xf]
      %v545 = vld [vmem:[%s535 + $0x24] sm:$0xf]
      %v546 = vld [vmem:[%s535 + $0x28] sm:$0xf]
      %v547 = vld [vmem:[%s535 + $0x2c] sm:$0xf]
      %v548 = vld [vmem:[%s535 + $0x30] sm:$0xf]
      %v549 = vld [vmem:[%s535 + $0x34] sm:$0xf]
      %v550 = vld [vmem:[%s535 + $0x38] sm:$0xf]
      %v551 = vld [vmem:[%s535 + $0x3c] sm:$0xf]
      %v552 = vunpack.c.l.b16 %v356
      %v553 = vunpack.c.l.b16 %v366
      %v554 = vunpack.c.l.b16 %v380
      %v555 = vunpack.c.l.b16 %v390
      %v556 = vunpack.c.l.b16 %v404
      %v557 = vunpack.c.l.b16 %v414
      %v558 = vunpack.c.l.b16 %v428
      %v559 = vunpack.c.l.b16 %v438
      %v560 = vunpack.c.l.b16 %v452
      %v561 = vunpack.c.l.b16 %v462
      %v562 = vunpack.c.l.b16 %v476
      %v563 = vunpack.c.l.b16 %v486
      %v564 = vunpack.c.l.b16 %v500
      %v565 = vunpack.c.l.b16 %v510
      %v566 = vunpack.c.l.b16 %v524
      %v567 = vunpack.c.l.b16 %v534
      %v568 = vpack.c.b16 %v553, %v552
      %v569 = vpack.c.b16 %v555, %v554
      %v570 = vpack.c.b16 %v557, %v556
      %v571 = vpack.c.b16 %v559, %v558
      %v572 = vpack.c.b16 %v561, %v560
      %v573 = vpack.c.b16 %v563, %v562
      %v574 = vpack.c.b16 %v565, %v564
      %v575 = vpack.c.b16 %v567, %v566
      %v600 = vunpack.c.l.b16 %v536
      %v601 = vunpack.c.l.b16 %v537
      %v602 = vunpack.c.l.b16 %v538
      %v603 = vunpack.c.l.b16 %v539
      %v604 = vunpack.c.l.b16 %v540
      %v605 = vunpack.c.l.b16 %v541
      %v606 = vunpack.c.l.b16 %v542
      %v607 = vunpack.c.l.b16 %v543
      %v608 = vunpack.c.l.b16 %v544
      %v609 = vunpack.c.l.b16 %v545
      %v610 = vunpack.c.l.b16 %v546
      %v611 = vunpack.c.l.b16 %v547
      %v612 = vunpack.c.l.b16 %v548
      %v613 = vunpack.c.l.b16 %v549
      %v614 = vunpack.c.l.b16 %v550
      %v615 = vunpack.c.l.b16 %v551
      %v616 = vpack.c.b16 %v601, %v600
      %v617 = vpack.c.b16 %v603, %v602
      %v618 = vpack.c.b16 %v605, %v604
      %v619 = vpack.c.b16 %v607, %v606
      %v620 = vpack.c.b16 %v609, %v608
      %v621 = vpack.c.b16 %v611, %v610
      %v622 = vpack.c.b16 %v613, %v612
      %v623 = vpack.c.b16 %v615, %v614
      %632 = vmatpush.bf16.msra.mxu0 %v623
      %633 = vmatpush.bf16.msra.mxu0 %v622
      %634 = vmatpush.bf16.msra.mxu0 %v621
      %635 = vmatpush.bf16.msra.mxu0 %v620
      %636 = vmatpush.bf16.msra.mxu0 %v619
      %637 = vmatpush.bf16.msra.mxu0 %v618
      %638 = vmatpush.bf16.msra.mxu0 %v617
      %639 = vmatpush.bf16.msra.mxu0 %v616
      %640 = vmatmul.bf16.gmra.mxu0 %v568
      %v641 = vpop.f32.mrf.mxu0
      %v642 = vadd.f32 0.0, %v641
      %v643 = vpop.f32.mrf.mxu0
      %v644 = vadd.f32 0.0, %v643
      %645 = vmatmul.bf16.gmra.mxu0 %v569
      %v646 = vpop.f32.mrf.mxu0
      %v647 = vadd.f32 0.0, %v646
      %v648 = vpop.f32.mrf.mxu0
      %v649 = vadd.f32 0.0, %v648
      %650 = vmatmul.bf16.gmra.mxu0 %v570
      %v651 = vpop.f32.mrf.mxu0
      %v652 = vadd.f32 0.0, %v651
      %v653 = vpop.f32.mrf.mxu0
      %v654 = vadd.f32 0.0, %v653
      %655 = vmatmul.bf16.gmra.mxu0 %v571
      %v656 = vpop.f32.mrf.mxu0
      %v657 = vadd.f32 0.0, %v656
      %v658 = vpop.f32.mrf.mxu0
      %v659 = vadd.f32 0.0, %v658
      %660 = vmatmul.bf16.gmra.mxu0 %v572
      %v661 = vpop.f32.mrf.mxu0
      %v662 = vadd.f32 0.0, %v661
      %v663 = vpop.f32.mrf.mxu0
      %v664 = vadd.f32 0.0, %v663
      %665 = vmatmul.bf16.gmra.mxu0 %v573
      %v666 = vpop.f32.mrf.mxu0
      %v667 = vadd.f32 0.0, %v666
      %v668 = vpop.f32.mrf.mxu0
      %v669 = vadd.f32 0.0, %v668
      %670 = vmatmul.bf16.gmra.mxu0 %v574
      %v671 = vpop.f32.mrf.mxu0
      %v672 = vadd.f32 0.0, %v671
      %v673 = vpop.f32.mrf.mxu0
      %v674 = vadd.f32 0.0, %v673
      %675 = vmatmul.bf16.gmra.mxu0 %v575
      %v676 = vpop.f32.mrf.mxu0
      %v677 = vadd.f32 0.0, %v676
      %v678 = vpop.f32.mrf.mxu0
      %v679 = vadd.f32 0.0, %v678
      %680 = vdwg.mxu0
      %v697 = vunpack.c.l.b16 %v300
      %v698 = vunpack.c.l.b16 %v301
      %v699 = vunpack.c.l.b16 %v302
      %v700 = vunpack.c.l.b16 %v303
      %v701 = vunpack.c.l.b16 %v304
      %v702 = vunpack.c.l.b16 %v305
      %v703 = vunpack.c.l.b16 %v306
      %v704 = vunpack.c.l.b16 %v307
      %v705 = vunpack.c.l.b16 %v308
      %v706 = vunpack.c.l.b16 %v309
      %v707 = vunpack.c.l.b16 %v310
      %v708 = vunpack.c.l.b16 %v311
      %v709 = vunpack.c.l.b16 %v312
      %v710 = vunpack.c.l.b16 %v313
      %v711 = vunpack.c.l.b16 %v314
      %v712 = vunpack.c.l.b16 %v315
      %v713 = vpack.c.b16 %v698, %v697
      %v714 = vpack.c.b16 %v700, %v699
      %v715 = vpack.c.b16 %v702, %v701
      %v716 = vpack.c.b16 %v704, %v703
      %v717 = vpack.c.b16 %v706, %v705
      %v718 = vpack.c.b16 %v708, %v707
      %v719 = vpack.c.b16 %v710, %v709
      %v720 = vpack.c.b16 %v712, %v711
      %v745 = vunpack.c.l.b16 %v316
      %v746 = vunpack.c.l.b16 %v317
      %v747 = vunpack.c.l.b16 %v318
      %v748 = vunpack.c.l.b16 %v319
      %v749 = vunpack.c.l.b16 %v320
      %v750 = vunpack.c.l.b16 %v321
      %v751 = vunpack.c.l.b16 %v322
      %v752 = vunpack.c.l.b16 %v323
      %v753 = vunpack.c.l.b16 %v324
      %v754 = vunpack.c.l.b16 %v325
      %v755 = vunpack.c.l.b16 %v326
      %v756 = vunpack.c.l.b16 %v327
      %v757 = vunpack.c.l.b16 %v328
      %v758 = vunpack.c.l.b16 %v329
      %v759 = vunpack.c.l.b16 %v330
      %v760 = vunpack.c.l.b16 %v331
      %v761 = vpack.c.b16 %v746, %v745
      %v762 = vpack.c.b16 %v748, %v747
      %v763 = vpack.c.b16 %v750, %v749
      %v764 = vpack.c.b16 %v752, %v751
      %v765 = vpack.c.b16 %v754, %v753
      %v766 = vpack.c.b16 %v756, %v755
      %v767 = vpack.c.b16 %v758, %v757
      %v768 = vpack.c.b16 %v760, %v759
      %777 = vmatpush.bf16.msra.mxu0 %v768
      %778 = vmatpush.bf16.msra.mxu0 %v767
      %779 = vmatpush.bf16.msra.mxu0 %v766
      %780 = vmatpush.bf16.msra.mxu0 %v765
      %781 = vmatpush.bf16.msra.mxu0 %v764
      %782 = vmatpush.bf16.msra.mxu0 %v763
      %783 = vmatpush.bf16.msra.mxu0 %v762
      %784 = vmatpush.bf16.msra.mxu0 %v761
      %785 = vmatmul.bf16.gmra.mxu0 %v713
      %v786 = vpop.f32.mrf.mxu0
      %v787 = vadd.f32 %v642, %v786
      %v788 = vpop.f32.mrf.mxu0
      %v789 = vadd.f32 %v644, %v788
      %790 = vmatmul.bf16.gmra.mxu0 %v714
      %v791 = vpop.f32.mrf.mxu0
      %v792 = vadd.f32 %v647, %v791
      %v793 = vpop.f32.mrf.mxu0
      %v794 = vadd.f32 %v649, %v793
      %795 = vmatmul.bf16.gmra.mxu0 %v715
      %v796 = vpop.f32.mrf.mxu0
      %v797 = vadd.f32 %v652, %v796
      %v798 = vpop.f32.mrf.mxu0
      %v799 = vadd.f32 %v654, %v798
      %800 = vmatmul.bf16.gmra.mxu0 %v716
      %v801 = vpop.f32.mrf.mxu0
      %v802 = vadd.f32 %v657, %v801
      %v803 = vpop.f32.mrf.mxu0
      %v804 = vadd.f32 %v659, %v803
      %805 = vmatmul.bf16.gmra.mxu0 %v717
      %v806 = vpop.f32.mrf.mxu0
      %v807 = vadd.f32 %v662, %v806
      %v808 = vpop.f32.mrf.mxu0
      %v809 = vadd.f32 %v664, %v808
      %810 = vmatmul.bf16.gmra.mxu0 %v718
      %v811 = vpop.f32.mrf.mxu0
      %v812 = vadd.f32 %v667, %v811
      %v813 = vpop.f32.mrf.mxu0
      %v814 = vadd.f32 %v669, %v813
      %815 = vmatmul.bf16.gmra.mxu0 %v719
      %v816 = vpop.f32.mrf.mxu0
      %v817 = vadd.f32 %v672, %v816
      %v818 = vpop.f32.mrf.mxu0
      %v819 = vadd.f32 %v674, %v818
      %820 = vmatmul.bf16.gmra.mxu0 %v720
      %v821 = vpop.f32.mrf.mxu0
      %v822 = vadd.f32 %v677, %v821
      %v823 = vpop.f32.mrf.mxu0
      %v824 = vadd.f32 %v679, %v823
      %825 = vdwg.mxu0
      %v826 = vld [vmem:[%s283] sm:$0xe]
      %v827 = vld [vmem:[%s283 + $0xc] sm:$0xe]
      %v828 = vld [vmem:[%s283 + $0x18] sm:$0xe]
      %v829 = vld [vmem:[%s283 + $0x24] sm:$0xe]
      %v830 = vld [vmem:[%s283 + $0x30] sm:$0xe]
      %v831 = vld [vmem:[%s283 + $0x3c] sm:$0xe]
      %v832 = vld [vmem:[%s283 + $0x48] sm:$0xe]
      %v833 = vld [vmem:[%s283 + $0x54] sm:$0xe]
      %vm850 = vcmask 1042432
      %vm851 = vcmask 1046532
      %vm852 = vmor %vm850, %vm851
      %v853 = vrot.slane %v826, 5
      %v854 = vrot.slane %v853, 4
      %v855 = vrot.slane %v301, 5
      %v856 = vsel %vm852, %v854, %v855
      %v857 = vrot.slane %v855, 4
      %v858 = vrot.slane %v332, 5
      %v859 = vsel %vm852, %v857, %v858
      %v860 = vrot.slane %v827, 5
      %v861 = vrot.slane %v860, 4
      %v862 = vrot.slane %v303, 5
      %v863 = vsel %vm852, %v861, %v862
      %v864 = vrot.slane %v862, 4
      %v865 = vrot.slane %v333, 5
      %v866 = vsel %vm852, %v864, %v865
      %v867 = vrot.slane %v828, 5
      %v868 = vrot.slane %v867, 4
      %v869 = vrot.slane %v305, 5
      %v870 = vsel %vm852, %v868, %v869
      %v871 = vrot.slane %v869, 4
      %v872 = vrot.slane %v334, 5
      %v873 = vsel %vm852, %v871, %v872
      %v874 = vrot.slane %v829, 5
      %v875 = vrot.slane %v874, 4
      %v876 = vrot.slane %v307, 5
      %v877 = vsel %vm852, %v875, %v876
      %v878 = vrot.slane %v876, 4
      %v879 = vrot.slane %v335, 5
      %v880 = vsel %vm852, %v878, %v879
      %v881 = vrot.slane %v830, 5
      %v882 = vrot.slane %v881, 4
      %v883 = vrot.slane %v309, 5
      %v884 = vsel %vm852, %v882, %v883
      %v885 = vrot.slane %v883, 4
      %v886 = vrot.slane %v336, 5
      %v887 = vsel %vm852, %v885, %v886
      %v888 = vrot.slane %v831, 5
      %v889 = vrot.slane %v888, 4
      %v890 = vrot.slane %v311, 5
      %v891 = vsel %vm852, %v889, %v890
      %v892 = vrot.slane %v890, 4
      %v893 = vrot.slane %v337, 5
      %v894 = vsel %vm852, %v892, %v893
      %v895 = vrot.slane %v832, 5
      %v896 = vrot.slane %v895, 4
      %v897 = vrot.slane %v313, 5
      %v898 = vsel %vm852, %v896, %v897
      %v899 = vrot.slane %v897, 4
      %v900 = vrot.slane %v338, 5
      %v901 = vsel %vm852, %v899, %v900
      %v902 = vrot.slane %v833, 5
      %v903 = vrot.slane %v902, 4
      %v904 = vrot.slane %v315, 5
      %v905 = vsel %vm852, %v903, %v904
      %v906 = vrot.slane %v904, 4
      %v907 = vrot.slane %v339, 5
      %v908 = vsel %vm852, %v906, %v907
      %s909 = scalar_lea.vmem %s1, 128
      %v910 = vld [vmem:[%s909] sm:$0xf]
      %v911 = vld [vmem:[%s909 + $0x4] sm:$0xf]
      %v912 = vld [vmem:[%s909 + $0x8] sm:$0xf]
      %v913 = vld [vmem:[%s909 + $0xc] sm:$0xf]
      %v914 = vld [vmem:[%s909 + $0x10] sm:$0xf]
      %v915 = vld [vmem:[%s909 + $0x14] sm:$0xf]
      %v916 = vld [vmem:[%s909 + $0x18] sm:$0xf]
      %v917 = vld [vmem:[%s909 + $0x1c] sm:$0xf]
      %v918 = vld [vmem:[%s909 + $0x20] sm:$0xf]
      %v919 = vld [vmem:[%s909 + $0x24] sm:$0xf]
      %v920 = vld [vmem:[%s909 + $0x28] sm:$0xf]
      %v921 = vld [vmem:[%s909 + $0x2c] sm:$0xf]
      %v922 = vld [vmem:[%s909 + $0x30] sm:$0xf]
      %v923 = vld [vmem:[%s909 + $0x34] sm:$0xf]
      %v924 = vld [vmem:[%s909 + $0x38] sm:$0xf]
      %v925 = vld [vmem:[%s909 + $0x3c] sm:$0xf]
      %v926 = vunpack.c.l.b16 %v856
      %v927 = vunpack.c.l.b16 %v859
      %v928 = vunpack.c.l.b16 %v863
      %v929 = vunpack.c.l.b16 %v866
      %v930 = vunpack.c.l.b16 %v870
      %v931 = vunpack.c.l.b16 %v873
      %v932 = vunpack.c.l.b16 %v877
      %v933 = vunpack.c.l.b16 %v880
      %v934 = vunpack.c.l.b16 %v884
      %v935 = vunpack.c.l.b16 %v887
      %v936 = vunpack.c.l.b16 %v891
      %v937 = vunpack.c.l.b16 %v894
      %v938 = vunpack.c.l.b16 %v898
      %v939 = vunpack.c.l.b16 %v901
      %v940 = vunpack.c.l.b16 %v905
      %v941 = vunpack.c.l.b16 %v908
      %v942 = vpack.c.b16 %v927, %v926
      %v943 = vpack.c.b16 %v929, %v928
      %v944 = vpack.c.b16 %v931, %v930
      %v945 = vpack.c.b16 %v933, %v932
      %v946 = vpack.c.b16 %v935, %v934
      %v947 = vpack.c.b16 %v937, %v936
      %v948 = vpack.c.b16 %v939, %v938
      %v949 = vpack.c.b16 %v941, %v940
      %v974 = vunpack.c.l.b16 %v910
      %v975 = vunpack.c.l.b16 %v911
      %v976 = vunpack.c.l.b16 %v912
      %v977 = vunpack.c.l.b16 %v913
      %v978 = vunpack.c.l.b16 %v914
      %v979 = vunpack.c.l.b16 %v915
      %v980 = vunpack.c.l.b16 %v916
      %v981 = vunpack.c.l.b16 %v917
      %v982 = vunpack.c.l.b16 %v918
      %v983 = vunpack.c.l.b16 %v919
      %v984 = vunpack.c.l.b16 %v920
      %v985 = vunpack.c.l.b16 %v921
      %v986 = vunpack.c.l.b16 %v922
      %v987 = vunpack.c.l.b16 %v923
      %v988 = vunpack.c.l.b16 %v924
      %v989 = vunpack.c.l.b16 %v925
      %v990 = vpack.c.b16 %v975, %v974
      %v991 = vpack.c.b16 %v977, %v976
      %v992 = vpack.c.b16 %v979, %v978
      %v993 = vpack.c.b16 %v981, %v980
      %v994 = vpack.c.b16 %v983, %v982
      %v995 = vpack.c.b16 %v985, %v984
      %v996 = vpack.c.b16 %v987, %v986
      %v997 = vpack.c.b16 %v989, %v988
      %1006 = vmatpush.bf16.msra.mxu0 %v997
      %1007 = vmatpush.bf16.msra.mxu0 %v996
      %1008 = vmatpush.bf16.msra.mxu0 %v995
      %1009 = vmatpush.bf16.msra.mxu0 %v994
      %1010 = vmatpush.bf16.msra.mxu0 %v993
      %1011 = vmatpush.bf16.msra.mxu0 %v992
      %1012 = vmatpush.bf16.msra.mxu0 %v991
      %1013 = vmatpush.bf16.msra.mxu0 %v990
      %1014 = vmatmul.bf16.gmra.mxu0 %v942
      %v1015 = vpop.f32.mrf.mxu0
      %v1016 = vadd.f32 0.0, %v1015
      %v1017 = vpop.f32.mrf.mxu0
      %v1018 = vadd.f32 0.0, %v1017
      %1019 = vmatmul.bf16.gmra.mxu0 %v943
      %v1020 = vpop.f32.mrf.mxu0
      %v1021 = vadd.f32 0.0, %v1020
      %v1022 = vpop.f32.mrf.mxu0
      %v1023 = vadd.f32 0.0, %v1022
      %1024 = vmatmul.bf16.gmra.mxu0 %v944
      %v1025 = vpop.f32.mrf.mxu0
      %v1026 = vadd.f32 0.0, %v1025
      %v1027 = vpop.f32.mrf.mxu0
      %v1028 = vadd.f32 0.0, %v1027
      %1029 = vmatmul.bf16.gmra.mxu0 %v945
      %v1030 = vpop.f32.mrf.mxu0
      %v1031 = vadd.f32 0.0, %v1030
      %v1032 = vpop.f32.mrf.mxu0
      %v1033 = vadd.f32 0.0, %v1032
      %1034 = vmatmul.bf16.gmra.mxu0 %v946
      %v1035 = vpop.f32.mrf.mxu0
      %v1036 = vadd.f32 0.0, %v1035
      %v1037 = vpop.f32.mrf.mxu0
      %v1038 = vadd.f32 0.0, %v1037
      %1039 = vmatmul.bf16.gmra.mxu0 %v947
      %v1040 = vpop.f32.mrf.mxu0
      %v1041 = vadd.f32 0.0, %v1040
      %v1042 = vpop.f32.mrf.mxu0
      %v1043 = vadd.f32 0.0, %v1042
      %1044 = vmatmul.bf16.gmra.mxu0 %v948
      %v1045 = vpop.f32.mrf.mxu0
      %v1046 = vadd.f32 0.0, %v1045
      %v1047 = vpop.f32.mrf.mxu0
      %v1048 = vadd.f32 0.0, %v1047
      %1049 = vmatmul.bf16.gmra.mxu0 %v949
      %v1050 = vpop.f32.mrf.mxu0
      %v1051 = vadd.f32 0.0, %v1050
      %v1052 = vpop.f32.mrf.mxu0
      %v1053 = vadd.f32 0.0, %v1052
      %1054 = vdwg.mxu0
      %v1055 = vadd.f32 %v787, %v1016
      %v1056 = vadd.f32 %v789, %v1018
      %v1057 = vadd.f32 %v792, %v1021
      %v1058 = vadd.f32 %v794, %v1023
      %v1059 = vadd.f32 %v797, %v1026
      %v1060 = vadd.f32 %v799, %v1028
      %v1061 = vadd.f32 %v802, %v1031
      %v1062 = vadd.f32 %v804, %v1033
      %v1063 = vadd.f32 %v807, %v1036
      %v1064 = vadd.f32 %v809, %v1038
      %v1065 = vadd.f32 %v812, %v1041
      %v1066 = vadd.f32 %v814, %v1043
      %v1067 = vadd.f32 %v817, %v1046
      %v1068 = vadd.f32 %v819, %v1048
      %v1069 = vadd.f32 %v822, %v1051
      %v1070 = vadd.f32 %v824, %v1053
      %s1071 = scalar_lea.vmem %s283, 12
      %v1072 = vld [vmem:[%s1071] sm:$0xf]
      %v1073 = vld [vmem:[%s1071 + $0x4] sm:$0xf]
      %v1074 = vld [vmem:[%s1071 + $0xc] sm:$0xf]
      %v1075 = vld [vmem:[%s1071 + $0x10] sm:$0xf]
      %v1076 = vld [vmem:[%s1071 + $0x18] sm:$0xf]
      %v1077 = vld [vmem:[%s1071 + $0x1c] sm:$0xf]
      %v1078 = vld [vmem:[%s1071 + $0x24] sm:$0xf]
      %v1079 = vld [vmem:[%s1071 + $0x28] sm:$0xf]
      %v1080 = vld [vmem:[%s1071 + $0x30] sm:$0xf]
      %v1081 = vld [vmem:[%s1071 + $0x34] sm:$0xf]
      %v1082 = vld [vmem:[%s1071 + $0x3c] sm:$0xf]
      %v1083 = vld [vmem:[%s1071 + $0x40] sm:$0xf]
      %v1084 = vld [vmem:[%s1071 + $0x48] sm:$0xf]
      %v1085 = vld [vmem:[%s1071 + $0x4c] sm:$0xf]
      %v1086 = vld [vmem:[%s1071 + $0x54] sm:$0xf]
      %v1087 = vld [vmem:[%s1071 + $0x58] sm:$0xf]
      %s1088 = scalar_lea.vmem %s1, 192
      %v1089 = vld [vmem:[%s1088] sm:$0xf]
      %v1090 = vld [vmem:[%s1088 + $0x4] sm:$0xf]
      %v1091 = vld [vmem:[%s1088 + $0x8] sm:$0xf]
      %v1092 = vld [vmem:[%s1088 + $0xc] sm:$0xf]
      %v1093 = vld [vmem:[%s1088 + $0x10] sm:$0xf]
      %v1094 = vld [vmem:[%s1088 + $0x14] sm:$0xf]
      %v1095 = vld [vmem:[%s1088 + $0x18] sm:$0xf]
      %v1096 = vld [vmem:[%s1088 + $0x1c] sm:$0xf]
      %v1097 = vld [vmem:[%s1088 + $0x20] sm:$0xf]
      %v1098 = vld [vmem:[%s1088 + $0x24] sm:$0xf]
      %v1099 = vld [vmem:[%s1088 + $0x28] sm:$0xf]
      %v1100 = vld [vmem:[%s1088 + $0x2c] sm:$0xf]
      %v1101 = vld [vmem:[%s1088 + $0x30] sm:$0xf]
      %v1102 = vld [vmem:[%s1088 + $0x34] sm:$0xf]
      %v1103 = vld [vmem:[%s1088 + $0x38] sm:$0xf]
      %v1104 = vld [vmem:[%s1088 + $0x3c] sm:$0xf]
      %v1121 = vunpack.c.l.b16 %v1072
      %v1122 = vunpack.c.l.b16 %v1073
      %v1123 = vunpack.c.l.b16 %v1074
      %v1124 = vunpack.c.l.b16 %v1075
      %v1125 = vunpack.c.l.b16 %v1076
      %v1126 = vunpack.c.l.b16 %v1077
      %v1127 = vunpack.c.l.b16 %v1078
      %v1128 = vunpack.c.l.b16 %v1079
      %v1129 = vunpack.c.l.b16 %v1080
      %v1130 = vunpack.c.l.b16 %v1081
      %v1131 = vunpack.c.l.b16 %v1082
      %v1132 = vunpack.c.l.b16 %v1083
      %v1133 = vunpack.c.l.b16 %v1084
      %v1134 = vunpack.c.l.b16 %v1085
      %v1135 = vunpack.c.l.b16 %v1086
      %v1136 = vunpack.c.l.b16 %v1087
      %v1137 = vpack.c.b16 %v1122, %v1121
      %v1138 = vpack.c.b16 %v1124, %v1123
      %v1139 = vpack.c.b16 %v1126, %v1125
      %v1140 = vpack.c.b16 %v1128, %v1127
      %v1141 = vpack.c.b16 %v1130, %v1129
      %v1142 = vpack.c.b16 %v1132, %v1131
      %v1143 = vpack.c.b16 %v1134, %v1133
      %v1144 = vpack.c.b16 %v1136, %v1135
      %v1169 = vunpack.c.l.b16 %v1089
      %v1170 = vunpack.c.l.b16 %v1090
      %v1171 = vunpack.c.l.b16 %v1091
      %v1172 = vunpack.c.l.b16 %v1092
      %v1173 = vunpack.c.l.b16 %v1093
      %v1174 = vunpack.c.l.b16 %v1094
      %v1175 = vunpack.c.l.b16 %v1095
      %v1176 = vunpack.c.l.b16 %v1096
      %v1177 = vunpack.c.l.b16 %v1097
      %v1178 = vunpack.c.l.b16 %v1098
      %v1179 = vunpack.c.l.b16 %v1099
      %v1180 = vunpack.c.l.b16 %v1100
      %v1181 = vunpack.c.l.b16 %v1101
      %v1182 = vunpack.c.l.b16 %v1102
      %v1183 = vunpack.c.l.b16 %v1103
      %v1184 = vunpack.c.l.b16 %v1104
      %v1185 = vpack.c.b16 %v1170, %v1169
      %v1186 = vpack.c.b16 %v1172, %v1171
      %v1187 = vpack.c.b16 %v1174, %v1173
      %v1188 = vpack.c.b16 %v1176, %v1175
      %v1189 = vpack.c.b16 %v1178, %v1177
      %v1190 = vpack.c.b16 %v1180, %v1179
      %v1191 = vpack.c.b16 %v1182, %v1181
      %v1192 = vpack.c.b16 %v1184, %v1183
      %1201 = vmatpush.bf16.msra.mxu0 %v1192
      %1202 = vmatpush.bf16.msra.mxu0 %v1191
      %1203 = vmatpush.bf16.msra.mxu0 %v1190
      %1204 = vmatpush.bf16.msra.mxu0 %v1189
      %1205 = vmatpush.bf16.msra.mxu0 %v1188
      %1206 = vmatpush.bf16.msra.mxu0 %v1187
      %1207 = vmatpush.bf16.msra.mxu0 %v1186
      %1208 = vmatpush.bf16.msra.mxu0 %v1185
      %1209 = vmatmul.bf16.gmra.mxu0 %v1137
      %v1210 = vpop.f32.mrf.mxu0
      %v1211 = vadd.f32 0.0, %v1210
      %v1212 = vpop.f32.mrf.mxu0
      %v1213 = vadd.f32 0.0, %v1212
      %1214 = vmatmul.bf16.gmra.mxu0 %v1138
      %v1215 = vpop.f32.mrf.mxu0
      %v1216 = vadd.f32 0.0, %v1215
      %v1217 = vpop.f32.mrf.mxu0
      %v1218 = vadd.f32 0.0, %v1217
      %1219 = vmatmul.bf16.gmra.mxu0 %v1139
      %v1220 = vpop.f32.mrf.mxu0
      %v1221 = vadd.f32 0.0, %v1220
      %v1222 = vpop.f32.mrf.mxu0
      %v1223 = vadd.f32 0.0, %v1222
      %1224 = vmatmul.bf16.gmra.mxu0 %v1140
      %v1225 = vpop.f32.mrf.mxu0
      %v1226 = vadd.f32 0.0, %v1225
      %v1227 = vpop.f32.mrf.mxu0
      %v1228 = vadd.f32 0.0, %v1227
      %1229 = vmatmul.bf16.gmra.mxu0 %v1141
      %v1230 = vpop.f32.mrf.mxu0
      %v1231 = vadd.f32 0.0, %v1230
      %v1232 = vpop.f32.mrf.mxu0
      %v1233 = vadd.f32 0.0, %v1232
      %1234 = vmatmul.bf16.gmra.mxu0 %v1142
      %v1235 = vpop.f32.mrf.mxu0
      %v1236 = vadd.f32 0.0, %v1235
      %v1237 = vpop.f32.mrf.mxu0
      %v1238 = vadd.f32 0.0, %v1237
      %1239 = vmatmul.bf16.gmra.mxu0 %v1143
      %v1240 = vpop.f32.mrf.mxu0
      %v1241 = vadd.f32 0.0, %v1240
      %v1242 = vpop.f32.mrf.mxu0
      %v1243 = vadd.f32 0.0, %v1242
      %1244 = vmatmul.bf16.gmra.mxu0 %v1144
      %v1245 = vpop.f32.mrf.mxu0
      %v1246 = vadd.f32 0.0, %v1245
      %v1247 = vpop.f32.mrf.mxu0
      %v1248 = vadd.f32 0.0, %v1247
      %1249 = vdwg.mxu0
      %v1250 = vadd.f32 %v1055, %v1211
      %v1251 = vadd.f32 %v1056, %v1213
      %v1252 = vadd.f32 %v1057, %v1216
      %v1253 = vadd.f32 %v1058, %v1218
      %v1254 = vadd.f32 %v1059, %v1221
      %v1255 = vadd.f32 %v1060, %v1223
      %v1256 = vadd.f32 %v1061, %v1226
      %v1257 = vadd.f32 %v1062, %v1228
      %v1258 = vadd.f32 %v1063, %v1231
      %v1259 = vadd.f32 %v1064, %v1233
      %v1260 = vadd.f32 %v1065, %v1236
      %v1261 = vadd.f32 %v1066, %v1238
      %v1262 = vadd.f32 %v1067, %v1241
      %v1263 = vadd.f32 %v1068, %v1243
      %v1264 = vadd.f32 %v1069, %v1246
      %v1265 = vadd.f32 %v1070, %v1248
      %v1266 = vld [vmem:[%s1071] sm:$0xf]
      %v1267 = vld [vmem:[%s1071 + $0x4] sm:$0xf]
      %v1268 = vld [vmem:[%s1071 + $0x8] sm:$0x1]
      %v1269 = vld [vmem:[%s1071 + $0xc] sm:$0xf]
      %v1270 = vld [vmem:[%s1071 + $0x10] sm:$0xf]
      %v1271 = vld [vmem:[%s1071 + $0x14] sm:$0x1]
      %v1272 = vld [vmem:[%s1071 + $0x18] sm:$0xf]
      %v1273 = vld [vmem:[%s1071 + $0x1c] sm:$0xf]
      %v1274 = vld [vmem:[%s1071 + $0x20] sm:$0x1]
      %v1275 = vld [vmem:[%s1071 + $0x24] sm:$0xf]
      %v1276 = vld [vmem:[%s1071 + $0x28] sm:$0xf]
      %v1277 = vld [vmem:[%s1071 + $0x2c] sm:$0x1]
      %v1278 = vld [vmem:[%s1071 + $0x30] sm:$0xf]
      %v1279 = vld [vmem:[%s1071 + $0x34] sm:$0xf]
      %v1280 = vld [vmem:[%s1071 + $0x38] sm:$0x1]
      %v1281 = vld [vmem:[%s1071 + $0x3c] sm:$0xf]
      %v1282 = vld [vmem:[%s1071 + $0x40] sm:$0xf]
      %v1283 = vld [vmem:[%s1071 + $0x44] sm:$0x1]
      %v1284 = vld [vmem:[%s1071 + $0x48] sm:$0xf]
      %v1285 = vld [vmem:[%s1071 + $0x4c] sm:$0xf]
      %v1286 = vld [vmem:[%s1071 + $0x50] sm:$0x1]
      %v1287 = vld [vmem:[%s1071 + $0x54] sm:$0xf]
      %v1288 = vld [vmem:[%s1071 + $0x58] sm:$0xf]
      %v1289 = vld [vmem:[%s1071 + $0x5c] sm:$0x1]
      %v1291 = vshrl.u32 %v1266, 16
      %v1293 = vrot.slane %v1291, 4
      %v1294 = vshll.u32 %v1266, 16
      %v1296 = vrot.slane %v1294, 5
      %v1297 = vor.u32 %v1293, %v1296
      %v1298 = vrot.slane %v1297, 4
      %v1300 = vshll.u32 %v1267, 16
      %v1302 = vrot.slane %v1300, 5
      %v1303 = vsel %vm342, %v1298, %v1302
      %v1304 = vshrl.u32 %v1267, 16
      %v1306 = vrot.slane %v1304, 4
      %v1307 = vor.u32 %v1306, %v1302
      %v1308 = vrot.slane %v1307, 4
      %v1310 = vshll.u32 %v1268, 16
      %v1312 = vrot.slane %v1310, 5
      %v1313 = vsel %vm342, %v1308, %v1312
      %v1315 = vshrl.u32 %v1269, 16
      %v1317 = vrot.slane %v1315, 4
      %v1318 = vshll.u32 %v1269, 16
      %v1320 = vrot.slane %v1318, 5
      %v1321 = vor.u32 %v1317, %v1320
      %v1322 = vrot.slane %v1321, 4
      %v1324 = vshll.u32 %v1270, 16
      %v1326 = vrot.slane %v1324, 5
      %v1327 = vsel %vm342, %v1322, %v1326
      %v1328 = vshrl.u32 %v1270, 16
      %v1330 = vrot.slane %v1328, 4
      %v1331 = vor.u32 %v1330, %v1326
      %v1332 = vrot.slane %v1331, 4
      %v1334 = vshll.u32 %v1271, 16
      %v1336 = vrot.slane %v1334, 5
      %v1337 = vsel %vm342, %v1332, %v1336
      %v1339 = vshrl.u32 %v1272, 16
      %v1341 = vrot.slane %v1339, 4
      %v1342 = vshll.u32 %v1272, 16
      %v1344 = vrot.slane %v1342, 5
      %v1345 = vor.u32 %v1341, %v1344
      %v1346 = vrot.slane %v1345, 4
      %v1348 = vshll.u32 %v1273, 16
      %v1350 = vrot.slane %v1348, 5
      %v1351 = vsel %vm342, %v1346, %v1350
      %v1352 = vshrl.u32 %v1273, 16
      %v1354 = vrot.slane %v1352, 4
      %v1355 = vor.u32 %v1354, %v1350
      %v1356 = vrot.slane %v1355, 4
      %v1358 = vshll.u32 %v1274, 16
      %v1360 = vrot.slane %v1358, 5
      %v1361 = vsel %vm342, %v1356, %v1360
      %v1363 = vshrl.u32 %v1275, 16
      %v1365 = vrot.slane %v1363, 4
      %v1366 = vshll.u32 %v1275, 16
      %v1368 = vrot.slane %v1366, 5
      %v1369 = vor.u32 %v1365, %v1368
      %v1370 = vrot.slane %v1369, 4
      %v1372 = vshll.u32 %v1276, 16
      %v1374 = vrot.slane %v1372, 5
      %v1375 = vsel %vm342, %v1370, %v1374
      %v1376 = vshrl.u32 %v1276, 16
      %v1378 = vrot.slane %v1376, 4
      %v1379 = vor.u32 %v1378, %v1374
      %v1380 = vrot.slane %v1379, 4
      %v1382 = vshll.u32 %v1277, 16
      %v1384 = vrot.slane %v1382, 5
      %v1385 = vsel %vm342, %v1380, %v1384
      %v1387 = vshrl.u32 %v1278, 16
      %v1389 = vrot.slane %v1387, 4
      %v1390 = vshll.u32 %v1278, 16
      %v1392 = vrot.slane %v1390, 5
      %v1393 = vor.u32 %v1389, %v1392
      %v1394 = vrot.slane %v1393, 4
      %v1396 = vshll.u32 %v1279, 16
      %v1398 = vrot.slane %v1396, 5
      %v1399 = vsel %vm342, %v1394, %v1398
      %v1400 = vshrl.u32 %v1279, 16
      %v1402 = vrot.slane %v1400, 4
      %v1403 = vor.u32 %v1402, %v1398
      %v1404 = vrot.slane %v1403, 4
      %v1406 = vshll.u32 %v1280, 16
      %v1408 = vrot.slane %v1406, 5
      %v1409 = vsel %vm342, %v1404, %v1408
      %v1411 = vshrl.u32 %v1281, 16
      %v1413 = vrot.slane %v1411, 4
      %v1414 = vshll.u32 %v1281, 16
      %v1416 = vrot.slane %v1414, 5
      %v1417 = vor.u32 %v1413, %v1416
      %v1418 = vrot.slane %v1417, 4
      %v1420 = vshll.u32 %v1282, 16
      %v1422 = vrot.slane %v1420, 5
      %v1423 = vsel %vm342, %v1418, %v1422
      %v1424 = vshrl.u32 %v1282, 16
      %v1426 = vrot.slane %v1424, 4
      %v1427 = vor.u32 %v1426, %v1422
      %v1428 = vrot.slane %v1427, 4
      %v1430 = vshll.u32 %v1283, 16
      %v1432 = vrot.slane %v1430, 5
      %v1433 = vsel %vm342, %v1428, %v1432
      %v1435 = vshrl.u32 %v1284, 16
      %v1437 = vrot.slane %v1435, 4
      %v1438 = vshll.u32 %v1284, 16
      %v1440 = vrot.slane %v1438, 5
      %v1441 = vor.u32 %v1437, %v1440
      %v1442 = vrot.slane %v1441, 4
      %v1444 = vshll.u32 %v1285, 16
      %v1446 = vrot.slane %v1444, 5
      %v1447 = vsel %vm342, %v1442, %v1446
      %v1448 = vshrl.u32 %v1285, 16
      %v1450 = vrot.slane %v1448, 4
      %v1451 = vor.u32 %v1450, %v1446
      %v1452 = vrot.slane %v1451, 4
      %v1454 = vshll.u32 %v1286, 16
      %v1456 = vrot.slane %v1454, 5
      %v1457 = vsel %vm342, %v1452, %v1456
      %v1459 = vshrl.u32 %v1287, 16
      %v1461 = vrot.slane %v1459, 4
      %v1462 = vshll.u32 %v1287, 16
      %v1464 = vrot.slane %v1462, 5
      %v1465 = vor.u32 %v1461, %v1464
      %v1466 = vrot.slane %v1465, 4
      %v1468 = vshll.u32 %v1288, 16
      %v1470 = vrot.slane %v1468, 5
      %v1471 = vsel %vm342, %v1466, %v1470
      %v1472 = vshrl.u32 %v1288, 16
      %v1474 = vrot.slane %v1472, 4
      %v1475 = vor.u32 %v1474, %v1470
      %v1476 = vrot.slane %v1475, 4
      %v1478 = vshll.u32 %v1289, 16
      %v1480 = vrot.slane %v1478, 5
      %v1481 = vsel %vm342, %v1476, %v1480
      %s1482 = scalar_lea.vmem %s1, 256
      %v1483 = vld [vmem:[%s1482] sm:$0xf]
      %v1484 = vld [vmem:[%s1482 + $0x4] sm:$0xf]
      %v1485 = vld [vmem:[%s1482 + $0x8] sm:$0xf]
      %v1486 = vld [vmem:[%s1482 + $0xc] sm:$0xf]
      %v1487 = vld [vmem:[%s1482 + $0x10] sm:$0xf]
      %v1488 = vld [vmem:[%s1482 + $0x14] sm:$0xf]
      %v1489 = vld [vmem:[%s1482 + $0x18] sm:$0xf]
      %v1490 = vld [vmem:[%s1482 + $0x1c] sm:$0xf]
      %v1491 = vld [vmem:[%s1482 + $0x20] sm:$0xf]
      %v1492 = vld [vmem:[%s1482 + $0x24] sm:$0xf]
      %v1493 = vld [vmem:[%s1482 + $0x28] sm:$0xf]
      %v1494 = vld [vmem:[%s1482 + $0x2c] sm:$0xf]
      %v1495 = vld [vmem:[%s1482 + $0x30] sm:$0xf]
      %v1496 = vld [vmem:[%s1482 + $0x34] sm:$0xf]
      %v1497 = vld [vmem:[%s1482 + $0x38] sm:$0xf]
      %v1498 = vld [vmem:[%s1482 + $0x3c] sm:$0xf]
      %v1499 = vunpack.c.l.b16 %v1303
      %v1500 = vunpack.c.l.b16 %v1313
      %v1501 = vunpack.c.l.b16 %v1327
      %v1502 = vunpack.c.l.b16 %v1337
      %v1503 = vunpack.c.l.b16 %v1351
      %v1504 = vunpack.c.l.b16 %v1361
      %v1505 = vunpack.c.l.b16 %v1375
      %v1506 = vunpack.c.l.b16 %v1385
      %v1507 = vunpack.c.l.b16 %v1399
      %v1508 = vunpack.c.l.b16 %v1409
      %v1509 = vunpack.c.l.b16 %v1423
      %v1510 = vunpack.c.l.b16 %v1433
      %v1511 = vunpack.c.l.b16 %v1447
      %v1512 = vunpack.c.l.b16 %v1457
      %v1513 = vunpack.c.l.b16 %v1471
      %v1514 = vunpack.c.l.b16 %v1481
      %v1515 = vpack.c.b16 %v1500, %v1499
      %v1516 = vpack.c.b16 %v1502, %v1501
      %v1517 = vpack.c.b16 %v1504, %v1503
      %v1518 = vpack.c.b16 %v1506, %v1505
      %v1519 = vpack.c.b16 %v1508, %v1507
      %v1520 = vpack.c.b16 %v1510, %v1509
      %v1521 = vpack.c.b16 %v1512, %v1511
      %v1522 = vpack.c.b16 %v1514, %v1513
      %v1547 = vunpack.c.l.b16 %v1483
      %v1548 = vunpack.c.l.b16 %v1484
      %v1549 = vunpack.c.l.b16 %v1485
      %v1550 = vunpack.c.l.b16 %v1486
      %v1551 = vunpack.c.l.b16 %v1487
      %v1552 = vunpack.c.l.b16 %v1488
      %v1553 = vunpack.c.l.b16 %v1489
      %v1554 = vunpack.c.l.b16 %v1490
      %v1555 = vunpack.c.l.b16 %v1491
      %v1556 = vunpack.c.l.b16 %v1492
      %v1557 = vunpack.c.l.b16 %v1493
      %v1558 = vunpack.c.l.b16 %v1494
      %v1559 = vunpack.c.l.b16 %v1495
      %v1560 = vunpack.c.l.b16 %v1496
      %v1561 = vunpack.c.l.b16 %v1497
      %v1562 = vunpack.c.l.b16 %v1498
      %v1563 = vpack.c.b16 %v1548, %v1547
      %v1564 = vpack.c.b16 %v1550, %v1549
      %v1565 = vpack.c.b16 %v1552, %v1551
      %v1566 = vpack.c.b16 %v1554, %v1553
      %v1567 = vpack.c.b16 %v1556, %v1555
      %v1568 = vpack.c.b16 %v1558, %v1557
      %v1569 = vpack.c.b16 %v1560, %v1559
      %v1570 = vpack.c.b16 %v1562, %v1561
      %1579 = vmatpush.bf16.msra.mxu0 %v1570
      %1580 = vmatpush.bf16.msra.mxu0 %v1569
      %1581 = vmatpush.bf16.msra.mxu0 %v1568
      %1582 = vmatpush.bf16.msra.mxu0 %v1567
      %1583 = vmatpush.bf16.msra.mxu0 %v1566
      %1584 = vmatpush.bf16.msra.mxu0 %v1565
      %1585 = vmatpush.bf16.msra.mxu0 %v1564
      %1586 = vmatpush.bf16.msra.mxu0 %v1563
      %1587 = vmatmul.bf16.gmra.mxu0 %v1515
      %v1588 = vpop.f32.mrf.mxu0
      %v1589 = vadd.f32 0.0, %v1588
      %v1590 = vpop.f32.mrf.mxu0
      %v1591 = vadd.f32 0.0, %v1590
      %1592 = vmatmul.bf16.gmra.mxu0 %v1516
      %v1593 = vpop.f32.mrf.mxu0
      %v1594 = vadd.f32 0.0, %v1593
      %v1595 = vpop.f32.mrf.mxu0
      %v1596 = vadd.f32 0.0, %v1595
      %1597 = vmatmul.bf16.gmra.mxu0 %v1517
      %v1598 = vpop.f32.mrf.mxu0
      %v1599 = vadd.f32 0.0, %v1598
      %v1600 = vpop.f32.mrf.mxu0
      %v1601 = vadd.f32 0.0, %v1600
      %1602 = vmatmul.bf16.gmra.mxu0 %v1518
      %v1603 = vpop.f32.mrf.mxu0
      %v1604 = vadd.f32 0.0, %v1603
      %v1605 = vpop.f32.mrf.mxu0
      %v1606 = vadd.f32 0.0, %v1605
      %1607 = vmatmul.bf16.gmra.mxu0 %v1519
      %v1608 = vpop.f32.mrf.mxu0
      %v1609 = vadd.f32 0.0, %v1608
      %v1610 = vpop.f32.mrf.mxu0
      %v1611 = vadd.f32 0.0, %v1610
      %1612 = vmatmul.bf16.gmra.mxu0 %v1520
      %v1613 = vpop.f32.mrf.mxu0
      %v1614 = vadd.f32 0.0, %v1613
      %v1615 = vpop.f32.mrf.mxu0
      %v1616 = vadd.f32 0.0, %v1615
      %1617 = vmatmul.bf16.gmra.mxu0 %v1521
      %v1618 = vpop.f32.mrf.mxu0
      %v1619 = vadd.f32 0.0, %v1618
      %v1620 = vpop.f32.mrf.mxu0
      %v1621 = vadd.f32 0.0, %v1620
      %1622 = vmatmul.bf16.gmra.mxu0 %v1522
      %v1623 = vpop.f32.mrf.mxu0
      %v1624 = vadd.f32 0.0, %v1623
      %v1625 = vpop.f32.mrf.mxu0
      %v1626 = vadd.f32 0.0, %v1625
      %1627 = vdwg.mxu0
      %v1628 = vadd.f32 %v1250, %v1589
      %v1629 = vadd.f32 %v1251, %v1591
      %v1630 = vadd.f32 %v1252, %v1594
      %v1631 = vadd.f32 %v1253, %v1596
      %v1632 = vadd.f32 %v1254, %v1599
      %v1633 = vadd.f32 %v1255, %v1601
      %v1634 = vadd.f32 %v1256, %v1604
      %v1635 = vadd.f32 %v1257, %v1606
      %v1636 = vadd.f32 %v1258, %v1609
      %v1637 = vadd.f32 %v1259, %v1611
      %v1638 = vadd.f32 %v1260, %v1614
      %v1639 = vadd.f32 %v1261, %v1616
      %v1640 = vadd.f32 %v1262, %v1619
      %v1641 = vadd.f32 %v1263, %v1621
      %v1642 = vadd.f32 %v1264, %v1624
      %v1643 = vadd.f32 %v1265, %v1626
      %v1644 = vld [vmem:[%s1071] sm:$0xe]
      %v1645 = vld [vmem:[%s1071 + $0xc] sm:$0xe]
      %v1646 = vld [vmem:[%s1071 + $0x18] sm:$0xe]
      %v1647 = vld [vmem:[%s1071 + $0x24] sm:$0xe]
      %v1648 = vld [vmem:[%s1071 + $0x30] sm:$0xe]
      %v1649 = vld [vmem:[%s1071 + $0x3c] sm:$0xe]
      %v1650 = vld [vmem:[%s1071 + $0x48] sm:$0xe]
      %v1651 = vld [vmem:[%s1071 + $0x54] sm:$0xe]
      %v1676 = vrot.slane %v1644, 5
      %v1677 = vrot.slane %v1676, 4
      %v1678 = vrot.slane %v1267, 5
      %v1679 = vsel %vm852, %v1677, %v1678
      %v1680 = vrot.slane %v1678, 4
      %v1681 = vrot.slane %v1268, 5
      %v1682 = vsel %vm852, %v1680, %v1681
      %v1683 = vrot.slane %v1645, 5
      %v1684 = vrot.slane %v1683, 4
      %v1685 = vrot.slane %v1270, 5
      %v1686 = vsel %vm852, %v1684, %v1685
      %v1687 = vrot.slane %v1685, 4
      %v1688 = vrot.slane %v1271, 5
      %v1689 = vsel %vm852, %v1687, %v1688
      %v1690 = vrot.slane %v1646, 5
      %v1691 = vrot.slane %v1690, 4
      %v1692 = vrot.slane %v1273, 5
      %v1693 = vsel %vm852, %v1691, %v1692
      %v1694 = vrot.slane %v1692, 4
      %v1695 = vrot.slane %v1274, 5
      %v1696 = vsel %vm852, %v1694, %v1695
      %v1697 = vrot.slane %v1647, 5
      %v1698 = vrot.slane %v1697, 4
      %v1699 = vrot.slane %v1276, 5
      %v1700 = vsel %vm852, %v1698, %v1699
      %v1701 = vrot.slane %v1699, 4
      %v1702 = vrot.slane %v1277, 5
      %v1703 = vsel %vm852, %v1701, %v1702
      %v1704 = vrot.slane %v1648, 5
      %v1705 = vrot.slane %v1704, 4
      %v1706 = vrot.slane %v1279, 5
      %v1707 = vsel %vm852, %v1705, %v1706
      %v1708 = vrot.slane %v1706, 4
      %v1709 = vrot.slane %v1280, 5
      %v1710 = vsel %vm852, %v1708, %v1709
      %v1711 = vrot.slane %v1649, 5
      %v1712 = vrot.slane %v1711, 4
      %v1713 = vrot.slane %v1282, 5
      %v1714 = vsel %vm852, %v1712, %v1713
      %v1715 = vrot.slane %v1713, 4
      %v1716 = vrot.slane %v1283, 5
      %v1717 = vsel %vm852, %v1715, %v1716
      %v1718 = vrot.slane %v1650, 5
      %v1719 = vrot.slane %v1718, 4
      %v1720 = vrot.slane %v1285, 5
      %v1721 = vsel %vm852, %v1719, %v1720
      %v1722 = vrot.slane %v1720, 4
      %v1723 = vrot.slane %v1286, 5
      %v1724 = vsel %vm852, %v1722, %v1723
      %v1725 = vrot.slane %v1651, 5
      %v1726 = vrot.slane %v1725, 4
      %v1727 = vrot.slane %v1288, 5
      %v1728 = vsel %vm852, %v1726, %v1727
      %v1729 = vrot.slane %v1727, 4
      %v1730 = vrot.slane %v1289, 5
      %v1731 = vsel %vm852, %v1729, %v1730
      %s1732 = scalar_lea.vmem %s1, 320
      %v1733 = vld [vmem:[%s1732] sm:$0xf]
      %v1734 = vld [vmem:[%s1732 + $0x4] sm:$0xf]
      %v1735 = vld [vmem:[%s1732 + $0x8] sm:$0xf]
      %v1736 = vld [vmem:[%s1732 + $0xc] sm:$0xf]
      %v1737 = vld [vmem:[%s1732 + $0x10] sm:$0xf]
      %v1738 = vld [vmem:[%s1732 + $0x14] sm:$0xf]
      %v1739 = vld [vmem:[%s1732 + $0x18] sm:$0xf]
      %v1740 = vld [vmem:[%s1732 + $0x1c] sm:$0xf]
      %v1741 = vld [vmem:[%s1732 + $0x20] sm:$0xf]
      %v1742 = vld [vmem:[%s1732 + $0x24] sm:$0xf]
      %v1743 = vld [vmem:[%s1732 + $0x28] sm:$0xf]
      %v1744 = vld [vmem:[%s1732 + $0x2c] sm:$0xf]
      %v1745 = vld [vmem:[%s1732 + $0x30] sm:$0xf]
      %v1746 = vld [vmem:[%s1732 + $0x34] sm:$0xf]
      %v1747 = vld [vmem:[%s1732 + $0x38] sm:$0xf]
      %v1748 = vld [vmem:[%s1732 + $0x3c] sm:$0xf]
      %v1749 = vunpack.c.l.b16 %v1679
      %v1750 = vunpack.c.l.b16 %v1682
      %v1751 = vunpack.c.l.b16 %v1686
      %v1752 = vunpack.c.l.b16 %v1689
      %v1753 = vunpack.c.l.b16 %v1693
      %v1754 = vunpack.c.l.b16 %v1696
      %v1755 = vunpack.c.l.b16 %v1700
      %v1756 = vunpack.c.l.b16 %v1703
      %v1757 = vunpack.c.l.b16 %v1707
      %v1758 = vunpack.c.l.b16 %v1710
      %v1759 = vunpack.c.l.b16 %v1714
      %v1760 = vunpack.c.l.b16 %v1717
      %v1761 = vunpack.c.l.b16 %v1721
      %v1762 = vunpack.c.l.b16 %v1724
      %v1763 = vunpack.c.l.b16 %v1728
      %v1764 = vunpack.c.l.b16 %v1731
      %v1765 = vpack.c.b16 %v1750, %v1749
      %v1766 = vpack.c.b16 %v1752, %v1751
      %v1767 = vpack.c.b16 %v1754, %v1753
      %v1768 = vpack.c.b16 %v1756, %v1755
      %v1769 = vpack.c.b16 %v1758, %v1757
      %v1770 = vpack.c.b16 %v1760, %v1759
      %v1771 = vpack.c.b16 %v1762, %v1761
      %v1772 = vpack.c.b16 %v1764, %v1763
      %v1797 = vunpack.c.l.b16 %v1733
      %v1798 = vunpack.c.l.b16 %v1734
      %v1799 = vunpack.c.l.b16 %v1735
      %v1800 = vunpack.c.l.b16 %v1736
      %v1801 = vunpack.c.l.b16 %v1737
      %v1802 = vunpack.c.l.b16 %v1738
      %v1803 = vunpack.c.l.b16 %v1739
      %v1804 = vunpack.c.l.b16 %v1740
      %v1805 = vunpack.c.l.b16 %v1741
      %v1806 = vunpack.c.l.b16 %v1742
      %v1807 = vunpack.c.l.b16 %v1743
      %v1808 = vunpack.c.l.b16 %v1744
      %v1809 = vunpack.c.l.b16 %v1745
      %v1810 = vunpack.c.l.b16 %v1746
      %v1811 = vunpack.c.l.b16 %v1747
      %v1812 = vunpack.c.l.b16 %v1748
      %v1813 = vpack.c.b16 %v1798, %v1797
      %v1814 = vpack.c.b16 %v1800, %v1799
      %v1815 = vpack.c.b16 %v1802, %v1801
      %v1816 = vpack.c.b16 %v1804, %v1803
      %v1817 = vpack.c.b16 %v1806, %v1805
      %v1818 = vpack.c.b16 %v1808, %v1807
      %v1819 = vpack.c.b16 %v1810, %v1809
      %v1820 = vpack.c.b16 %v1812, %v1811
      %1829 = vmatpush.bf16.msra.mxu0 %v1820
      %1830 = vmatpush.bf16.msra.mxu0 %v1819
      %1831 = vmatpush.bf16.msra.mxu0 %v1818
      %1832 = vmatpush.bf16.msra.mxu0 %v1817
      %1833 = vmatpush.bf16.msra.mxu0 %v1816
      %1834 = vmatpush.bf16.msra.mxu0 %v1815
      %1835 = vmatpush.bf16.msra.mxu0 %v1814
      %1836 = vmatpush.bf16.msra.mxu0 %v1813
      %1837 = vmatmul.bf16.gmra.mxu0 %v1765
      %v1838 = vpop.f32.mrf.mxu0
      %v1839 = vadd.f32 0.0, %v1838
      %v1840 = vpop.f32.mrf.mxu0
      %v1841 = vadd.f32 0.0, %v1840
      %1842 = vmatmul.bf16.gmra.mxu0 %v1766
      %v1843 = vpop.f32.mrf.mxu0
      %v1844 = vadd.f32 0.0, %v1843
      %v1845 = vpop.f32.mrf.mxu0
      %v1846 = vadd.f32 0.0, %v1845
      %1847 = vmatmul.bf16.gmra.mxu0 %v1767
      %v1848 = vpop.f32.mrf.mxu0
      %v1849 = vadd.f32 0.0, %v1848
      %v1850 = vpop.f32.mrf.mxu0
      %v1851 = vadd.f32 0.0, %v1850
      %1852 = vmatmul.bf16.gmra.mxu0 %v1768
      %v1853 = vpop.f32.mrf.mxu0
      %v1854 = vadd.f32 0.0, %v1853
      %v1855 = vpop.f32.mrf.mxu0
      %v1856 = vadd.f32 0.0, %v1855
      %1857 = vmatmul.bf16.gmra.mxu0 %v1769
      %v1858 = vpop.f32.mrf.mxu0
      %v1859 = vadd.f32 0.0, %v1858
      %v1860 = vpop.f32.mrf.mxu0
      %v1861 = vadd.f32 0.0, %v1860
      %1862 = vmatmul.bf16.gmra.mxu0 %v1770
      %v1863 = vpop.f32.mrf.mxu0
      %v1864 = vadd.f32 0.0, %v1863
      %v1865 = vpop.f32.mrf.mxu0
      %v1866 = vadd.f32 0.0, %v1865
      %1867 = vmatmul.bf16.gmra.mxu0 %v1771
      %v1868 = vpop.f32.mrf.mxu0
      %v1869 = vadd.f32 0.0, %v1868
      %v1870 = vpop.f32.mrf.mxu0
      %v1871 = vadd.f32 0.0, %v1870
      %1872 = vmatmul.bf16.gmra.mxu0 %v1772
      %v1873 = vpop.f32.mrf.mxu0
      %v1874 = vadd.f32 0.0, %v1873
      %v1875 = vpop.f32.mrf.mxu0
      %v1876 = vadd.f32 0.0, %v1875
      %1877 = vdwg.mxu0
      %v1878 = vadd.f32 %v1628, %v1839
      %v1879 = vadd.f32 %v1629, %v1841
      %v1880 = vadd.f32 %v1630, %v1844
      %v1881 = vadd.f32 %v1631, %v1846
      %v1882 = vadd.f32 %v1632, %v1849
      %v1883 = vadd.f32 %v1633, %v1851
      %v1884 = vadd.f32 %v1634, %v1854
      %v1885 = vadd.f32 %v1635, %v1856
      %v1886 = vadd.f32 %v1636, %v1859
      %v1887 = vadd.f32 %v1637, %v1861
      %v1888 = vadd.f32 %v1638, %v1864
      %v1889 = vadd.f32 %v1639, %v1866
      %v1890 = vadd.f32 %v1640, %v1869
      %v1891 = vadd.f32 %v1641, %v1871
      %v1892 = vadd.f32 %v1642, %v1874
      %v1893 = vadd.f32 %v1643, %v1876
      %s1894 = scalar_lea.vmem %s283, 24
      %v1895 = vld [vmem:[%s1894] sm:$0xf]
      %v1896 = vld [vmem:[%s1894 + $0x4] sm:$0xf]
      %v1897 = vld [vmem:[%s1894 + $0xc] sm:$0xf]
      %v1898 = vld [vmem:[%s1894 + $0x10] sm:$0xf]
      %v1899 = vld [vmem:[%s1894 + $0x18] sm:$0xf]
      %v1900 = vld [vmem:[%s1894 + $0x1c] sm:$0xf]
      %v1901 = vld [vmem:[%s1894 + $0x24] sm:$0xf]
      %v1902 = vld [vmem:[%s1894 + $0x28] sm:$0xf]
      %v1903 = vld [vmem:[%s1894 + $0x30] sm:$0xf]
      %v1904 = vld [vmem:[%s1894 + $0x34] sm:$0xf]
      %v1905 = vld [vmem:[%s1894 + $0x3c] sm:$0xf]
      %v1906 = vld [vmem:[%s1894 + $0x40] sm:$0xf]
      %v1907 = vld [vmem:[%s1894 + $0x48] sm:$0xf]
      %v1908 = vld [vmem:[%s1894 + $0x4c] sm:$0xf]
      %v1909 = vld [vmem:[%s1894 + $0x54] sm:$0xf]
      %v1910 = vld [vmem:[%s1894 + $0x58] sm:$0xf]
      %s1911 = scalar_lea.vmem %s1, 384
      %v1912 = vld [vmem:[%s1911] sm:$0xf]
      %v1913 = vld [vmem:[%s1911 + $0x4] sm:$0xf]
      %v1914 = vld [vmem:[%s1911 + $0x8] sm:$0xf]
      %v1915 = vld [vmem:[%s1911 + $0xc] sm:$0xf]
      %v1916 = vld [vmem:[%s1911 + $0x10] sm:$0xf]
      %v1917 = vld [vmem:[%s1911 + $0x14] sm:$0xf]
      %v1918 = vld [vmem:[%s1911 + $0x18] sm:$0xf]
      %v1919 = vld [vmem:[%s1911 + $0x1c] sm:$0xf]
      %v1920 = vld [vmem:[%s1911 + $0x20] sm:$0xf]
      %v1921 = vld [vmem:[%s1911 + $0x24] sm:$0xf]
      %v1922 = vld [vmem:[%s1911 + $0x28] sm:$0xf]
      %v1923 = vld [vmem:[%s1911 + $0x2c] sm:$0xf]
      %v1924 = vld [vmem:[%s1911 + $0x30] sm:$0xf]
      %v1925 = vld [vmem:[%s1911 + $0x34] sm:$0xf]
      %v1926 = vld [vmem:[%s1911 + $0x38] sm:$0xf]
      %v1927 = vld [vmem:[%s1911 + $0x3c] sm:$0xf]
      %v1944 = vunpack.c.l.b16 %v1895
      %v1945 = vunpack.c.l.b16 %v1896
      %v1946 = vunpack.c.l.b16 %v1897
      %v1947 = vunpack.c.l.b16 %v1898
      %v1948 = vunpack.c.l.b16 %v1899
      %v1949 = vunpack.c.l.b16 %v1900
      %v1950 = vunpack.c.l.b16 %v1901
      %v1951 = vunpack.c.l.b16 %v1902
      %v1952 = vunpack.c.l.b16 %v1903
      %v1953 = vunpack.c.l.b16 %v1904
      %v1954 = vunpack.c.l.b16 %v1905
      %v1955 = vunpack.c.l.b16 %v1906
      %v1956 = vunpack.c.l.b16 %v1907
      %v1957 = vunpack.c.l.b16 %v1908
      %v1958 = vunpack.c.l.b16 %v1909
      %v1959 = vunpack.c.l.b16 %v1910
      %v1960 = vpack.c.b16 %v1945, %v1944
      %v1961 = vpack.c.b16 %v1947, %v1946
      %v1962 = vpack.c.b16 %v1949, %v1948
      %v1963 = vpack.c.b16 %v1951, %v1950
      %v1964 = vpack.c.b16 %v1953, %v1952
      %v1965 = vpack.c.b16 %v1955, %v1954
      %v1966 = vpack.c.b16 %v1957, %v1956
      %v1967 = vpack.c.b16 %v1959, %v1958
      %v1992 = vunpack.c.l.b16 %v1912
      %v1993 = vunpack.c.l.b16 %v1913
      %v1994 = vunpack.c.l.b16 %v1914
      %v1995 = vunpack.c.l.b16 %v1915
      %v1996 = vunpack.c.l.b16 %v1916
      %v1997 = vunpack.c.l.b16 %v1917
      %v1998 = vunpack.c.l.b16 %v1918
      %v1999 = vunpack.c.l.b16 %v1919
      %v2000 = vunpack.c.l.b16 %v1920
      %v2001 = vunpack.c.l.b16 %v1921
      %v2002 = vunpack.c.l.b16 %v1922
      %v2003 = vunpack.c.l.b16 %v1923
      %v2004 = vunpack.c.l.b16 %v1924
      %v2005 = vunpack.c.l.b16 %v1925
      %v2006 = vunpack.c.l.b16 %v1926
      %v2007 = vunpack.c.l.b16 %v1927
      %v2008 = vpack.c.b16 %v1993, %v1992
      %v2009 = vpack.c.b16 %v1995, %v1994
      %v2010 = vpack.c.b16 %v1997, %v1996
      %v2011 = vpack.c.b16 %v1999, %v1998
      %v2012 = vpack.c.b16 %v2001, %v2000
      %v2013 = vpack.c.b16 %v2003, %v2002
      %v2014 = vpack.c.b16 %v2005, %v2004
      %v2015 = vpack.c.b16 %v2007, %v2006
      %2024 = vmatpush.bf16.msra.mxu0 %v2015
      %2025 = vmatpush.bf16.msra.mxu0 %v2014
      %2026 = vmatpush.bf16.msra.mxu0 %v2013
      %2027 = vmatpush.bf16.msra.mxu0 %v2012
      %2028 = vmatpush.bf16.msra.mxu0 %v2011
      %2029 = vmatpush.bf16.msra.mxu0 %v2010
      %2030 = vmatpush.bf16.msra.mxu0 %v2009
      %2031 = vmatpush.bf16.msra.mxu0 %v2008
      %2032 = vmatmul.bf16.gmra.mxu0 %v1960
      %v2033 = vpop.f32.mrf.mxu0
      %v2034 = vadd.f32 0.0, %v2033
      %v2035 = vpop.f32.mrf.mxu0
      %v2036 = vadd.f32 0.0, %v2035
      %2037 = vmatmul.bf16.gmra.mxu0 %v1961
      %v2038 = vpop.f32.mrf.mxu0
      %v2039 = vadd.f32 0.0, %v2038
      %v2040 = vpop.f32.mrf.mxu0
      %v2041 = vadd.f32 0.0, %v2040
      %2042 = vmatmul.bf16.gmra.mxu0 %v1962
      %v2043 = vpop.f32.mrf.mxu0
      %v2044 = vadd.f32 0.0, %v2043
      %v2045 = vpop.f32.mrf.mxu0
      %v2046 = vadd.f32 0.0, %v2045
      %2047 = vmatmul.bf16.gmra.mxu0 %v1963
      %v2048 = vpop.f32.mrf.mxu0
      %v2049 = vadd.f32 0.0, %v2048
      %v2050 = vpop.f32.mrf.mxu0
      %v2051 = vadd.f32 0.0, %v2050
      %2052 = vmatmul.bf16.gmra.mxu0 %v1964
      %v2053 = vpop.f32.mrf.mxu0
      %v2054 = vadd.f32 0.0, %v2053
      %v2055 = vpop.f32.mrf.mxu0
      %v2056 = vadd.f32 0.0, %v2055
      %2057 = vmatmul.bf16.gmra.mxu0 %v1965
      %v2058 = vpop.f32.mrf.mxu0
      %v2059 = vadd.f32 0.0, %v2058
      %v2060 = vpop.f32.mrf.mxu0
      %v2061 = vadd.f32 0.0, %v2060
      %2062 = vmatmul.bf16.gmra.mxu0 %v1966
      %v2063 = vpop.f32.mrf.mxu0
      %v2064 = vadd.f32 0.0, %v2063
      %v2065 = vpop.f32.mrf.mxu0
      %v2066 = vadd.f32 0.0, %v2065
      %2067 = vmatmul.bf16.gmra.mxu0 %v1967
      %v2068 = vpop.f32.mrf.mxu0
      %v2069 = vadd.f32 0.0, %v2068
      %v2070 = vpop.f32.mrf.mxu0
      %v2071 = vadd.f32 0.0, %v2070
      %2072 = vdwg.mxu0
      %v2073 = vadd.f32 %v1878, %v2034
      %v2074 = vadd.f32 %v1879, %v2036
      %v2075 = vadd.f32 %v1880, %v2039
      %v2076 = vadd.f32 %v1881, %v2041
      %v2077 = vadd.f32 %v1882, %v2044
      %v2078 = vadd.f32 %v1883, %v2046
      %v2079 = vadd.f32 %v1884, %v2049
      %v2080 = vadd.f32 %v1885, %v2051
      %v2081 = vadd.f32 %v1886, %v2054
      %v2082 = vadd.f32 %v1887, %v2056
      %v2083 = vadd.f32 %v1888, %v2059
      %v2084 = vadd.f32 %v1889, %v2061
      %v2085 = vadd.f32 %v1890, %v2064
      %v2086 = vadd.f32 %v1891, %v2066
      %v2087 = vadd.f32 %v1892, %v2069
      %v2088 = vadd.f32 %v1893, %v2071
      %v2089 = vld [vmem:[%s1894] sm:$0xf]
      %v2090 = vld [vmem:[%s1894 + $0x4] sm:$0xf]
      %v2091 = vld [vmem:[%s1894 + $0x8] sm:$0x1]
      %v2092 = vld [vmem:[%s1894 + $0xc] sm:$0xf]
      %v2093 = vld [vmem:[%s1894 + $0x10] sm:$0xf]
      %v2094 = vld [vmem:[%s1894 + $0x14] sm:$0x1]
      %v2095 = vld [vmem:[%s1894 + $0x18] sm:$0xf]
      %v2096 = vld [vmem:[%s1894 + $0x1c] sm:$0xf]
      %v2097 = vld [vmem:[%s1894 + $0x20] sm:$0x1]
      %v2098 = vld [vmem:[%s1894 + $0x24] sm:$0xf]
      %v2099 = vld [vmem:[%s1894 + $0x28] sm:$0xf]
      %v2100 = vld [vmem:[%s1894 + $0x2c] sm:$0x1]
      %v2101 = vld [vmem:[%s1894 + $0x30] sm:$0xf]
      %v2102 = vld [vmem:[%s1894 + $0x34] sm:$0xf]
      %v2103 = vld [vmem:[%s1894 + $0x38] sm:$0x1]
      %v2104 = vld [vmem:[%s1894 + $0x3c] sm:$0xf]
      %v2105 = vld [vmem:[%s1894 + $0x40] sm:$0xf]
      %v2106 = vld [vmem:[%s1894 + $0x44] sm:$0x1]
      %v2107 = vld [vmem:[%s1894 + $0x48] sm:$0xf]
      %v2108 = vld [vmem:[%s1894 + $0x4c] sm:$0xf]
      %v2109 = vld [vmem:[%s1894 + $0x50] sm:$0x1]
      %v2110 = vld [vmem:[%s1894 + $0x54] sm:$0xf]
      %v2111 = vld [vmem:[%s1894 + $0x58] sm:$0xf]
      %v2112 = vld [vmem:[%s1894 + $0x5c] sm:$0x1]
      %v2114 = vshrl.u32 %v2089, 16
      %v2116 = vrot.slane %v2114, 4
      %v2117 = vshll.u32 %v2089, 16
      %v2119 = vrot.slane %v2117, 5
      %v2120 = vor.u32 %v2116, %v2119
      %v2121 = vrot.slane %v2120, 4
      %v2123 = vshll.u32 %v2090, 16
      %v2125 = vrot.slane %v2123, 5
      %v2126 = vsel %vm342, %v2121, %v2125
      %v2127 = vshrl.u32 %v2090, 16
      %v2129 = vrot.slane %v2127, 4
      %v2130 = vor.u32 %v2129, %v2125
      %v2131 = vrot.slane %v2130, 4
      %v2133 = vshll.u32 %v2091, 16
      %v2135 = vrot.slane %v2133, 5
      %v2136 = vsel %vm342, %v2131, %v2135
      %v2138 = vshrl.u32 %v2092, 16
      %v2140 = vrot.slane %v2138, 4
      %v2141 = vshll.u32 %v2092, 16
      %v2143 = vrot.slane %v2141, 5
      %v2144 = vor.u32 %v2140, %v2143
      %v2145 = vrot.slane %v2144, 4
      %v2147 = vshll.u32 %v2093, 16
      %v2149 = vrot.slane %v2147, 5
      %v2150 = vsel %vm342, %v2145, %v2149
      %v2151 = vshrl.u32 %v2093, 16
      %v2153 = vrot.slane %v2151, 4
      %v2154 = vor.u32 %v2153, %v2149
      %v2155 = vrot.slane %v2154, 4
      %v2157 = vshll.u32 %v2094, 16
      %v2159 = vrot.slane %v2157, 5
      %v2160 = vsel %vm342, %v2155, %v2159
      %v2162 = vshrl.u32 %v2095, 16
      %v2164 = vrot.slane %v2162, 4
      %v2165 = vshll.u32 %v2095, 16
      %v2167 = vrot.slane %v2165, 5
      %v2168 = vor.u32 %v2164, %v2167
      %v2169 = vrot.slane %v2168, 4
      %v2171 = vshll.u32 %v2096, 16
      %v2173 = vrot.slane %v2171, 5
      %v2174 = vsel %vm342, %v2169, %v2173
      %v2175 = vshrl.u32 %v2096, 16
      %v2177 = vrot.slane %v2175, 4
      %v2178 = vor.u32 %v2177, %v2173
      %v2179 = vrot.slane %v2178, 4
      %v2181 = vshll.u32 %v2097, 16
      %v2183 = vrot.slane %v2181, 5
      %v2184 = vsel %vm342, %v2179, %v2183
      %v2186 = vshrl.u32 %v2098, 16
      %v2188 = vrot.slane %v2186, 4
      %v2189 = vshll.u32 %v2098, 16
      %v2191 = vrot.slane %v2189, 5
      %v2192 = vor.u32 %v2188, %v2191
      %v2193 = vrot.slane %v2192, 4
      %v2195 = vshll.u32 %v2099, 16
      %v2197 = vrot.slane %v2195, 5
      %v2198 = vsel %vm342, %v2193, %v2197
      %v2199 = vshrl.u32 %v2099, 16
      %v2201 = vrot.slane %v2199, 4
      %v2202 = vor.u32 %v2201, %v2197
      %v2203 = vrot.slane %v2202, 4
      %v2205 = vshll.u32 %v2100, 16
      %v2207 = vrot.slane %v2205, 5
      %v2208 = vsel %vm342, %v2203, %v2207
      %v2210 = vshrl.u32 %v2101, 16
      %v2212 = vrot.slane %v2210, 4
      %v2213 = vshll.u32 %v2101, 16
      %v2215 = vrot.slane %v2213, 5
      %v2216 = vor.u32 %v2212, %v2215
      %v2217 = vrot.slane %v2216, 4
      %v2219 = vshll.u32 %v2102, 16
      %v2221 = vrot.slane %v2219, 5
      %v2222 = vsel %vm342, %v2217, %v2221
      %v2223 = vshrl.u32 %v2102, 16
      %v2225 = vrot.slane %v2223, 4
      %v2226 = vor.u32 %v2225, %v2221
      %v2227 = vrot.slane %v2226, 4
      %v2229 = vshll.u32 %v2103, 16
      %v2231 = vrot.slane %v2229, 5
      %v2232 = vsel %vm342, %v2227, %v2231
      %v2234 = vshrl.u32 %v2104, 16
      %v2236 = vrot.slane %v2234, 4
      %v2237 = vshll.u32 %v2104, 16
      %v2239 = vrot.slane %v2237, 5
      %v2240 = vor.u32 %v2236, %v2239
      %v2241 = vrot.slane %v2240, 4
      %v2243 = vshll.u32 %v2105, 16
      %v2245 = vrot.slane %v2243, 5
      %v2246 = vsel %vm342, %v2241, %v2245
      %v2247 = vshrl.u32 %v2105, 16
      %v2249 = vrot.slane %v2247, 4
      %v2250 = vor.u32 %v2249, %v2245
      %v2251 = vrot.slane %v2250, 4
      %v2253 = vshll.u32 %v2106, 16
      %v2255 = vrot.slane %v2253, 5
      %v2256 = vsel %vm342, %v2251, %v2255
      %v2258 = vshrl.u32 %v2107, 16
      %v2260 = vrot.slane %v2258, 4
      %v2261 = vshll.u32 %v2107, 16
      %v2263 = vrot.slane %v2261, 5
      %v2264 = vor.u32 %v2260, %v2263
      %v2265 = vrot.slane %v2264, 4
      %v2267 = vshll.u32 %v2108, 16
      %v2269 = vrot.slane %v2267, 5
      %v2270 = vsel %vm342, %v2265, %v2269
      %v2271 = vshrl.u32 %v2108, 16
      %v2273 = vrot.slane %v2271, 4
      %v2274 = vor.u32 %v2273, %v2269
      %v2275 = vrot.slane %v2274, 4
      %v2277 = vshll.u32 %v2109, 16
      %v2279 = vrot.slane %v2277, 5
      %v2280 = vsel %vm342, %v2275, %v2279
      %v2282 = vshrl.u32 %v2110, 16
      %v2284 = vrot.slane %v2282, 4
      %v2285 = vshll.u32 %v2110, 16
      %v2287 = vrot.slane %v2285, 5
      %v2288 = vor.u32 %v2284, %v2287
      %v2289 = vrot.slane %v2288, 4
      %v2291 = vshll.u32 %v2111, 16
      %v2293 = vrot.slane %v2291, 5
      %v2294 = vsel %vm342, %v2289, %v2293
      %v2295 = vshrl.u32 %v2111, 16
      %v2297 = vrot.slane %v2295, 4
      %v2298 = vor.u32 %v2297, %v2293
      %v2299 = vrot.slane %v2298, 4
      %v2301 = vshll.u32 %v2112, 16
      %v2303 = vrot.slane %v2301, 5
      %v2304 = vsel %vm342, %v2299, %v2303
      %s2305 = scalar_lea.vmem %s1, 448
      %v2306 = vld [vmem:[%s2305] sm:$0xf]
      %v2307 = vld [vmem:[%s2305 + $0x4] sm:$0xf]
      %v2308 = vld [vmem:[%s2305 + $0x8] sm:$0xf]
      %v2309 = vld [vmem:[%s2305 + $0xc] sm:$0xf]
      %v2310 = vld [vmem:[%s2305 + $0x10] sm:$0xf]
      %v2311 = vld [vmem:[%s2305 + $0x14] sm:$0xf]
      %v2312 = vld [vmem:[%s2305 + $0x18] sm:$0xf]
      %v2313 = vld [vmem:[%s2305 + $0x1c] sm:$0xf]
      %v2314 = vld [vmem:[%s2305 + $0x20] sm:$0xf]
      %v2315 = vld [vmem:[%s2305 + $0x24] sm:$0xf]
      %v2316 = vld [vmem:[%s2305 + $0x28] sm:$0xf]
      %v2317 = vld [vmem:[%s2305 + $0x2c] sm:$0xf]
      %v2318 = vld [vmem:[%s2305 + $0x30] sm:$0xf]
      %v2319 = vld [vmem:[%s2305 + $0x34] sm:$0xf]
      %v2320 = vld [vmem:[%s2305 + $0x38] sm:$0xf]
      %v2321 = vld [vmem:[%s2305 + $0x3c] sm:$0xf]
      %v2322 = vunpack.c.l.b16 %v2126
      %v2323 = vunpack.c.l.b16 %v2136
      %v2324 = vunpack.c.l.b16 %v2150
      %v2325 = vunpack.c.l.b16 %v2160
      %v2326 = vunpack.c.l.b16 %v2174
      %v2327 = vunpack.c.l.b16 %v2184
      %v2328 = vunpack.c.l.b16 %v2198
      %v2329 = vunpack.c.l.b16 %v2208
      %v2330 = vunpack.c.l.b16 %v2222
      %v2331 = vunpack.c.l.b16 %v2232
      %v2332 = vunpack.c.l.b16 %v2246
      %v2333 = vunpack.c.l.b16 %v2256
      %v2334 = vunpack.c.l.b16 %v2270
      %v2335 = vunpack.c.l.b16 %v2280
      %v2336 = vunpack.c.l.b16 %v2294
      %v2337 = vunpack.c.l.b16 %v2304
      %v2338 = vpack.c.b16 %v2323, %v2322
      %v2339 = vpack.c.b16 %v2325, %v2324
      %v2340 = vpack.c.b16 %v2327, %v2326
      %v2341 = vpack.c.b16 %v2329, %v2328
      %v2342 = vpack.c.b16 %v2331, %v2330
      %v2343 = vpack.c.b16 %v2333, %v2332
      %v2344 = vpack.c.b16 %v2335, %v2334
      %v2345 = vpack.c.b16 %v2337, %v2336
      %v2370 = vunpack.c.l.b16 %v2306
      %v2371 = vunpack.c.l.b16 %v2307
      %v2372 = vunpack.c.l.b16 %v2308
      %v2373 = vunpack.c.l.b16 %v2309
      %v2374 = vunpack.c.l.b16 %v2310
      %v2375 = vunpack.c.l.b16 %v2311
      %v2376 = vunpack.c.l.b16 %v2312
      %v2377 = vunpack.c.l.b16 %v2313
      %v2378 = vunpack.c.l.b16 %v2314
      %v2379 = vunpack.c.l.b16 %v2315
      %v2380 = vunpack.c.l.b16 %v2316
      %v2381 = vunpack.c.l.b16 %v2317
      %v2382 = vunpack.c.l.b16 %v2318
      %v2383 = vunpack.c.l.b16 %v2319
      %v2384 = vunpack.c.l.b16 %v2320
      %v2385 = vunpack.c.l.b16 %v2321
      %v2386 = vpack.c.b16 %v2371, %v2370
      %v2387 = vpack.c.b16 %v2373, %v2372
      %v2388 = vpack.c.b16 %v2375, %v2374
      %v2389 = vpack.c.b16 %v2377, %v2376
      %v2390 = vpack.c.b16 %v2379, %v2378
      %v2391 = vpack.c.b16 %v2381, %v2380
      %v2392 = vpack.c.b16 %v2383, %v2382
      %v2393 = vpack.c.b16 %v2385, %v2384
      %2402 = vmatpush.bf16.msra.mxu0 %v2393
      %2403 = vmatpush.bf16.msra.mxu0 %v2392
      %2404 = vmatpush.bf16.msra.mxu0 %v2391
      %2405 = vmatpush.bf16.msra.mxu0 %v2390
      %2406 = vmatpush.bf16.msra.mxu0 %v2389
      %2407 = vmatpush.bf16.msra.mxu0 %v2388
      %2408 = vmatpush.bf16.msra.mxu0 %v2387
      %2409 = vmatpush.bf16.msra.mxu0 %v2386
      %2410 = vmatmul.bf16.gmra.mxu0 %v2338
      %v2411 = vpop.f32.mrf.mxu0
      %v2412 = vadd.f32 0.0, %v2411
      %v2413 = vpop.f32.mrf.mxu0
      %v2414 = vadd.f32 0.0, %v2413
      %2415 = vmatmul.bf16.gmra.mxu0 %v2339
      %v2416 = vpop.f32.mrf.mxu0
      %v2417 = vadd.f32 0.0, %v2416
      %v2418 = vpop.f32.mrf.mxu0
      %v2419 = vadd.f32 0.0, %v2418
      %2420 = vmatmul.bf16.gmra.mxu0 %v2340
      %v2421 = vpop.f32.mrf.mxu0
      %v2422 = vadd.f32 0.0, %v2421
      %v2423 = vpop.f32.mrf.mxu0
      %v2424 = vadd.f32 0.0, %v2423
      %2425 = vmatmul.bf16.gmra.mxu0 %v2341
      %v2426 = vpop.f32.mrf.mxu0
      %v2427 = vadd.f32 0.0, %v2426
      %v2428 = vpop.f32.mrf.mxu0
      %v2429 = vadd.f32 0.0, %v2428
      %2430 = vmatmul.bf16.gmra.mxu0 %v2342
      %v2431 = vpop.f32.mrf.mxu0
      %v2432 = vadd.f32 0.0, %v2431
      %v2433 = vpop.f32.mrf.mxu0
      %v2434 = vadd.f32 0.0, %v2433
      %2435 = vmatmul.bf16.gmra.mxu0 %v2343
      %v2436 = vpop.f32.mrf.mxu0
      %v2437 = vadd.f32 0.0, %v2436
      %v2438 = vpop.f32.mrf.mxu0
      %v2439 = vadd.f32 0.0, %v2438
      %2440 = vmatmul.bf16.gmra.mxu0 %v2344
      %v2441 = vpop.f32.mrf.mxu0
      %v2442 = vadd.f32 0.0, %v2441
      %v2443 = vpop.f32.mrf.mxu0
      %v2444 = vadd.f32 0.0, %v2443
      %2445 = vmatmul.bf16.gmra.mxu0 %v2345
      %v2446 = vpop.f32.mrf.mxu0
      %v2447 = vadd.f32 0.0, %v2446
      %v2448 = vpop.f32.mrf.mxu0
      %v2449 = vadd.f32 0.0, %v2448
      %2450 = vdwg.mxu0
      %v2451 = vadd.f32 %v2073, %v2412
      %v2452 = vadd.f32 %v2074, %v2414
      %v2453 = vadd.f32 %v2075, %v2417
      %v2454 = vadd.f32 %v2076, %v2419
      %v2455 = vadd.f32 %v2077, %v2422
      %v2456 = vadd.f32 %v2078, %v2424
      %v2457 = vadd.f32 %v2079, %v2427
      %v2458 = vadd.f32 %v2080, %v2429
      %v2459 = vadd.f32 %v2081, %v2432
      %v2460 = vadd.f32 %v2082, %v2434
      %v2461 = vadd.f32 %v2083, %v2437
      %v2462 = vadd.f32 %v2084, %v2439
      %v2463 = vadd.f32 %v2085, %v2442
      %v2464 = vadd.f32 %v2086, %v2444
      %v2465 = vadd.f32 %v2087, %v2447
      %v2466 = vadd.f32 %v2088, %v2449
      %v2467 = vld [vmem:[%s1894] sm:$0xe]
      %v2468 = vld [vmem:[%s1894 + $0xc] sm:$0xe]
      %v2469 = vld [vmem:[%s1894 + $0x18] sm:$0xe]
      %v2470 = vld [vmem:[%s1894 + $0x24] sm:$0xe]
      %v2471 = vld [vmem:[%s1894 + $0x30] sm:$0xe]
      %v2472 = vld [vmem:[%s1894 + $0x3c] sm:$0xe]
      %v2473 = vld [vmem:[%s1894 + $0x48] sm:$0xe]
      %v2474 = vld [vmem:[%s1894 + $0x54] sm:$0xe]
      %v2499 = vrot.slane %v2467, 5
      %v2500 = vrot.slane %v2499, 4
      %v2501 = vrot.slane %v2090, 5
      %v2502 = vsel %vm852, %v2500, %v2501
      %v2503 = vrot.slane %v2501, 4
      %v2504 = vrot.slane %v2091, 5
      %v2505 = vsel %vm852, %v2503, %v2504
      %v2506 = vrot.slane %v2468, 5
      %v2507 = vrot.slane %v2506, 4
      %v2508 = vrot.slane %v2093, 5
      %v2509 = vsel %vm852, %v2507, %v2508
      %v2510 = vrot.slane %v2508, 4
      %v2511 = vrot.slane %v2094, 5
      %v2512 = vsel %vm852, %v2510, %v2511
      %v2513 = vrot.slane %v2469, 5
      %v2514 = vrot.slane %v2513, 4
      %v2515 = vrot.slane %v2096, 5
      %v2516 = vsel %vm852, %v2514, %v2515
      %v2517 = vrot.slane %v2515, 4
      %v2518 = vrot.slane %v2097, 5
      %v2519 = vsel %vm852, %v2517, %v2518
      %v2520 = vrot.slane %v2470, 5
      %v2521 = vrot.slane %v2520, 4
      %v2522 = vrot.slane %v2099, 5
      %v2523 = vsel %vm852, %v2521, %v2522
      %v2524 = vrot.slane %v2522, 4
      %v2525 = vrot.slane %v2100, 5
      %v2526 = vsel %vm852, %v2524, %v2525
      %v2527 = vrot.slane %v2471, 5
      %v2528 = vrot.slane %v2527, 4
      %v2529 = vrot.slane %v2102, 5
      %v2530 = vsel %vm852, %v2528, %v2529
      %v2531 = vrot.slane %v2529, 4
      %v2532 = vrot.slane %v2103, 5
      %v2533 = vsel %vm852, %v2531, %v2532
      %v2534 = vrot.slane %v2472, 5
      %v2535 = vrot.slane %v2534, 4
      %v2536 = vrot.slane %v2105, 5
      %v2537 = vsel %vm852, %v2535, %v2536
      %v2538 = vrot.slane %v2536, 4
      %v2539 = vrot.slane %v2106, 5
      %v2540 = vsel %vm852, %v2538, %v2539
      %v2541 = vrot.slane %v2473, 5
      %v2542 = vrot.slane %v2541, 4
      %v2543 = vrot.slane %v2108, 5
      %v2544 = vsel %vm852, %v2542, %v2543
      %v2545 = vrot.slane %v2543, 4
      %v2546 = vrot.slane %v2109, 5
      %v2547 = vsel %vm852, %v2545, %v2546
      %v2548 = vrot.slane %v2474, 5
      %v2549 = vrot.slane %v2548, 4
      %v2550 = vrot.slane %v2111, 5
      %v2551 = vsel %vm852, %v2549, %v2550
      %v2552 = vrot.slane %v2550, 4
      %v2553 = vrot.slane %v2112, 5
      %v2554 = vsel %vm852, %v2552, %v2553
      %s2555 = scalar_lea.vmem %s1, 512
      %v2556 = vld [vmem:[%s2555] sm:$0xf]
      %v2557 = vld [vmem:[%s2555 + $0x4] sm:$0xf]
      %v2558 = vld [vmem:[%s2555 + $0x8] sm:$0xf]
      %v2559 = vld [vmem:[%s2555 + $0xc] sm:$0xf]
      %v2560 = vld [vmem:[%s2555 + $0x10] sm:$0xf]
      %v2561 = vld [vmem:[%s2555 + $0x14] sm:$0xf]
      %v2562 = vld [vmem:[%s2555 + $0x18] sm:$0xf]
      %v2563 = vld [vmem:[%s2555 + $0x1c] sm:$0xf]
      %v2564 = vld [vmem:[%s2555 + $0x20] sm:$0xf]
      %v2565 = vld [vmem:[%s2555 + $0x24] sm:$0xf]
      %v2566 = vld [vmem:[%s2555 + $0x28] sm:$0xf]
      %v2567 = vld [vmem:[%s2555 + $0x2c] sm:$0xf]
      %v2568 = vld [vmem:[%s2555 + $0x30] sm:$0xf]
      %v2569 = vld [vmem:[%s2555 + $0x34] sm:$0xf]
      %v2570 = vld [vmem:[%s2555 + $0x38] sm:$0xf]
      %v2571 = vld [vmem:[%s2555 + $0x3c] sm:$0xf]
      %v2572 = vunpack.c.l.b16 %v2502
      %v2573 = vunpack.c.l.b16 %v2505
      %v2574 = vunpack.c.l.b16 %v2509
      %v2575 = vunpack.c.l.b16 %v2512
      %v2576 = vunpack.c.l.b16 %v2516
      %v2577 = vunpack.c.l.b16 %v2519
      %v2578 = vunpack.c.l.b16 %v2523
      %v2579 = vunpack.c.l.b16 %v2526
      %v2580 = vunpack.c.l.b16 %v2530
      %v2581 = vunpack.c.l.b16 %v2533
      %v2582 = vunpack.c.l.b16 %v2537
      %v2583 = vunpack.c.l.b16 %v2540
      %v2584 = vunpack.c.l.b16 %v2544
      %v2585 = vunpack.c.l.b16 %v2547
      %v2586 = vunpack.c.l.b16 %v2551
      %v2587 = vunpack.c.l.b16 %v2554
      %v2588 = vpack.c.b16 %v2573, %v2572
      %v2589 = vpack.c.b16 %v2575, %v2574
      %v2590 = vpack.c.b16 %v2577, %v2576
      %v2591 = vpack.c.b16 %v2579, %v2578
      %v2592 = vpack.c.b16 %v2581, %v2580
      %v2593 = vpack.c.b16 %v2583, %v2582
      %v2594 = vpack.c.b16 %v2585, %v2584
      %v2595 = vpack.c.b16 %v2587, %v2586
      %v2620 = vunpack.c.l.b16 %v2556
      %v2621 = vunpack.c.l.b16 %v2557
      %v2622 = vunpack.c.l.b16 %v2558
      %v2623 = vunpack.c.l.b16 %v2559
      %v2624 = vunpack.c.l.b16 %v2560
      %v2625 = vunpack.c.l.b16 %v2561
      %v2626 = vunpack.c.l.b16 %v2562
      %v2627 = vunpack.c.l.b16 %v2563
      %v2628 = vunpack.c.l.b16 %v2564
      %v2629 = vunpack.c.l.b16 %v2565
      %v2630 = vunpack.c.l.b16 %v2566
      %v2631 = vunpack.c.l.b16 %v2567
      %v2632 = vunpack.c.l.b16 %v2568
      %v2633 = vunpack.c.l.b16 %v2569
      %v2634 = vunpack.c.l.b16 %v2570
      %v2635 = vunpack.c.l.b16 %v2571
      %v2636 = vpack.c.b16 %v2621, %v2620
      %v2637 = vpack.c.b16 %v2623, %v2622
      %v2638 = vpack.c.b16 %v2625, %v2624
      %v2639 = vpack.c.b16 %v2627, %v2626
      %v2640 = vpack.c.b16 %v2629, %v2628
      %v2641 = vpack.c.b16 %v2631, %v2630
      %v2642 = vpack.c.b16 %v2633, %v2632
      %v2643 = vpack.c.b16 %v2635, %v2634
      %2652 = vmatpush.bf16.msra.mxu0 %v2643
      %2653 = vmatpush.bf16.msra.mxu0 %v2642
      %2654 = vmatpush.bf16.msra.mxu0 %v2641
      %2655 = vmatpush.bf16.msra.mxu0 %v2640
      %2656 = vmatpush.bf16.msra.mxu0 %v2639
      %2657 = vmatpush.bf16.msra.mxu0 %v2638
      %2658 = vmatpush.bf16.msra.mxu0 %v2637
      %2659 = vmatpush.bf16.msra.mxu0 %v2636
      %2660 = vmatmul.bf16.gmra.mxu0 %v2588
      %v2661 = vpop.f32.mrf.mxu0
      %v2662 = vadd.f32 0.0, %v2661
      %v2663 = vpop.f32.mrf.mxu0
      %v2664 = vadd.f32 0.0, %v2663
      %2665 = vmatmul.bf16.gmra.mxu0 %v2589
      %v2666 = vpop.f32.mrf.mxu0
      %v2667 = vadd.f32 0.0, %v2666
      %v2668 = vpop.f32.mrf.mxu0
      %v2669 = vadd.f32 0.0, %v2668
      %2670 = vmatmul.bf16.gmra.mxu0 %v2590
      %v2671 = vpop.f32.mrf.mxu0
      %v2672 = vadd.f32 0.0, %v2671
      %v2673 = vpop.f32.mrf.mxu0
      %v2674 = vadd.f32 0.0, %v2673
      %2675 = vmatmul.bf16.gmra.mxu0 %v2591
      %v2676 = vpop.f32.mrf.mxu0
      %v2677 = vadd.f32 0.0, %v2676
      %v2678 = vpop.f32.mrf.mxu0
      %v2679 = vadd.f32 0.0, %v2678
      %2680 = vmatmul.bf16.gmra.mxu0 %v2592
      %v2681 = vpop.f32.mrf.mxu0
      %v2682 = vadd.f32 0.0, %v2681
      %v2683 = vpop.f32.mrf.mxu0
      %v2684 = vadd.f32 0.0, %v2683
      %2685 = vmatmul.bf16.gmra.mxu0 %v2593
      %v2686 = vpop.f32.mrf.mxu0
      %v2687 = vadd.f32 0.0, %v2686
      %v2688 = vpop.f32.mrf.mxu0
      %v2689 = vadd.f32 0.0, %v2688
      %2690 = vmatmul.bf16.gmra.mxu0 %v2594
      %v2691 = vpop.f32.mrf.mxu0
      %v2692 = vadd.f32 0.0, %v2691
      %v2693 = vpop.f32.mrf.mxu0
      %v2694 = vadd.f32 0.0, %v2693
      %2695 = vmatmul.bf16.gmra.mxu0 %v2595
      %v2696 = vpop.f32.mrf.mxu0
      %v2697 = vadd.f32 0.0, %v2696
      %v2698 = vpop.f32.mrf.mxu0
      %v2699 = vadd.f32 0.0, %v2698
      %2700 = vdwg.mxu0
      %v2701 = vadd.f32 %v2451, %v2662
      %v2702 = vadd.f32 %v2452, %v2664
      %v2703 = vadd.f32 %v2453, %v2667
      %v2704 = vadd.f32 %v2454, %v2669
      %v2705 = vadd.f32 %v2455, %v2672
      %v2706 = vadd.f32 %v2456, %v2674
      %v2707 = vadd.f32 %v2457, %v2677
      %v2708 = vadd.f32 %v2458, %v2679
      %v2709 = vadd.f32 %v2459, %v2682
      %v2710 = vadd.f32 %v2460, %v2684
      %v2711 = vadd.f32 %v2461, %v2687
      %v2712 = vadd.f32 %v2462, %v2689
      %v2713 = vadd.f32 %v2463, %v2692
      %v2714 = vadd.f32 %v2464, %v2694
      %v2715 = vadd.f32 %v2465, %v2697
      %v2716 = vadd.f32 %v2466, %v2699
      %v2717 = vld [vmem:[%s2] sm:$0x1]
      %v2719 = vperm.slane %v2717, 0
      %v2721 = vadd.f32 %v2701, %v2719
      %v2722 = vadd.f32 %v2702, %v2719
      %v2723 = vadd.f32 %v2703, %v2719
      %v2724 = vadd.f32 %v2704, %v2719
      %v2725 = vadd.f32 %v2705, %v2719
      %v2726 = vadd.f32 %v2706, %v2719
      %v2727 = vadd.f32 %v2707, %v2719
      %v2728 = vadd.f32 %v2708, %v2719
      %v2729 = vadd.f32 %v2709, %v2719
      %v2730 = vadd.f32 %v2710, %v2719
      %v2731 = vadd.f32 %v2711, %v2719
      %v2732 = vadd.f32 %v2712, %v2719
      %v2733 = vadd.f32 %v2713, %v2719
      %v2734 = vadd.f32 %v2714, %v2719
      %v2735 = vadd.f32 %v2715, %v2719
      %v2736 = vadd.f32 %v2716, %v2719
      %2737 = vst [vmem:[%s294] sm:$0xff] %v2721
      %2738 = vst [vmem:[%s294 + $0x8] sm:$0xff] %v2722
      %2739 = vst [vmem:[%s294 + $0x10] sm:$0xff] %v2723
      %2740 = vst [vmem:[%s294 + $0x18] sm:$0xff] %v2724
      %2741 = vst [vmem:[%s294 + $0x20] sm:$0xff] %v2725
      %2742 = vst [vmem:[%s294 + $0x28] sm:$0xff] %v2726
      %2743 = vst [vmem:[%s294 + $0x30] sm:$0xff] %v2727
      %2744 = vst [vmem:[%s294 + $0x38] sm:$0xff] %v2728
      %2745 = vst [vmem:[%s294 + $0x40] sm:$0xff] %v2729
      %2746 = vst [vmem:[%s294 + $0x48] sm:$0xff] %v2730
      %2747 = vst [vmem:[%s294 + $0x50] sm:$0xff] %v2731
      %2748 = vst [vmem:[%s294 + $0x58] sm:$0xff] %v2732
      %2749 = vst [vmem:[%s294 + $0x60] sm:$0xff] %v2733
      %2750 = vst [vmem:[%s294 + $0x68] sm:$0xff] %v2734
      %2751 = vst [vmem:[%s294 + $0x70] sm:$0xff] %v2735
      %2752 = vst [vmem:[%s294 + $0x78] sm:$0xff] %v2736
      %v2753 = vadd.f32 %v2721, %v2722
      %v2754 = vadd.f32 %v2753, %v2723
      %v2755 = vadd.f32 %v2754, %v2724
      %v2756 = vadd.f32 %v2755, %v2725
      %v2757 = vadd.f32 %v2756, %v2726
      %v2758 = vadd.f32 %v2757, %v2727
      %v2759 = vadd.f32 %v2758, %v2728
      %v2760 = vadd.f32 %v2759, %v2729
      %v2761 = vadd.f32 %v2760, %v2730
      %v2762 = vadd.f32 %v2761, %v2731
      %v2763 = vadd.f32 %v2762, %v2732
      %v2764 = vadd.f32 %v2763, %v2733
      %v2765 = vadd.f32 %v2764, %v2734
      %v2766 = vadd.f32 %v2765, %v2735
      %v2767 = vadd.f32 %v2766, %v2736
      %v2768 = vrot.slane %v2767, 4
      %v2769 = vadd.f32 %v2767, %v2768
      %v2770 = vrot.slane %v2769, 2
      %v2771 = vadd.f32 %v2769, %v2770
      %v2772 = vrot.slane %v2771, 1
      %v2773 = vadd.f32 %v2771, %v2772
      %v2774 = vld [vmem:[%s3] sm:$0xff]
      %v2775 = vld [vmem:[%s3 + $0x8] sm:$0xff]
      %v2776 = vld [vmem:[%s3 + $0x10] sm:$0xff]
      %v2777 = vld [vmem:[%s3 + $0x18] sm:$0xff]
      %v2778 = vld [vmem:[%s3 + $0x20] sm:$0xff]
      %v2779 = vld [vmem:[%s3 + $0x28] sm:$0xff]
      %v2780 = vld [vmem:[%s3 + $0x30] sm:$0xff]
      %v2781 = vld [vmem:[%s3 + $0x38] sm:$0xff]
      %v2782 = vld [vmem:[%s3 + $0x40] sm:$0xff]
      %v2783 = vld [vmem:[%s3 + $0x48] sm:$0xff]
      %v2784 = vld [vmem:[%s3 + $0x50] sm:$0xff]
      %v2785 = vld [vmem:[%s3 + $0x58] sm:$0xff]
      %v2786 = vld [vmem:[%s3 + $0x60] sm:$0xff]
      %v2787 = vld [vmem:[%s3 + $0x68] sm:$0xff]
      %v2788 = vld [vmem:[%s3 + $0x70] sm:$0xff]
      %v2789 = vld [vmem:[%s3 + $0x78] sm:$0xff]
      %2790 = vmatpush.msra.mxu0 %v2789
      %2791 = vmatpush.msra.mxu0 %v2788
      %2792 = vmatpush.msra.mxu0 %v2787
      %2793 = vmatpush.msra.mxu0 %v2786
      %2794 = vmatpush.msra.mxu0 %v2785
      %2795 = vmatpush.msra.mxu0 %v2784
      %2796 = vmatpush.msra.mxu0 %v2783
      %2797 = vmatpush.msra.mxu0 %v2782
      %2798 = vmatpush.msra.mxu0 %v2781
      %2799 = vmatpush.msra.mxu0 %v2780
      %2800 = vmatpush.msra.mxu0 %v2779
      %2801 = vmatpush.msra.mxu0 %v2778
      %2802 = vmatpush.msra.mxu0 %v2777
      %2803 = vmatpush.msra.mxu0 %v2776
      %2804 = vmatpush.msra.mxu0 %v2775
      %2805 = vmatpush.msra.mxu0 %v2774
      %2806 = vmatmul.f32.gmra.mxu0 %v2773
      %v2807 = vpop.f32.mrf.mxu0
      %v2808 = vadd.f32 0.0, %v2807
      %2809 = vdwg.mxu0
      %v2810 = vmul.f32 %v2808, 0.00390625
      %v2811 = vld [vmem:[%s4] sm:$0xf]
      %vm2812 = vcmask 31744
      %v2814 = vsel %vm2812, %v2810, 0
      %vm2816 = vcmask 1043456
      %v2818 = vsel %vm2816, %v2811, 0
      %2820 = vmatpush.msra.mxu0 0.0
      %2821 = vmatpush.msra.mxu0 0.0
      %2822 = vmatpush.msra.mxu0 0.0
      %2823 = vmatpush.msra.mxu0 0.0
      %2824 = vmatpush.msra.mxu0 0.0
      %2825 = vmatpush.msra.mxu0 0.0
      %2826 = vmatpush.msra.mxu0 0.0
      %2827 = vmatpush.msra.mxu0 0.0
      %2828 = vmatpush.msra.mxu0 0.0
      %2829 = vmatpush.msra.mxu0 0.0
      %2830 = vmatpush.msra.mxu0 0.0
      %2831 = vmatpush.msra.mxu0 0.0
      %2832 = vmatpush.msra.mxu0 0.0
      %2833 = vmatpush.msra.mxu0 0.0
      %2834 = vmatpush.msra.mxu0 0.0
      %2835 = vmatpush.msra.mxu0 %v2818
      %2836 = vmatmul.f32.gmra.mxu0 %v2814
      %v2837 = vpop.f32.mrf.mxu0
      %v2838 = vadd.f32 0.0, %v2837
      %2839 = vdwg.mxu0
      %v2840 = vperm.slane %v2838, 0
      %v2841 = vsub.f32 %v2721, %v2840
      %v2842 = vsub.f32 %v2722, %v2840
      %v2843 = vsub.f32 %v2723, %v2840
      %v2844 = vsub.f32 %v2724, %v2840
      %v2845 = vsub.f32 %v2725, %v2840
      %v2846 = vsub.f32 %v2726, %v2840
      %v2847 = vsub.f32 %v2727, %v2840
      %v2848 = vsub.f32 %v2728, %v2840
      %v2849 = vsub.f32 %v2729, %v2840
      %v2850 = vsub.f32 %v2730, %v2840
      %v2851 = vsub.f32 %v2731, %v2840
      %v2852 = vsub.f32 %v2732, %v2840
      %v2853 = vsub.f32 %v2733, %v2840
      %v2854 = vsub.f32 %v2734, %v2840
      %v2855 = vsub.f32 %v2735, %v2840
      %v2856 = vsub.f32 %v2736, %v2840
      %v2857 = vmul.f32 %v2841, %v2841
      %v2858 = vmul.f32 %v2842, %v2842
      %v2859 = vmul.f32 %v2843, %v2843
      %v2860 = vmul.f32 %v2844, %v2844
      %v2861 = vmul.f32 %v2845, %v2845
      %v2862 = vmul.f32 %v2846, %v2846
      %v2863 = vmul.f32 %v2847, %v2847
      %v2864 = vmul.f32 %v2848, %v2848
      %v2865 = vmul.f32 %v2849, %v2849
      %v2866 = vmul.f32 %v2850, %v2850
      %v2867 = vmul.f32 %v2851, %v2851
      %v2868 = vmul.f32 %v2852, %v2852
      %v2869 = vmul.f32 %v2853, %v2853
      %v2870 = vmul.f32 %v2854, %v2854
      %v2871 = vmul.f32 %v2855, %v2855
      %v2872 = vmul.f32 %v2856, %v2856
      %v2873 = vadd.f32 %v2857, %v2858
      %v2874 = vadd.f32 %v2873, %v2859
      %v2875 = vadd.f32 %v2874, %v2860
      %v2876 = vadd.f32 %v2875, %v2861
      %v2877 = vadd.f32 %v2876, %v2862
      %v2878 = vadd.f32 %v2877, %v2863
      %v2879 = vadd.f32 %v2878, %v2864
      %v2880 = vadd.f32 %v2879, %v2865
      %v2881 = vadd.f32 %v2880, %v2866
      %v2882 = vadd.f32 %v2881, %v2867
      %v2883 = vadd.f32 %v2882, %v2868
      %v2884 = vadd.f32 %v2883, %v2869
      %v2885 = vadd.f32 %v2884, %v2870
      %v2886 = vadd.f32 %v2885, %v2871
      %v2887 = vadd.f32 %v2886, %v2872
      %v2888 = vrot.slane %v2887, 4
      %v2889 = vadd.f32 %v2887, %v2888
      %v2890 = vrot.slane %v2889, 2
      %v2891 = vadd.f32 %v2889, %v2890
      %v2892 = vrot.slane %v2891, 1
      %v2893 = vadd.f32 %v2891, %v2892
      %2894 = vmatpush.msra.mxu0 %v2789
      %2895 = vmatpush.msra.mxu0 %v2788
      %2896 = vmatpush.msra.mxu0 %v2787
      %2897 = vmatpush.msra.mxu0 %v2786
      %2898 = vmatpush.msra.mxu0 %v2785
      %2899 = vmatpush.msra.mxu0 %v2784
      %2900 = vmatpush.msra.mxu0 %v2783
      %2901 = vmatpush.msra.mxu0 %v2782
      %2902 = vmatpush.msra.mxu0 %v2781
      %2903 = vmatpush.msra.mxu0 %v2780
      %2904 = vmatpush.msra.mxu0 %v2779
      %2905 = vmatpush.msra.mxu0 %v2778
      %2906 = vmatpush.msra.mxu0 %v2777
      %2907 = vmatpush.msra.mxu0 %v2776
      %2908 = vmatpush.msra.mxu0 %v2775
      %2909 = vmatpush.msra.mxu0 %v2774
      %2910 = vmatmul.f32.gmra.mxu0 %v2893
      %v2911 = vpop.f32.mrf.mxu0
      %v2912 = vadd.f32 0.0, %v2911
      %2913 = vdwg.mxu0
      %p2914 = scmp.eq.s32.totalorder %s23, 0
      // Predicated region
      $region41: #{residual_block_forward.4} parent=39 // pred_check
        %p2915 = pneg %p2914
      $region42: #{residual_block_forward.4} parent=39 // pred_check_branch
        %2917 = sbr.rel (%p2915) target = $region44
      $region43: #{residual_block_forward.4} parent=39 // pred_region
        %vm2918 = vcmask 25600
        %2919 = vst.msk [vmem:[%s299] sm:$0x3] %vm2918, 0.0
      $region44: #{residual_block_forward.4} parent=39 // pred_fallthru
        _
      %v2920 = vld [vmem:[%s299] sm:$0x1]
      %v2921 = vld [vmem:[%s299 + $0x1] sm:$0x1]
      %s2922 = scvt.s32.f32 %s23
      %s2923 = smul.f32 %s2922, 256.0
      %s2924 = sadd.f32 %s2923, 256.0
      %s2925 = smax.f32 %s2923, 1.0
      %v2926 = vstv %s2925
      %v2927 = vrcp.pop %v2926
      %v2928 = vmul.f32 %v2926, %v2927
      %v2929 = vsub.f32 1.0, %v2928
      %v2930 = vmul.f32 %v2927, %v2929
      %v2931 = vadd.f32 %v2927, %v2930
      %vm2932 = vweird.f32 %v2926
      %vm2933 = vweird.f32 %v2927
      %vm2934 = vmor %vm2932, %vm2933
      %v2935 = vsel %vm2934, %v2927, %v2931
      %v2936 = vand.u32 2147483647, %v2926
      %vm2937 = vcmp.eq.f32.partialorder %v2936, 8.507059e+37
      %v2938 = vand.u32 %v2926, 2147483648
      %v2939 = vor.u32 1.1754944e-38, %v2938
      %v2940 = vsel %vm2937, %v2939, %v2935
      %v2941 = vmul.f32 %v2920, %v2940
      %v2942 = vsub.f32 %v2810, %v2941
      %s2943 = scalar_select %p2914, 1, 0
      %v2944 = vstv %s2943
      %vm2945 = vcmp.eq.s32.totalorder %v2944, 1
      %v2946 = vsel %vm2945, 0.0, %v2942
      %v2947 = vadd.f32 %v2920, %v2808
      %vm2948 = vcmask 24576
      %2949 = vst.msk [vmem:[%s299] sm:$0x1] %vm2948, %v2947
      %v2950 = vadd.f32 %v2921, %v2912
      %v2951 = vmul.f32 %v2946, %v2946
      %s2952 = smul.f32 %s2923, 256.0
      %v2953 = vstv %s2924
      %v2954 = vrcp.pop %v2953
      %v2955 = vmul.f32 %v2953, %v2954
      %v2956 = vsub.f32 1.0, %v2955
      %v2957 = vmul.f32 %v2954, %v2956
      %v2958 = vadd.f32 %v2954, %v2957
      %vm2959 = vweird.f32 %v2953
      %vm2960 = vweird.f32 %v2954
      %vm2961 = vmor %vm2959, %vm2960
      %v2962 = vsel %vm2961, %v2954, %v2958
      %v2963 = vand.u32 2147483647, %v2953
      %vm2964 = vcmp.eq.f32.partialorder %v2963, 8.507059e+37
      %v2965 = vand.u32 %v2953, 2147483648
      %v2966 = vor.u32 1.1754944e-38, %v2965
      %v2967 = vsel %vm2964, %v2966, %v2962
      %s2968 = vtos %v2967
      %s2969 = smul.f32 %s2952, %s2968
      %v2970 = vstv %s2969
      %v2971 = vmul.f32 %v2951, %v2970
      %v2972 = vadd.f32 %v2950, %v2971
      %2973 = vst.msk [vmem:[%s299 + $0x1] sm:$0x1] %vm2948, %v2972
      %s2974 = smul.u32 16, %s23
      %p2975 = scmp.lt.s32.totalorder %s22, 1
      %s2976 = scalar_select %p2975, %s22, 1
      %p2977 = scmp.lt.s32.totalorder %s2974, 31
      %s2978 = scalar_select %p2977, %s2974, 31
      %s2979 = smul.addr %s2976, 32
      %s2980 = sadd.s32 %s2978, %s2979
      %s2981 = smul.addr %s2980, 8
      %s2982 = scalar_lea.vmem %s5, %s2981
      %p2983 = scmp.lt.s32.totalorder %s22, 1
      %s2984 = scalar_select %p2983, %s22, 1
      %s2985 = smul.addr %s2984, 2
      %s2986 = scalar_lea.vmem %s6, %s2985
      // Predicated region
      $region45: #{residual_block_forward.4} parent=39 // pred_check
        %p2987 = pneg %p164
      $region46: #{residual_block_forward.4} parent=39 // pred_check_branch
        %2989 = sbr.rel (%p2987) target = $region48
      $region47: #{residual_block_forward.4} parent=39 // pred_region
        %s2990 = smul.u32 16, %s23
      $region48: #{residual_block_forward.4} parent=39 // pred_fallthru
        _
      // Predicated region
      $region49: #{residual_block_forward.4} parent=39 // pred_check
        %p2991 = pneg %p190
      $region50: #{residual_block_forward.4} parent=39 // pred_check_branch
        %2993 = sbr.rel (%p2991) target = $region52
      $region51: #{residual_block_forward.4} parent=39 // pred_region
        _
      $region52: #{residual_block_forward.4} parent=39 // pred_fallthru
        _
    $region40: #{residual_block_forward.4} parent=5 // pred_fallthru
      _
    %p2994 = scmp.le.s32.totalorder 2, %s13
    // Predicated region
    $region53: #{residual_block_forward.4} parent=5 // pred_check
      %p2995 = pneg %p2994
    $region54: #{residual_block_forward.4} parent=5 // pred_check_branch
      %2997 = sbr.rel (%p2995) target = $region56
    $region55: #{residual_block_forward.4} parent=5 // pred_region
      %s2998 = ssub.s32 %s13, 2
      // Predicated region
      $region57: #{residual_block_forward.4} parent=55 // pred_check
        %p2999 = pneg %p170
      $region58: #{residual_block_forward.4} parent=55 // pred_check_branch
        %3001 = sbr.rel (%p2999) target = $region60
      $region59: #{residual_block_forward.4} parent=55 // pred_region
        %s3002 = smul.u32 16, %s25
        %p3003 = scmp.lt.s32.totalorder %s24, 1
        %s3004 = scalar_select %p3003, %s24, 1
        %p3005 = scmp.lt.s32.totalorder %s3002, 31
        %s3006 = scalar_select %p3005, %s3002, 31
        %s3007 = smul.addr %s3004, 32
        %s3008 = sadd.s32 %s3006, %s3007
        %s3009 = smul.addr %s3008, 8
        %s3010 = scalar_lea.vmem %s5, %s3009
      $region60: #{residual_block_forward.4} parent=55 // pred_fallthru
        _
      // Predicated region
      $region61: #{residual_block_forward.4} parent=55 // pred_check
        %p3011 = pneg %p196
      $region62: #{residual_block_forward.4} parent=55 // pred_check_branch
        %3013 = sbr.rel (%p3011) target = $region64
      $region63: #{residual_block_forward.4} parent=55 // pred_region
        %p3014 = scmp.lt.s32.totalorder %s24, 1
        %s3015 = scalar_select %p3014, %s24, 1
        %s3016 = smul.addr %s3015, 2
        %s3017 = scalar_lea.vmem %s6, %s3016
      $region64: #{residual_block_forward.4} parent=55 // pred_fallthru
        _
    $region56: #{residual_block_forward.4} parent=5 // pred_fallthru
      _
  $region6: #{residual_block_forward.4} parent=0 // loop_footer
    %s17 = sadd.s32 1, %s13
  $region7: #{residual_block_forward.4} parent=0 // loop_footer_branch
    %12 = sbr.rel target = $region3
  $region8: #{residual_block_forward.4} parent=0 // loop_exit
    _

// kernel: residual_block_forward.7
$region0: #{residual_block_forward.7}
  #allocation0 [shape = 'u32[]', space=smem, size = 0x4, offset = 0x4, fixed_abs, tag = 'smem constant byte address 0x4 - core index']
  #allocation1 [shape = 'u32[72,128]{1,0:T(1,128)}', space=vmem, size = 0x9000, scoped, tag = 'internal scratch']
  %s0 = inlined_call_operand.vmem [shape: f32[2,256,128], index: 0, kind: input, shape index: {}]
  %s1 = inlined_call_operand.vmem [shape: f32[2,2,4], index: 1, kind: input, shape index: {}]
  %s2 = inlined_call_operand.vmem [shape: f32[1,128], index: 2, kind: input, shape index: {}]
  %s3 = inlined_call_operand.vmem [shape: f32[1,128], index: 3, kind: input, shape index: {}]
  %s4 = inlined_call_operand.vmem [shape: f32[4,128], index: 4, kind: input, shape index: {}]
  %s5 = inlined_call_operand.vmem [shape: bf16[2,256,128], index: 5, kind: input, shape index: {}]
  %s6 = inlined_call_operand.vmem [shape: bf16[128,128], index: 6, kind: input, shape index: {}]
  %s7 = inlined_call_operand.vmem [shape: f32[1,128], index: 7, kind: input, shape index: {}]
  %s8 = inlined_call_operand.vmem [shape: f32[2,256,128], index: 8, kind: output, shape index: {}]
  %s9 = sld [smem:[#allocation0]]
  $region65: #{residual_block_forward.7} parent=0
    _
  %s11 = ssub.s32 1, %s9
  %s12 = scalar_select 0, %s11, %s9
  loop: start=0, step=1, limit=6
  $region2: #{residual_block_forward.7} parent=0 // loop_pre_header
    _
  $region3: #{residual_block_forward.7} parent=0 // loop_header
    %s14 = sphi 0, %s18
    %p15 = scmp.ge.s32.totalorder %s14, 6
    %s21 = sphi 0, %s33
    %s22 = sphi 0, %s29
    %s23 = sphi 0, %s21
    %s24 = sphi 0, %s22
    %s25 = sphi 0, %s23
    %s26 = sphi 0, %s24
    %s38 = sphi 0, %s40
    %s41 = sphi 0, %s38
    %s42 = sphi 0, %s41
    %s58 = sphi 0, %s42
    %s64 = sphi 0, %s66
    %s67 = sphi 0, %s64
    %s68 = sphi 0, %s67
    %s84 = sphi 0, %s68
    %s88 = sphi 0, %s88
    %s90 = sphi 0, %s88
    %s91 = sphi 0, %s90
    %s105 = sphi 0, %s91
    %s109 = sphi 0, %s109
    %s111 = sphi 0, %s109
    %s112 = sphi 0, %s111
    %s126 = sphi 0, %s112
    %s130 = sphi 0, %s130
    %s132 = sphi 0, %s130
    %s133 = sphi 0, %s132
    %s147 = sphi 0, %s133
    %s155 = sphi 0, %s157
    %s158 = sphi 0, %s155
    %s159 = sphi 0, %s158
    %s175 = sphi 0, %s159
    %s179 = sphi 0, %s179
    %s181 = sphi 0, %s179
    %s182 = sphi 0, %s181
    %s196 = sphi 0, %s182
    %s200 = sphi 0, %s200
    %s202 = sphi 0, %s200
    %s203 = sphi 0, %s202
    %s217 = sphi 0, %s203
    %s225 = sphi 0, %s227
    %s228 = sphi 0, %s225
    %s229 = sphi 0, %s228
    %s245 = sphi 0, %s229
  $region4: #{residual_block_forward.7} parent=0 // loop_header_branch
    %17 = sbr.rel (%p15) target = $region8
  $region5: #{residual_block_forward.7} parent=0 // loop_body
    %s19 = ssub.s32 %s14, 1
    %s20 = ssub.s32 %s14, 2
    %s27 = sadd.s32 1, %s22
    %p28 = scmp.ge.s32.totalorder %s27, 2
    %s29 = scalar_select %p28, 0, %s27
    %s30 = sadd.s32 1, %s21
    %s31 = scalar_select %p28, %s30, %s21
    %p32 = scmp.ge.s32.totalorder %s31, 2
    %s33 = scalar_select %p32, 0, %s31
    %s34 = ssub.s32 %s21, %s33
    %s35 = ssub.s32 %s22, %s29
    %s36 = sor.u32 %s34, %s35
    %p37 = scmp.eq.s32.totalorder %s36, 0
    %s39 = sadd.s32 %s38, 1
    %s40 = scalar_select %p37, %s38, %s39
    %p43 = pneg %p37
    %p44 = scmp.eq.s32.totalorder %s14, 3
    %p45 = por %p43, %p44
    %p46 = scmp.ne.s32.totalorder %s38, %s41
    %p47 = scmp.eq.s32.totalorder %s14, 0
    %p48 = por %p46, %p47
    %p49 = scmp.ne.s32.totalorder %s38, %s41
    %p50 = scmp.eq.s32.totalorder %s19, 3
    %p51 = por %p49, %p50
    %p52 = scmp.ne.s32.totalorder %s41, %s42
    %p53 = scmp.eq.s32.totalorder %s19, 0
    %p54 = por %p52, %p53
    %p55 = scmp.ne.s32.totalorder %s41, %s42
    %p56 = scmp.eq.s32.totalorder %s20, 3
    %p57 = por %p55, %p56
    %p59 = scmp.ne.s32.totalorder %s42, %s58
    %p60 = scmp.eq.s32.totalorder %s20, 0
    %p61 = por %p59, %p60
    %s62 = ssub.s32 %s21, %s33
    %p63 = scmp.eq.s32.totalorder %s62, 0
    %s65 = sadd.s32 %s64, 1
    %s66 = scalar_select %p63, %s64, %s65
    %p69 = pneg %p63
    %p70 = scmp.eq.s32.totalorder %s14, 3
    %p71 = por %p69, %p70
    %p72 = scmp.ne.s32.totalorder %s64, %s67
    %p73 = scmp.eq.s32.totalorder %s14, 0
    %p74 = por %p72, %p73
    %p75 = scmp.ne.s32.totalorder %s64, %s67
    %p76 = scmp.eq.s32.totalorder %s19, 3
    %p77 = por %p75, %p76
    %p78 = scmp.ne.s32.totalorder %s67, %s68
    %p79 = scmp.eq.s32.totalorder %s19, 0
    %p80 = por %p78, %p79
    %p81 = scmp.ne.s32.totalorder %s67, %s68
    %p82 = scmp.eq.s32.totalorder %s20, 3
    %p83 = por %p81, %p82
    %p85 = scmp.ne.s32.totalorder %s68, %s84
    %p86 = scmp.eq.s32.totalorder %s20, 0
    %p87 = por %p85, %p86
    %s89 = sadd.s32 %s88, 1
    %p92 = scmp.eq.s32.totalorder %s14, 3
    %p93 = scmp.ne.s32.totalorder %s88, %s90
    %p94 = scmp.eq.s32.totalorder %s14, 0
    %p95 = por %p93, %p94
    %p96 = scmp.ne.s32.totalorder %s88, %s90
    %p97 = scmp.eq.s32.totalorder %s19, 3
    %p98 = por %p96, %p97
    %p99 = scmp.ne.s32.totalorder %s90, %s91
    %p100 = scmp.eq.s32.totalorder %s19, 0
    %p101 = por %p99, %p100
    %p102 = scmp.ne.s32.totalorder %s90, %s91
    %p103 = scmp.eq.s32.totalorder %s20, 3
    %p104 = por %p102, %p103
    %p106 = scmp.ne.s32.totalorder %s91, %s105
    %p107 = scmp.eq.s32.totalorder %s20, 0
    %p108 = por %p106, %p107
    %s110 = sadd.s32 %s109, 1
    %p113 = scmp.eq.s32.totalorder %s14, 3
    %p114 = scmp.ne.s32.totalorder %s109, %s111
    %p115 = scmp.eq.s32.totalorder %s14, 0
    %p116 = por %p114, %p115
    %p117 = scmp.ne.s32.totalorder %s109, %s111
    %p118 = scmp.eq.s32.totalorder %s19, 3
    %p119 = por %p117, %p118
    %p120 = scmp.ne.s32.totalorder %s111, %s112
    %p121 = scmp.eq.s32.totalorder %s19, 0
    %p122 = por %p120, %p121
    %p123 = scmp.ne.s32.totalorder %s111, %s112
    %p124 = scmp.eq.s32.totalorder %s20, 3
    %p125 = por %p123, %p124
    %p127 = scmp.ne.s32.totalorder %s112, %s126
    %p128 = scmp.eq.s32.totalorder %s20, 0
    %p129 = por %p127, %p128
    %s131 = sadd.s32 %s130, 1
    %p134 = scmp.eq.s32.totalorder %s14, 3
    %p135 = scmp.ne.s32.totalorder %s130, %s132
    %p136 = scmp.eq.s32.totalorder %s14, 0
    %p137 = por %p135, %p136
    %p138 = scmp.ne.s32.totalorder %s130, %s132
    %p139 = scmp.eq.s32.totalorder %s19, 3
    %p140 = por %p138, %p139
    %p141 = scmp.ne.s32.totalorder %s132, %s133
    %p142 = scmp.eq.s32.totalorder %s19, 0
    %p143 = por %p141, %p142
    %p144 = scmp.ne.s32.totalorder %s132, %s133
    %p145 = scmp.eq.s32.totalorder %s20, 3
    %p146 = por %p144, %p145
    %p148 = scmp.ne.s32.totalorder %s133, %s147
    %p149 = scmp.eq.s32.totalorder %s20, 0
    %p150 = por %p148, %p149
    %s151 = ssub.s32 %s21, %s33
    %s152 = ssub.s32 %s22, %s29
    %s153 = sor.u32 %s151, %s152
    %p154 = scmp.eq.s32.totalorder %s153, 0
    %s156 = sadd.s32 %s155, 1
    %s157 = scalar_select %p154, %s155, %s156
    %p160 = pneg %p154
    %p161 = scmp.eq.s32.totalorder %s14, 3
    %p162 = por %p160, %p161
    %p163 = scmp.ne.s32.totalorder %s155, %s158
    %p164 = scmp.eq.s32.totalorder %s14, 0
    %p165 = por %p163, %p164
    %p166 = scmp.ne.s32.totalorder %s155, %s158
    %p167 = scmp.eq.s32.totalorder %s19, 3
    %p168 = por %p166, %p167
    %p169 = scmp.ne.s32.totalorder %s158, %s159
    %p170 = scmp.eq.s32.totalorder %s19, 0
    %p171 = por %p169, %p170
    %p172 = scmp.ne.s32.totalorder %s158, %s159
    %p173 = scmp.eq.s32.totalorder %s20, 3
    %p174 = por %p172, %p173
    %p176 = scmp.ne.s32.totalorder %s159, %s175
    %p177 = scmp.eq.s32.totalorder %s20, 0
    %p178 = por %p176, %p177
    %s180 = sadd.s32 %s179, 1
    %p183 = scmp.eq.s32.totalorder %s14, 3
    %p184 = scmp.ne.s32.totalorder %s179, %s181
    %p185 = scmp.eq.s32.totalorder %s14, 0
    %p186 = por %p184, %p185
    %p187 = scmp.ne.s32.totalorder %s179, %s181
    %p188 = scmp.eq.s32.totalorder %s19, 3
    %p189 = por %p187, %p188
    %p190 = scmp.ne.s32.totalorder %s181, %s182
    %p191 = scmp.eq.s32.totalorder %s19, 0
    %p192 = por %p190, %p191
    %p193 = scmp.ne.s32.totalorder %s181, %s182
    %p194 = scmp.eq.s32.totalorder %s20, 3
    %p195 = por %p193, %p194
    %p197 = scmp.ne.s32.totalorder %s182, %s196
    %p198 = scmp.eq.s32.totalorder %s20, 0
    %p199 = por %p197, %p198
    %s201 = sadd.s32 %s200, 1
    %p204 = scmp.eq.s32.totalorder %s14, 3
    %p205 = scmp.ne.s32.totalorder %s200, %s202
    %p206 = scmp.eq.s32.totalorder %s14, 0
    %p207 = por %p205, %p206
    %p208 = scmp.ne.s32.totalorder %s200, %s202
    %p209 = scmp.eq.s32.totalorder %s19, 3
    %p210 = por %p208, %p209
    %p211 = scmp.ne.s32.totalorder %s202, %s203
    %p212 = scmp.eq.s32.totalorder %s19, 0
    %p213 = por %p211, %p212
    %p214 = scmp.ne.s32.totalorder %s202, %s203
    %p215 = scmp.eq.s32.totalorder %s20, 3
    %p216 = por %p214, %p215
    %p218 = scmp.ne.s32.totalorder %s203, %s217
    %p219 = scmp.eq.s32.totalorder %s20, 0
    %p220 = por %p218, %p219
    %s221 = ssub.s32 %s21, %s33
    %s222 = ssub.s32 %s22, %s29
    %s223 = sor.u32 %s221, %s222
    %p224 = scmp.eq.s32.totalorder %s223, 0
    %s226 = sadd.s32 %s225, 1
    %s227 = scalar_select %p224, %s225, %s226
    %p230 = pneg %p224
    %p231 = scmp.eq.s32.totalorder %s14, 3
    %p232 = por %p230, %p231
    %p233 = scmp.ne.s32.totalorder %s225, %s228
    %p234 = scmp.eq.s32.totalorder %s14, 0
    %p235 = por %p233, %p234
    %p236 = scmp.ne.s32.totalorder %s225, %s228
    %p237 = scmp.eq.s32.totalorder %s19, 3
    %p238 = por %p236, %p237
    %p239 = scmp.ne.s32.totalorder %s228, %s229
    %p240 = scmp.eq.s32.totalorder %s19, 0
    %p241 = por %p239, %p240
    %p242 = scmp.ne.s32.totalorder %s228, %s229
    %p243 = scmp.eq.s32.totalorder %s20, 3
    %p244 = por %p242, %p243
    %p246 = scmp.ne.s32.totalorder %s229, %s245
    %p247 = scmp.eq.s32.totalorder %s20, 0
    %p248 = por %p246, %p247
    %p249 = scmp.le.s32.totalorder 1, %s14
    %p250 = scmp.lt.s32.totalorder %s14, 5
    %p251 = pnand %p249, %p250
    %p252 = pneg %p251
    // Predicated region
    $region9: #{residual_block_forward.7} parent=5 // pred_check
      _
    $region10: #{residual_block_forward.7} parent=5 // pred_check_branch
      %254 = sbr.rel (%p251) target = $region12
    $region11: #{residual_block_forward.7} parent=5 // pred_region
      %s255 = ssub.s32 %s14, 1
      // Predicated region
      $region13: #{residual_block_forward.7} parent=11 // pred_check
        %p256 = pneg %p101
      $region14: #{residual_block_forward.7} parent=11 // pred_check_branch
        %258 = sbr.rel (%p256) target = $region16
      $region15: #{residual_block_forward.7} parent=11 // pred_region
        _
      $region16: #{residual_block_forward.7} parent=11 // pred_fallthru
        _
      // Predicated region
      $region17: #{residual_block_forward.7} parent=11 // pred_check
        %p259 = pneg %p122
      $region18: #{residual_block_forward.7} parent=11 // pred_check_branch
        %261 = sbr.rel (%p259) target = $region20
      $region19: #{residual_block_forward.7} parent=11 // pred_region
        _
      $region20: #{residual_block_forward.7} parent=11 // pred_fallthru
        _
      // Predicated region
      $region21: #{residual_block_forward.7} parent=11 // pred_check
        %p262 = pneg %p143
      $region22: #{residual_block_forward.7} parent=11 // pred_check_branch
        %264 = sbr.rel (%p262) target = $region24
      $region23: #{residual_block_forward.7} parent=11 // pred_region
        _
      $region24: #{residual_block_forward.7} parent=11 // pred_fallthru
        _
      // Predicated region
      $region25: #{residual_block_forward.7} parent=11 // pred_check
        %p265 = pneg %p192
      $region26: #{residual_block_forward.7} parent=11 // pred_check_branch
        %267 = sbr.rel (%p265) target = $region28
      $region27: #{residual_block_forward.7} parent=11 // pred_region
        _
      $region28: #{residual_block_forward.7} parent=11 // pred_fallthru
        _
      // Predicated region
      $region29: #{residual_block_forward.7} parent=11 // pred_check
        %p268 = pneg %p213
      $region30: #{residual_block_forward.7} parent=11 // pred_check_branch
        %270 = sbr.rel (%p268) target = $region32
      $region31: #{residual_block_forward.7} parent=11 // pred_region
        _
      $region32: #{residual_block_forward.7} parent=11 // pred_fallthru
        _
    $region12: #{residual_block_forward.7} parent=5 // pred_fallthru
      _
    %p271 = scmp.lt.s32.totalorder %s14, 4
    // Predicated region
    $region33: #{residual_block_forward.7} parent=5 // pred_check
      %p272 = pneg %p271
    $region34: #{residual_block_forward.7} parent=5 // pred_check_branch
      %274 = sbr.rel (%p272) target = $region36
    $region35: #{residual_block_forward.7} parent=5 // pred_region
      // Predicated region
      $region37: #{residual_block_forward.7} parent=35 // pred_check
        %p275 = pneg %p48
      $region38: #{residual_block_forward.7} parent=35 // pred_check_branch
        %277 = sbr.rel (%p275) target = $region40
      $region39: #{residual_block_forward.7} parent=35 // pred_region
        %s278 = smul.u32 16, %s22
        %p279 = scmp.lt.s32.totalorder %s21, 1
        %s280 = scalar_select %p279, %s21, 1
        %p281 = scmp.lt.s32.totalorder %s278, 31
        %s282 = scalar_select %p281, %s278, 31
        %s283 = smul.addr %s280, 32
        %s284 = sadd.s32 %s282, %s283
        %s285 = smul.addr %s284, 8
        %s286 = scalar_lea.vmem %s0, %s285
        %s287 = smul.u32 16, %s22
      $region40: #{residual_block_forward.7} parent=35 // pred_fallthru
        _
      // Predicated region
      $region41: #{residual_block_forward.7} parent=35 // pred_check
        %p288 = pneg %p74
      $region42: #{residual_block_forward.7} parent=35 // pred_check_branch
        %290 = sbr.rel (%p288) target = $region44
      $region43: #{residual_block_forward.7} parent=35 // pred_region
        %p291 = scmp.lt.s32.totalorder %s21, 1
        %s292 = scalar_select %p291, %s21, 1
        %s293 = smul.addr %s292, 2
        %s294 = scalar_lea.vmem %s1, %s293
      $region44: #{residual_block_forward.7} parent=35 // pred_fallthru
        _
      // Predicated region
      $region45: #{residual_block_forward.7} parent=35 // pred_check
        %p295 = pneg %p165
      $region46: #{residual_block_forward.7} parent=35 // pred_check_branch
        %297 = sbr.rel (%p295) target = $region48
      $region47: #{residual_block_forward.7} parent=35 // pred_region
        %s298 = smul.u32 16, %s22
        %p299 = scmp.lt.s32.totalorder %s21, 1
        %s300 = scalar_select %p299, %s21, 1
        %p301 = scmp.lt.s32.totalorder %s298, 31
        %s302 = scalar_select %p301, %s298, 31
        %s303 = smul.addr %s300, 32
        %s304 = sadd.s32 %s302, %s303
        %s305 = smul.addr %s304, 4
        %s306 = scalar_lea.vmem %s5, %s305
        %s307 = smul.u32 16, %s22
      $region48: #{residual_block_forward.7} parent=35 // pred_fallthru
        _
    $region36: #{residual_block_forward.7} parent=5 // pred_fallthru
      _
    %p308 = scmp.le.s32.totalorder 1, %s14
    %p309 = scmp.lt.s32.totalorder %s14, 5
    %p310 = pnand %p308, %p309
    %p311 = pneg %p310
    // Predicated region
    $region49: #{residual_block_forward.7} parent=5 // pred_check
      _
    $region50: #{residual_block_forward.7} parent=5 // pred_check_branch
      %313 = sbr.rel (%p310) target = $region52
    $region51: #{residual_block_forward.7} parent=5 // pred_region
      %s314 = ssub.s32 %s14, 1
      %s315 = smul.u32 16, %s24
      %p316 = scmp.lt.s32.totalorder %s23, 1
      %s317 = scalar_select %p316, %s23, 1
      %p318 = scmp.lt.s32.totalorder %s315, 31
      %s319 = scalar_select %p318, %s315, 31
      %s320 = smul.addr %s317, 32
      %s321 = sadd.s32 %s319, %s320
      %s322 = smul.addr %s321, 8
      %s323 = scalar_lea.vmem %s0, %s322
      %p324 = pneg %p54
      %p325 = pneg %p51
      %p326 = scmp.lt.s32.totalorder %s23, 1
      %s327 = scalar_select %p326, %s23, 1
      %s328 = smul.addr %s327, 2
      %s329 = scalar_lea.vmem %s1, %s328
      %p330 = pneg %p80
      %p331 = pneg %p77
      %p332 = pneg %p101
      %p333 = pneg %p98
      %p334 = pneg %p122
      %p335 = pneg %p119
      %p336 = pneg %p143
      %p337 = pneg %p140
      %s338 = smul.u32 16, %s24
      %p339 = scmp.lt.s32.totalorder %s23, 1
      %s340 = scalar_select %p339, %s23, 1
      %p341 = scmp.lt.s32.totalorder %s338, 31
      %s342 = scalar_select %p341, %s338, 31
      %s343 = smul.addr %s340, 32
      %s344 = sadd.s32 %s342, %s343
      %s345 = smul.addr %s344, 4
      %s346 = scalar_lea.vmem %s5, %s345
      %p347 = pneg %p171
      %p348 = pneg %p168
      %p349 = pneg %p192
      %p350 = pneg %p189
      %p351 = pneg %p213
      %p352 = pneg %p210
      %p353 = pneg %p241
      %p354 = pneg %p238
      %s355 = smul.u32 16, %s24
      %p356 = scmp.lt.s32.totalorder %s23, 1
      %s357 = scalar_select %p356, %s23, 1
      %p358 = scmp.lt.s32.totalorder %s355, 31
      %s359 = scalar_select %p358, %s355, 31
      %s360 = smul.addr %s357, 32
      %s361 = sadd.s32 %s359, %s360
      %s362 = smul.addr %s361, 8
      %s363 = scalar_lea.vmem %s8, %s362
      %s364 = smul.u32 16, %s24
      %p365 = scmp.lt.s32.totalorder %s23, 1
      %s366 = scalar_select %p365, %s23, 1
      %p367 = scmp.lt.s32.totalorder %s364, 31
      %s368 = scalar_select %p367, %s364, 31
      %s369 = smul.addr %s366, 32
      %s370 = sadd.s32 %s368, %s369
      %s371 = smul.addr %s370, 8
      %s372 = scalar_lea.vmem %s0, %s371
      %s373 = smul.u32 16, %s24
      %p374 = scmp.lt.s32.totalorder %s23, 1
      %s375 = scalar_select %p374, %s23, 1
      %s376 = smul.addr %s375, 2
      %s377 = scalar_lea.vmem %s1, %s376
      %s378 = smul.u32 16, %s24
      %p379 = scmp.lt.s32.totalorder %s23, 1
      %s380 = scalar_select %p379, %s23, 1
      %p381 = scmp.lt.s32.totalorder %s378, 31
      %s382 = scalar_select %p381, %s378, 31
      %s383 = smul.addr %s380, 32
      %s384 = sadd.s32 %s382, %s383
      %s385 = smul.addr %s384, 4
      %s386 = scalar_lea.vmem %s5, %s385
      %s387 = smul.u32 16, %s24
      %s388 = smul.u32 16, %s24
      %p389 = scmp.lt.s32.totalorder %s23, 1
      %s390 = scalar_select %p389, %s23, 1
      %p391 = scmp.lt.s32.totalorder %s388, 31
      %s392 = scalar_select %p391, %s388, 31
      %s393 = smul.addr %s390, 32
      %s394 = sadd.s32 %s392, %s393
      %s395 = smul.addr %s394, 8
      %s396 = scalar_lea.vmem %s8, %s395
      %s397 = smul.u32 16, %s24
      %v398 = vld [vmem:[%s377] sm:$0x1]
      %v399 = vmul.f32 %v398, 0.001953125
      %v400 = vld [vmem:[%s377 + $0x1] sm:$0x1]
      %v401 = vmul.f32 %v400, 0.001953125
      %v402 = vadd.f32 %v401, 1e-06
      %v403 = vrsqrt.pop %v402
      %v404 = vmul.f32 %v403, %v402
      %v405 = vmul.f32 %v404, %v403
      %v406 = vmul.f32 0.5, %v405
      %v407 = vsub.f32 1.5, %v406
      %v408 = vmul.f32 %v403, %v407
      %vm409 = vweird.f32 %v402
      %vm410 = vweird.f32 %v403
      %vm411 = vmor %vm409, %vm410
      %v412 = vsel %vm411, %v403, %v408
      %v413 = vld [vmem:[%s4] sm:$0xf]
      %vm414 = vcmask 31744
      %v416 = vsel %vm414, %v399, 0
      %vm418 = vcmask 1043456
      %v420 = vsel %vm418, %v413, 0
      %422 = vmatpush.msra.mxu0 0.0
      %423 = vmatpush.msra.mxu0 0.0
      %424 = vmatpush.msra.mxu0 0.0
      %425 = vmatpush.msra.mxu0 0.0
      %426 = vmatpush.msra.mxu0 0.0
      %427 = vmatpush.msra.mxu0 0.0
      %428 = vmatpush.msra.mxu0 0.0
      %429 = vmatpush.msra.mxu0 0.0
      %430 = vmatpush.msra.mxu0 0.0
      %431 = vmatpush.msra.mxu0 0.0
      %432 = vmatpush.msra.mxu0 0.0
      %433 = vmatpush.msra.mxu0 0.0
      %434 = vmatpush.msra.mxu0 0.0
      %435 = vmatpush.msra.mxu0 0.0
      %436 = vmatpush.msra.mxu0 0.0
      %437 = vmatpush.msra.mxu0 %v420
      %438 = vmatmul.f32.gmra.mxu0 %v416
      %v439 = vpop.f32.mrf.mxu0
      %v440 = vadd.f32 0.0, %v439
      %441 = vdwg.mxu0
      %v443 = vsel %vm414, %v412, 0
      %445 = vmatpush.msra.mxu0 0.0
      %446 = vmatpush.msra.mxu0 0.0
      %447 = vmatpush.msra.mxu0 0.0
      %448 = vmatpush.msra.mxu0 0.0
      %449 = vmatpush.msra.mxu0 0.0
      %450 = vmatpush.msra.mxu0 0.0
      %451 = vmatpush.msra.mxu0 0.0
      %452 = vmatpush.msra.mxu0 0.0
      %453 = vmatpush.msra.mxu0 0.0
      %454 = vmatpush.msra.mxu0 0.0
      %455 = vmatpush.msra.mxu0 0.0
      %456 = vmatpush.msra.mxu0 0.0
      %457 = vmatpush.msra.mxu0 0.0
      %458 = vmatpush.msra.mxu0 0.0
      %459 = vmatpush.msra.mxu0 0.0
      %460 = vmatpush.msra.mxu0 %v420
      %461 = vmatmul.f32.gmra.mxu0 %v443
      %v462 = vpop.f32.mrf.mxu0
      %v463 = vadd.f32 0.0, %v462
      %464 = vdwg.mxu0
      %v465 = vld [vmem:[%s372] sm:$0xff]
      %v466 = vld [vmem:[%s372 + $0x8] sm:$0xff]
      %v467 = vld [vmem:[%s372 + $0x10] sm:$0xff]
      %v468 = vld [vmem:[%s372 + $0x18] sm:$0xff]
      %v469 = vld [vmem:[%s372 + $0x20] sm:$0xff]
      %v470 = vld [vmem:[%s372 + $0x28] sm:$0xff]
      %v471 = vld [vmem:[%s372 + $0x30] sm:$0xff]
      %v472 = vld [vmem:[%s372 + $0x38] sm:$0xff]
      %v473 = vld [vmem:[%s372 + $0x40] sm:$0xff]
      %v474 = vld [vmem:[%s372 + $0x48] sm:$0xff]
      %v475 = vld [vmem:[%s372 + $0x50] sm:$0xff]
      %v476 = vld [vmem:[%s372 + $0x58] sm:$0xff]
      %v477 = vld [vmem:[%s372 + $0x60] sm:$0xff]
      %v478 = vld [vmem:[%s372 + $0x68] sm:$0xff]
      %v479 = vld [vmem:[%s372 + $0x70] sm:$0xff]
      %v480 = vld [vmem:[%s372 + $0x78] sm:$0xff]
      %v481 = vperm.slane %v440, 0
      %v482 = vsub.f32 %v465, %v481
      %v483 = vsub.f32 %v466, %v481
      %v484 = vsub.f32 %v467, %v481
      %v485 = vsub.f32 %v468, %v481
      %v486 = vsub.f32 %v469, %v481
      %v487 = vsub.f32 %v470, %v481
      %v488 = vsub.f32 %v471, %v481
      %v489 = vsub.f32 %v472, %v481
      %v490 = vsub.f32 %v473, %v481
      %v491 = vsub.f32 %v474, %v481
      %v492 = vsub.f32 %v475, %v481
      %v493 = vsub.f32 %v476, %v481
      %v494 = vsub.f32 %v477, %v481
      %v495 = vsub.f32 %v478, %v481
      %v496 = vsub.f32 %v479, %v481
      %v497 = vsub.f32 %v480, %v481
      %v498 = vld [vmem:[%s2] sm:$0x1]
      %v499 = vmul.f32 %v463, %v498
      %v500 = vperm.slane %v499, 0
      %v501 = vmul.f32 %v482, %v500
      %v502 = vmul.f32 %v483, %v500
      %v503 = vmul.f32 %v484, %v500
      %v504 = vmul.f32 %v485, %v500
      %v505 = vmul.f32 %v486, %v500
      %v506 = vmul.f32 %v487, %v500
      %v507 = vmul.f32 %v488, %v500
      %v508 = vmul.f32 %v489, %v500
      %v509 = vmul.f32 %v490, %v500
      %v510 = vmul.f32 %v491, %v500
      %v511 = vmul.f32 %v492, %v500
      %v512 = vmul.f32 %v493, %v500
      %v513 = vmul.f32 %v494, %v500
      %v514 = vmul.f32 %v495, %v500
      %v515 = vmul.f32 %v496, %v500
      %v516 = vmul.f32 %v497, %v500
      %v517 = vld [vmem:[%s3] sm:$0x1]
      %v519 = vperm.slane %v517, 0
      %v521 = vadd.f32 %v501, %v519
      %v522 = vadd.f32 %v502, %v519
      %v523 = vadd.f32 %v503, %v519
      %v524 = vadd.f32 %v504, %v519
      %v525 = vadd.f32 %v505, %v519
      %v526 = vadd.f32 %v506, %v519
      %v527 = vadd.f32 %v507, %v519
      %v528 = vadd.f32 %v508, %v519
      %v529 = vadd.f32 %v509, %v519
      %v530 = vadd.f32 %v510, %v519
      %v531 = vadd.f32 %v511, %v519
      %v532 = vadd.f32 %v512, %v519
      %v533 = vadd.f32 %v513, %v519
      %v534 = vadd.f32 %v514, %v519
      %v535 = vadd.f32 %v515, %v519
      %v536 = vadd.f32 %v516, %v519
      %v537 = vmin.f32 %v521, 20.0
      %v538 = vmin.f32 %v522, 20.0
      %v539 = vmin.f32 %v523, 20.0
      %v540 = vmin.f32 %v524, 20.0
      %v541 = vmin.f32 %v525, 20.0
      %v542 = vmin.f32 %v526, 20.0
      %v543 = vmin.f32 %v527, 20.0
      %v544 = vmin.f32 %v528, 20.0
      %v545 = vmin.f32 %v529, 20.0
      %v546 = vmin.f32 %v530, 20.0
      %v547 = vmin.f32 %v531, 20.0
      %v548 = vmin.f32 %v532, 20.0
      %v549 = vmin.f32 %v533, 20.0
      %v550 = vmin.f32 %v534, 20.0
      %v551 = vmin.f32 %v535, 20.0
      %v552 = vmin.f32 %v536, 20.0
      %v553 = vmul.f32 %v537, 1.442695
      %v554 = vpow.pop %v553
      %v555 = vmul.f32 %v538, 1.442695
      %v556 = vpow.pop %v555
      %v557 = vmul.f32 %v539, 1.442695
      %v558 = vpow.pop %v557
      %v559 = vmul.f32 %v540, 1.442695
      %v560 = vpow.pop %v559
      %v561 = vmul.f32 %v541, 1.442695
      %v562 = vpow.pop %v561
      %v563 = vmul.f32 %v542, 1.442695
      %v564 = vpow.pop %v563
      %v565 = vmul.f32 %v543, 1.442695
      %v566 = vpow.pop %v565
      %v567 = vmul.f32 %v544, 1.442695
      %v568 = vpow.pop %v567
      %v569 = vmul.f32 %v545, 1.442695
      %v570 = vpow.pop %v569
      %v571 = vmul.f32 %v546, 1.442695
      %v572 = vpow.pop %v571
      %v573 = vmul.f32 %v547, 1.442695
      %v574 = vpow.pop %v573
      %v575 = vmul.f32 %v548, 1.442695
      %v576 = vpow.pop %v575
      %v577 = vmul.f32 %v549, 1.442695
      %v578 = vpow.pop %v577
      %v579 = vmul.f32 %v550, 1.442695
      %v580 = vpow.pop %v579
      %v581 = vmul.f32 %v551, 1.442695
      %v582 = vpow.pop %v581
      %v583 = vmul.f32 %v552, 1.442695
      %v584 = vpow.pop %v583
      %v585 = vadd.f32 %v554, 1.0
      %v586 = vadd.f32 %v556, 1.0
      %v587 = vadd.f32 %v558, 1.0
      %v588 = vadd.f32 %v560, 1.0
      %v589 = vadd.f32 %v562, 1.0
      %v590 = vadd.f32 %v564, 1.0
      %v591 = vadd.f32 %v566, 1.0
      %v592 = vadd.f32 %v568, 1.0
      %v593 = vadd.f32 %v570, 1.0
      %v594 = vadd.f32 %v572, 1.0
      %v595 = vadd.f32 %v574, 1.0
      %v596 = vadd.f32 %v576, 1.0
      %v597 = vadd.f32 %v578, 1.0
      %v598 = vadd.f32 %v580, 1.0
      %v599 = vadd.f32 %v582, 1.0
      %v600 = vadd.f32 %v584, 1.0
      %v601 = vmul.f32 %v585, %v585
      %v602 = vmul.f32 %v586, %v586
      %v603 = vmul.f32 %v587, %v587
      %v604 = vmul.f32 %v588, %v588
      %v605 = vmul.f32 %v589, %v589
      %v606 = vmul.f32 %v590, %v590
      %v607 = vmul.f32 %v591, %v591
      %v608 = vmul.f32 %v592, %v592
      %v609 = vmul.f32 %v593, %v593
      %v610 = vmul.f32 %v594, %v594
      %v611 = vmul.f32 %v595, %v595
      %v612 = vmul.f32 %v596, %v596
      %v613 = vmul.f32 %v597, %v597
      %v614 = vmul.f32 %v598, %v598
      %v615 = vmul.f32 %v599, %v599
      %v616 = vmul.f32 %v600, %v600
      %v617 = vadd.f32 %v601, 1.0
      %v618 = vadd.f32 %v602, 1.0
      %v619 = vadd.f32 %v603, 1.0
      %v620 = vadd.f32 %v604, 1.0
      %v621 = vadd.f32 %v605, 1.0
      %v622 = vadd.f32 %v606, 1.0
      %v623 = vadd.f32 %v607, 1.0
      %v624 = vadd.f32 %v608, 1.0
      %v625 = vadd.f32 %v609, 1.0
      %v626 = vadd.f32 %v610, 1.0
      %v627 = vadd.f32 %v611, 1.0
      %v628 = vadd.f32 %v612, 1.0
      %v629 = vadd.f32 %v613, 1.0
      %v630 = vadd.f32 %v614, 1.0
      %v631 = vadd.f32 %v615, 1.0
      %v632 = vadd.f32 %v616, 1.0
      %v633 = vrcp.pop %v617
      %v634 = vrcp.pop %v618
      %v635 = vrcp.pop %v619
      %v636 = vrcp.pop %v620
      %v637 = vrcp.pop %v621
      %v638 = vrcp.pop %v622
      %v639 = vrcp.pop %v623
      %v640 = vrcp.pop %v624
      %v641 = vrcp.pop %v625
      %v642 = vrcp.pop %v626
      %v643 = vrcp.pop %v627
      %v644 = vrcp.pop %v628
      %v645 = vrcp.pop %v629
      %v646 = vrcp.pop %v630
      %v647 = vrcp.pop %v631
      %v648 = vrcp.pop %v632
      %v649 = vmul.f32 %v633, 2.0
      %v650 = vmul.f32 %v634, 2.0
      %v651 = vmul.f32 %v635, 2.0
      %v652 = vmul.f32 %v636, 2.0
      %v653 = vmul.f32 %v637, 2.0
      %v654 = vmul.f32 %v638, 2.0
      %v655 = vmul.f32 %v639, 2.0
      %v656 = vmul.f32 %v640, 2.0
      %v657 = vmul.f32 %v641, 2.0
      %v658 = vmul.f32 %v642, 2.0
      %v659 = vmul.f32 %v643, 2.0
      %v660 = vmul.f32 %v644, 2.0
      %v661 = vmul.f32 %v645, 2.0
      %v662 = vmul.f32 %v646, 2.0
      %v663 = vmul.f32 %v647, 2.0
      %v664 = vmul.f32 %v648, 2.0
      %v665 = vsub.f32 1.0, %v649
      %v666 = vsub.f32 1.0, %v650
      %v667 = vsub.f32 1.0, %v651
      %v668 = vsub.f32 1.0, %v652
      %v669 = vsub.f32 1.0, %v653
      %v670 = vsub.f32 1.0, %v654
      %v671 = vsub.f32 1.0, %v655
      %v672 = vsub.f32 1.0, %v656
      %v673 = vsub.f32 1.0, %v657
      %v674 = vsub.f32 1.0, %v658
      %v675 = vsub.f32 1.0, %v659
      %v676 = vsub.f32 1.0, %v660
      %v677 = vsub.f32 1.0, %v661
      %v678 = vsub.f32 1.0, %v662
      %v679 = vsub.f32 1.0, %v663
      %v680 = vsub.f32 1.0, %v664
      %v681 = vmul.f32 %v521, %v665
      %v682 = vmul.f32 %v522, %v666
      %v683 = vmul.f32 %v523, %v667
      %v684 = vmul.f32 %v524, %v668
      %v685 = vmul.f32 %v525, %v669
      %v686 = vmul.f32 %v526, %v670
      %v687 = vmul.f32 %v527, %v671
      %v688 = vmul.f32 %v528, %v672
      %v689 = vmul.f32 %v529, %v673
      %v690 = vmul.f32 %v530, %v674
      %v691 = vmul.f32 %v531, %v675
      %v692 = vmul.f32 %v532, %v676
      %v693 = vmul.f32 %v533, %v677
      %v694 = vmul.f32 %v534, %v678
      %v695 = vmul.f32 %v535, %v679
      %v696 = vmul.f32 %v536, %v680
      %v697 = vld [vmem:[%s386] sm:$0xf]
      %v698 = vld [vmem:[%s386 + $0x4] sm:$0xf]
      %v699 = vld [vmem:[%s386 + $0x8] sm:$0xf]
      %v700 = vld [vmem:[%s386 + $0xc] sm:$0xf]
      %v701 = vld [vmem:[%s386 + $0x10] sm:$0xf]
      %v702 = vld [vmem:[%s386 + $0x14] sm:$0xf]
      %v703 = vld [vmem:[%s386 + $0x18] sm:$0xf]
      %v704 = vld [vmem:[%s386 + $0x1c] sm:$0xf]
      %v705 = vld [vmem:[%s386 + $0x20] sm:$0xf]
      %v706 = vld [vmem:[%s386 + $0x24] sm:$0xf]
      %v707 = vld [vmem:[%s386 + $0x28] sm:$0xf]
      %v708 = vld [vmem:[%s386 + $0x2c] sm:$0xf]
      %v709 = vld [vmem:[%s386 + $0x30] sm:$0xf]
      %v710 = vld [vmem:[%s386 + $0x34] sm:$0xf]
      %v711 = vld [vmem:[%s386 + $0x38] sm:$0xf]
      %v712 = vld [vmem:[%s386 + $0x3c] sm:$0xf]
      %v713 = vld [vmem:[%s6] sm:$0xf]
      %v714 = vld [vmem:[%s6 + $0x4] sm:$0xf]
      %v715 = vld [vmem:[%s6 + $0x8] sm:$0xf]
      %v716 = vld [vmem:[%s6 + $0xc] sm:$0xf]
      %v717 = vld [vmem:[%s6 + $0x10] sm:$0xf]
      %v718 = vld [vmem:[%s6 + $0x14] sm:$0xf]
      %v719 = vld [vmem:[%s6 + $0x18] sm:$0xf]
      %v720 = vld [vmem:[%s6 + $0x1c] sm:$0xf]
      %v721 = vld [vmem:[%s6 + $0x20] sm:$0xf]
      %v722 = vld [vmem:[%s6 + $0x24] sm:$0xf]
      %v723 = vld [vmem:[%s6 + $0x28] sm:$0xf]
      %v724 = vld [vmem:[%s6 + $0x2c] sm:$0xf]
      %v725 = vld [vmem:[%s6 + $0x30] sm:$0xf]
      %v726 = vld [vmem:[%s6 + $0x34] sm:$0xf]
      %v727 = vld [vmem:[%s6 + $0x38] sm:$0xf]
      %v728 = vld [vmem:[%s6 + $0x3c] sm:$0xf]
      %v729 = vld [vmem:[%s7] sm:$0x1]
      %v731 = vperm.slane %v729, 0
      %v749 = vunpack.c.l.b16 %v697
      %v750 = vunpack.c.l.b16 %v698
      %v751 = vunpack.c.l.b16 %v699
      %v752 = vunpack.c.l.b16 %v700
      %v753 = vunpack.c.l.b16 %v701
      %v754 = vunpack.c.l.b16 %v702
      %v755 = vunpack.c.l.b16 %v703
      %v756 = vunpack.c.l.b16 %v704
      %v757 = vunpack.c.l.b16 %v705
      %v758 = vunpack.c.l.b16 %v706
      %v759 = vunpack.c.l.b16 %v707
      %v760 = vunpack.c.l.b16 %v708
      %v761 = vunpack.c.l.b16 %v709
      %v762 = vunpack.c.l.b16 %v710
      %v763 = vunpack.c.l.b16 %v711
      %v764 = vunpack.c.l.b16 %v712
      %v765 = vpack.c.b16 %v750, %v749
      %v766 = vpack.c.b16 %v752, %v751
      %v767 = vpack.c.b16 %v754, %v753
      %v768 = vpack.c.b16 %v756, %v755
      %v769 = vpack.c.b16 %v758, %v757
      %v770 = vpack.c.b16 %v760, %v759
      %v771 = vpack.c.b16 %v762, %v761
      %v772 = vpack.c.b16 %v764, %v763
      %v797 = vunpack.c.l.b16 %v713
      %v798 = vunpack.c.l.b16 %v714
      %v799 = vunpack.c.l.b16 %v715
      %v800 = vunpack.c.l.b16 %v716
      %v801 = vunpack.c.l.b16 %v717
      %v802 = vunpack.c.l.b16 %v718
      %v803 = vunpack.c.l.b16 %v719
      %v804 = vunpack.c.l.b16 %v720
      %v805 = vunpack.c.l.b16 %v721
      %v806 = vunpack.c.l.b16 %v722
      %v807 = vunpack.c.l.b16 %v723
      %v808 = vunpack.c.l.b16 %v724
      %v809 = vunpack.c.l.b16 %v725
      %v810 = vunpack.c.l.b16 %v726
      %v811 = vunpack.c.l.b16 %v727
      %v812 = vunpack.c.l.b16 %v728
      %v813 = vpack.c.b16 %v798, %v797
      %v814 = vpack.c.b16 %v800, %v799
      %v815 = vpack.c.b16 %v802, %v801
      %v816 = vpack.c.b16 %v804, %v803
      %v817 = vpack.c.b16 %v806, %v805
      %v818 = vpack.c.b16 %v808, %v807
      %v819 = vpack.c.b16 %v810, %v809
      %v820 = vpack.c.b16 %v812, %v811
      %829 = vmatpush.bf16.msra.mxu0 %v820
      %830 = vmatpush.bf16.msra.mxu0 %v819
      %831 = vmatpush.bf16.msra.mxu0 %v818
      %832 = vmatpush.bf16.msra.mxu0 %v817
      %833 = vmatpush.bf16.msra.mxu0 %v816
      %834 = vmatpush.bf16.msra.mxu0 %v815
      %835 = vmatpush.bf16.msra.mxu0 %v814
      %836 = vmatpush.bf16.msra.mxu0 %v813
      %837 = vmatmul.bf16.gmra.mxu0 %v765
      %v838 = vpop.f32.mrf.mxu0
      %v839 = vadd.f32 %v731, %v838
      %v840 = vpop.f32.mrf.mxu0
      %v841 = vadd.f32 %v731, %v840
      %842 = vmatmul.bf16.gmra.mxu0 %v766
      %v843 = vpop.f32.mrf.mxu0
      %v844 = vadd.f32 %v731, %v843
      %v845 = vpop.f32.mrf.mxu0
      %v846 = vadd.f32 %v731, %v845
      %847 = vmatmul.bf16.gmra.mxu0 %v767
      %v848 = vpop.f32.mrf.mxu0
      %v849 = vadd.f32 %v731, %v848
      %v850 = vpop.f32.mrf.mxu0
      %v851 = vadd.f32 %v731, %v850
      %852 = vmatmul.bf16.gmra.mxu0 %v768
      %v853 = vpop.f32.mrf.mxu0
      %v854 = vadd.f32 %v731, %v853
      %v855 = vpop.f32.mrf.mxu0
      %v856 = vadd.f32 %v731, %v855
      %857 = vmatmul.bf16.gmra.mxu0 %v769
      %v858 = vpop.f32.mrf.mxu0
      %v859 = vadd.f32 %v731, %v858
      %v860 = vpop.f32.mrf.mxu0
      %v861 = vadd.f32 %v731, %v860
      %862 = vmatmul.bf16.gmra.mxu0 %v770
      %v863 = vpop.f32.mrf.mxu0
      %v864 = vadd.f32 %v731, %v863
      %v865 = vpop.f32.mrf.mxu0
      %v866 = vadd.f32 %v731, %v865
      %867 = vmatmul.bf16.gmra.mxu0 %v771
      %v868 = vpop.f32.mrf.mxu0
      %v869 = vadd.f32 %v731, %v868
      %v870 = vpop.f32.mrf.mxu0
      %v871 = vadd.f32 %v731, %v870
      %872 = vmatmul.bf16.gmra.mxu0 %v772
      %v873 = vpop.f32.mrf.mxu0
      %v874 = vadd.f32 %v731, %v873
      %v875 = vpop.f32.mrf.mxu0
      %v876 = vadd.f32 %v731, %v875
      %877 = vdwg.mxu0
      %v878 = vadd.f32 %v681, %v839
      %v879 = vadd.f32 %v682, %v841
      %v880 = vadd.f32 %v683, %v844
      %v881 = vadd.f32 %v684, %v846
      %v882 = vadd.f32 %v685, %v849
      %v883 = vadd.f32 %v686, %v851
      %v884 = vadd.f32 %v687, %v854
      %v885 = vadd.f32 %v688, %v856
      %v886 = vadd.f32 %v689, %v859
      %v887 = vadd.f32 %v690, %v861
      %v888 = vadd.f32 %v691, %v864
      %v889 = vadd.f32 %v692, %v866
      %v890 = vadd.f32 %v693, %v869
      %v891 = vadd.f32 %v694, %v871
      %v892 = vadd.f32 %v695, %v874
      %v893 = vadd.f32 %v696, %v876
      %894 = vst [vmem:[%s396] sm:$0xff] %v878
      %895 = vst [vmem:[%s396 + $0x8] sm:$0xff] %v879
      %896 = vst [vmem:[%s396 + $0x10] sm:$0xff] %v880
      %897 = vst [vmem:[%s396 + $0x18] sm:$0xff] %v881
      %898 = vst [vmem:[%s396 + $0x20] sm:$0xff] %v882
      %899 = vst [vmem:[%s396 + $0x28] sm:$0xff] %v883
      %900 = vst [vmem:[%s396 + $0x30] sm:$0xff] %v884
      %901 = vst [vmem:[%s396 + $0x38] sm:$0xff] %v885
      %902 = vst [vmem:[%s396 + $0x40] sm:$0xff] %v886
      %903 = vst [vmem:[%s396 + $0x48] sm:$0xff] %v887
      %904 = vst [vmem:[%s396 + $0x50] sm:$0xff] %v888
      %905 = vst [vmem:[%s396 + $0x58] sm:$0xff] %v889
      %906 = vst [vmem:[%s396 + $0x60] sm:$0xff] %v890
      %907 = vst [vmem:[%s396 + $0x68] sm:$0xff] %v891
      %908 = vst [vmem:[%s396 + $0x70] sm:$0xff] %v892
      %909 = vst [vmem:[%s396 + $0x78] sm:$0xff] %v893
      %s910 = smul.u32 16, %s24
      %p911 = scmp.lt.s32.totalorder %s23, 1
      %s912 = scalar_select %p911, %s23, 1
      %p913 = scmp.lt.s32.totalorder %s910, 31
      %s914 = scalar_select %p913, %s910, 31
      %s915 = smul.addr %s912, 32
      %s916 = sadd.s32 %s914, %s915
      %s917 = smul.addr %s916, 8
      %s918 = scalar_lea.vmem %s8, %s917
      // Predicated region
      $region53: #{residual_block_forward.7} parent=51 // pred_check
        %p919 = pneg %p238
      $region54: #{residual_block_forward.7} parent=51 // pred_check_branch
        %921 = sbr.rel (%p919) target = $region56
      $region55: #{residual_block_forward.7} parent=51 // pred_region
        %s922 = smul.u32 16, %s24
      $region56: #{residual_block_forward.7} parent=51 // pred_fallthru
        _
    $region52: #{residual_block_forward.7} parent=5 // pred_fallthru
      _
    %p923 = scmp.le.s32.totalorder 2, %s14
    // Predicated region
    $region57: #{residual_block_forward.7} parent=5 // pred_check
      %p924 = pneg %p923
    $region58: #{residual_block_forward.7} parent=5 // pred_check_branch
      %926 = sbr.rel (%p924) target = $region60
    $region59: #{residual_block_forward.7} parent=5 // pred_region
      %s927 = ssub.s32 %s14, 2
      // Predicated region
      $region61: #{residual_block_forward.7} parent=59 // pred_check
        %p928 = pneg %p244
      $region62: #{residual_block_forward.7} parent=59 // pred_check_branch
        %930 = sbr.rel (%p928) target = $region64
      $region63: #{residual_block_forward.7} parent=59 // pred_region
        %s931 = smul.u32 16, %s26
        %p932 = scmp.lt.s32.totalorder %s25, 1
        %s933 = scalar_select %p932, %s25, 1
        %p934 = scmp.lt.s32.totalorder %s931, 31
        %s935 = scalar_select %p934, %s931, 31
        %s936 = smul.addr %s933, 32
        %s937 = sadd.s32 %s935, %s936
        %s938 = smul.addr %s937, 8
        %s939 = scalar_lea.vmem %s8, %s938
      $region64: #{residual_block_forward.7} parent=59 // pred_fallthru
        _
    $region60: #{residual_block_forward.7} parent=5 // pred_fallthru
      _
  $region6: #{residual_block_forward.7} parent=0 // loop_footer
    %s18 = sadd.s32 1, %s14
  $region7: #{residual_block_forward.7} parent=0 // loop_footer_branch
    %13 = sbr.rel target = $region3
  $region8: #{residual_block_forward.7} parent=0 // loop_exit
    _

</llo_original>
